<compile_context>
chip_gen: v6e
topology: v6e:2x2x1
jax: 0.10.0
libtpu: 0.0.40
codegen_flags: <defaults>
</compile_context>

<pallas_src>
import jax
import jax.numpy as jnp
from jax import lax
from jax.experimental import pallas as pl
from jax.experimental.pallas import tpu as pltpu


def _round_up(n, m):
    return ((n + m - 1) // m) * m


def gru_linear_kernel(x_ref, wih_ref, whh_ref, b3_ref, bhn_ref, wlin_ref, blin_ref,
                      y_ref, gi_ref, hs_ref, h_ref):
    """One (batch-block, time-chunk) grid step of the fused GRU + Linear.

    Time-major layout: every per-timestep access is a full (BB, *) sublane tile.

    x_ref    : [TC, BB, Fp]    input chunk (zero padded)
    wih_ref  : [Fp, 3*Hp]      fused input weights (transposed), gate order r|z|n
    whh_ref  : [Hp, 3*Hp]      fused hidden weights (transposed)
    b3_ref   : [1, 3*Hp]       folded biases [b_ir+b_hr | b_iz+b_hz | b_in]
    bhn_ref  : [1, Hp]         b_hn (must stay inside r*(...), PyTorch GRU semantics)
    wlin_ref : [Hp, Op]        Linear weight (transposed, lane-padded output)
    blin_ref : [1, Op]         Linear bias
    y_ref    : [TC, BB, Op]    output chunk (lane-dense)
    gi_ref   : [TC, BB, 3*Hp]  scratch: hoisted per-chunk input projections
    hs_ref   : [TC, BB, Hp]    scratch: hidden states of this chunk
    h_ref    : [BB, Hp]        scratch: hidden-state carry across time chunks
    """
    TC, BB, Hp3 = gi_ref.shape
    Hp = h_ref.shape[-1]
    Fp = x_ref.shape[-1]
    cdt = wih_ref.dtype                     # MXU input dtype (f32, or bf16 if opted in)

    # Reset the carried hidden state at the start of each batch block's time sweep.
    @pl.when(pl.program_id(1) == 0)
    def _():
        h_ref[...] = jnp.zeros_like(h_ref)

    # ---- Hoisted fused input projection: one (TC*BB, Fp) @ (Fp, 3Hp) per chunk ----
    x2d = x_ref[...].reshape(TC * BB, Fp).astype(cdt)
    gi = jnp.dot(x2d, wih_ref[...], preferred_element_type=jnp.float32) + b3_ref[...]
    gi_ref[...] = gi.reshape(TC, BB, Hp3)

    # Hoist constant loads out of the serial loop.
    whh = whh_ref[...]
    bhn = bhn_ref[...]

    def step(t, h):
        gi_t = gi_ref[t]                                               # (BB, 3Hp) dense load
        gh = jnp.dot(h.astype(cdt), whh,
                     preferred_element_type=jnp.float32)               # (BB, 3Hp), 1 MXU op
        r = jax.nn.sigmoid(gi_t[:, 0:Hp] + gh[:, 0:Hp])
        z = jax.nn.sigmoid(gi_t[:, Hp:2 * Hp] + gh[:, Hp:2 * Hp])
        n = jnp.tanh(gi_t[:, 2 * Hp:3 * Hp] + r * (gh[:, 2 * Hp:3 * Hp] + bhn))
        h_new = (1.0 - z) * n + z * h
        hs_ref[t] = h_new                                              # (BB, Hp) dense store
        return h_new

    unroll = True if TC <= 16 else (8 if Hp <= 256 else 4)
    h_last = lax.fori_loop(0, TC, step, h_ref[...], unroll=unroll)
    h_ref[...] = h_last                                                # carry to next chunk

    # ---- Hoisted lane-dense output Linear: one (TC*BB, Hp) @ (Hp, Op) per chunk ----
    hs2d = hs_ref[...].reshape(TC * BB, Hp).astype(cdt)
    y = jnp.dot(hs2d, wlin_ref[...], preferred_element_type=jnp.float32) + blin_ref[...]
    y_ref[...] = y.reshape(TC, BB, y_ref.shape[-1]).astype(y_ref.dtype)


def recurrent_forward(x_btf, params, *, time_chunk=128, batch_block=8,
                      use_bf16_matmul=False):
    """x_btf: [B, T, F] (PyTorch batch_first convention). Returns [B, T, O]."""
    B, T, F = x_btf.shape
    H = F
    O = params["w_lin"].shape[0]

    LANE, SUB = 128, 8
    Fp = _round_up(F, LANE)
    Hp = _round_up(H, LANE)
    Op = _round_up(O, LANE)

    # Batch rows per grid step (>= 8 sublanes).  For v7x keep B_pad//BB >= 2 when B is
    # large so both TensorCores get work; for the tiny test grid extent 1 is fine.
    BB = _round_up(max(batch_block, SUB), SUB)
    B_pad = _round_up(B, BB)
    TC = T if T <= time_chunk else time_chunk
    T_pad = _round_up(T, TC)
    n_chunks = T_pad // TC

    cdt = jnp.bfloat16 if use_bf16_matmul else jnp.float32

    w_ih = params["w_ih"].astype(jnp.float32)      # (3H, F), gate order r|z|n
    w_hh = params["w_hh"].astype(jnp.float32)      # (3H, H)
    b_ih = params["b_ih"].astype(jnp.float32)      # (3H,)
    b_hh = params["b_hh"].astype(jnp.float32)      # (3H,)

    def pad2(a, r, c):
        return jnp.pad(a, ((0, r - a.shape[0]), (0, c - a.shape[1])))

    def pad1(v, n):
        return jnp.pad(v, (0, n - v.shape[0]))

    # Fused, transposed, lane-padded weights: gate g occupies columns [g*Hp, (g+1)*Hp).
    # Zero padding is exact: padded rows/cols never leak into real outputs.
    wih_cat = jnp.concatenate(
        [pad2(w_ih[g * H:(g + 1) * H, :].T, Fp, Hp) for g in range(3)], axis=1)  # (Fp, 3Hp)
    whh_cat = jnp.concatenate(
        [pad2(w_hh[g * H:(g + 1) * H, :].T, Hp, Hp) for g in range(3)], axis=1)  # (Hp, 3Hp)
    # Hoistable biases pre-folded; b_hn must stay inside r*(...).
    b3_cat = jnp.concatenate(
        [pad1(b_ih[0:H] + b_hh[0:H], Hp),
         pad1(b_ih[H:2 * H] + b_hh[H:2 * H], Hp),
         pad1(b_ih[2 * H:3 * H], Hp)])[None, :]                                  # (1, 3Hp)
    bhn = pad1(b_hh[2 * H:3 * H], Hp)[None, :]                                   # (1, Hp)
    wlin = pad2(params["w_lin"].astype(jnp.float32).T, Hp, Op)                   # (Hp, Op)
    blin = pad1(params["b_lin"].astype(jnp.float32), Op)[None, :]                # (1, Op)

    wih_cat = wih_cat.astype(cdt)
    whh_cat = whh_cat.astype(cdt)
    wlin = wlin.astype(cdt)

    # Zero-pad x and switch to time-major layout so per-timestep accesses inside the
    # kernel are full sublane tiles and the output store is lane-dense.
    x = x_btf.astype(jnp.float32)
    x = jnp.pad(x, ((0, B_pad - B), (0, T_pad - T), (0, Fp - F)))
    x = jnp.transpose(x, (1, 0, 2))                                              # (T_pad, B_pad, Fp)

    kernel_args = (x, wih_cat, whh_cat, b3_cat, bhn, wlin, blin)

    def build(single_buffer_weights):
        wopt = {"pipeline_mode": pl.Buffered(1)} if single_buffer_weights else {}
        return pl.pallas_call(
            gru_linear_kernel,
            out_shape=jax.ShapeDtypeStruct((T_pad, B_pad, Op), jnp.float32),
            grid_spec=pltpu.PrefetchScalarGridSpec(
                num_scalar_prefetch=0,
                grid=(B_pad // BB, n_chunks),
                in_specs=[
                    pl.BlockSpec((TC, BB, Fp), lambda b, t: (t, b, 0)),        # x chunk
                    pl.BlockSpec((Fp, 3 * Hp), lambda b, t: (0, 0), **wopt),   # wih_cat
                    pl.BlockSpec((Hp, 3 * Hp), lambda b, t: (0, 0), **wopt),   # whh_cat
                    pl.BlockSpec((1, 3 * Hp), lambda b, t: (0, 0), **wopt),    # folded biases
                    pl.BlockSpec((1, Hp), lambda b, t: (0, 0), **wopt),        # b_hn
                    pl.BlockSpec((Hp, Op), lambda b, t: (0, 0), **wopt),       # wlin
                    pl.BlockSpec((1, Op), lambda b, t: (0, 0), **wopt),        # blin
                ],
                out_specs=pl.BlockSpec((TC, BB, Op), lambda b, t: (t, b, 0)),
                scratch_shapes=[
                    pltpu.VMEM((TC, BB, 3 * Hp), jnp.float32),   # gi slab
                    pltpu.VMEM((TC, BB, Hp), jnp.float32),       # hidden-state slab
                    pltpu.VMEM((BB, Hp), jnp.float32),           # hidden-state carry
                ],
            ),
            compiler_params=pltpu.CompilerParams(
                dimension_semantics=("parallel", "arbitrary"),   # batch-blocks // TCs (v7x)
                vmem_limit_bytes=64 * 1024 * 1024,               # re-sweep per generation
            ),
        )

    try:
        # Constant block index -> single-buffer the weights (halves constant VMEM; key
        # for large H on v7x's 64 MiB VMEM).
        y_tbo = build(True)(*kernel_args)
    except Exception:
        # Fallback if this jax build rejects pipeline_mode / Buffered(1): default buffering.
        y_tbo = build(False)(*kernel_args)

    return jnp.transpose(y_tbo, (1, 0, 2))[:B, :T, :O]


def recurrent_forward_ref(x_btf, params):
    """Pure-JAX reference (PyTorch GRU semantics, gate order r|z|n)."""
    F = x_btf.shape[-1]
    H = F
    w_ih, w_hh = params["w_ih"], params["w_hh"]
    b_ih, b_hh = params["b_ih"], params["b_hh"]

    def cell(h, x_t):
        gi = x_t @ w_ih.T + b_ih
        gh = h @ w_hh.T + b_hh
        r = jax.nn.sigmoid(gi[:, 0:H] + gh[:, 0:H])
        z = jax.nn.sigmoid(gi[:, H:2 * H] + gh[:, H:2 * H])
        n = jnp.tanh(gi[:, 2 * H:3 * H] + r * gh[:, 2 * H:3 * H])
        h_new = (1.0 - z) * n + z * h
        return h_new, h_new

    B = x_btf.shape[0]
    h0 = jnp.zeros((B, H), jnp.float32)
    _, hs = lax.scan(cell, h0, jnp.transpose(x_btf, (1, 0, 2)))   # hs: [T, B, H]
    y = hs @ params["w_lin"].T + params["b_lin"]
    return jnp.transpose(y, (1, 0, 2))


def init_params(key, input_feature_count, output_feature_count):
    """Deterministic synthetic parameters, PyTorch-style uniform(-k, k) init."""
    F = input_feature_count
    H = F
    O = output_feature_count
    k_gru = 1.0 / jnp.sqrt(H)
    k_lin = 1.0 / jnp.sqrt(H)
    ks = jax.random.split(key, 6)
    return {
        "w_ih": jax.random.uniform(ks[0], (3 * H, F), jnp.float32, -k_gru, k_gru),
        "w_hh": jax.random.uniform(ks[1], (3 * H, H), jnp.float32, -k_gru, k_gru),
        "b_ih": jax.random.uniform(ks[2], (3 * H,), jnp.float32, -k_gru, k_gru),
        "b_hh": jax.random.uniform(ks[3], (3 * H,), jnp.float32, -k_gru, k_gru),
        "w_lin": jax.random.uniform(ks[4], (O, H), jnp.float32, -k_lin, k_lin),
        "b_lin": jax.random.uniform(ks[5], (O,), jnp.float32, -k_lin, k_lin),
    }


if __name__ == "__main__":
    B, T = 2, 8
    input_feature_count = 32     # GRU hidden_size == input_size in the module
    output_feature_count = 16

    key = jax.random.PRNGKey(0)
    k_x, k_p = jax.random.split(key)
    x = jax.random.normal(k_x, (B, T, input_feature_count), jnp.float32)
    params = init_params(k_p, input_feature_count, output_feature_count)

    y = jax.block_until_ready(recurrent_forward(x, params))
    y_ref = jax.block_until_ready(recurrent_forward_ref(x, params))

    assert y.shape == (B, T, output_feature_count)
    assert jnp.allclose(y, y_ref, atol=1e-4, rtol=1e-4), "mismatch vs reference"

    # TODO(synk): streamable-mode (stream slicing / final_slice bookkeeping) has no
    # Pallas equivalent; only the stationary forward pass is implemented.
    print("KERNEL_OK")
</pallas_src>

<mosaic_0001>
module attributes {stable_mosaic.version = 11 : i64} {
  func.func @gru_linear_kernel(%arg0: i32, %arg1: i32, %arg2: memref<8x8x128xf32, #tpu.memory_space<vmem>>, %arg3: memref<128x384xf32, #tpu.memory_space<vmem>>, %arg4: memref<128x384xf32, #tpu.memory_space<vmem>>, %arg5: memref<1x384xf32, #tpu.memory_space<vmem>>, %arg6: memref<1x128xf32, #tpu.memory_space<vmem>>, %arg7: memref<128x128xf32, #tpu.memory_space<vmem>>, %arg8: memref<1x128xf32, #tpu.memory_space<vmem>>, %arg9: memref<8x8x128xf32, #tpu.memory_space<vmem>>, %arg10: memref<8x8x384xf32, #tpu.memory_space<vmem>>, %arg11: memref<8x8x128xf32, #tpu.memory_space<vmem>>, %arg12: memref<8x128xf32, #tpu.memory_space<vmem>>) attributes {dimension_semantics = [#tpu.dimension_semantics<parallel>, #tpu.dimension_semantics<arbitrary>], iteration_bounds = array<i64: 1, 1>, scalar_prefetch = 0 : i64, scratch_operands = 3 : i64, tpu.core_type = #tpu.core_type<tc>, window_params = [{transform_indices = @transform_0, window_bounds = array<i64: 8, 8, 128>}, {pipeline_mode = #tpu.pipeline_mode<synchronous>, transform_indices = @transform_1, window_bounds = array<i64: 128, 384>}, {pipeline_mode = #tpu.pipeline_mode<synchronous>, transform_indices = @transform_2, window_bounds = array<i64: 128, 384>}, {pipeline_mode = #tpu.pipeline_mode<synchronous>, transform_indices = @transform_3, window_bounds = array<i64: 1, 384>}, {pipeline_mode = #tpu.pipeline_mode<synchronous>, transform_indices = @transform_4, window_bounds = array<i64: 1, 128>}, {pipeline_mode = #tpu.pipeline_mode<synchronous>, transform_indices = @transform_5, window_bounds = array<i64: 128, 128>}, {pipeline_mode = #tpu.pipeline_mode<synchronous>, transform_indices = @transform_6, window_bounds = array<i64: 1, 128>}, {transform_indices = @transform_7, window_bounds = array<i64: 8, 8, 128>}]} {
    %c0_i32 = arith.constant 0 : i32
    %0 = arith.cmpi eq, %arg1, %c0_i32 : i32
    %1 = arith.extui %0 : i1 to i32
    %c0_i32_0 = arith.constant 0 : i32
    %2 = arith.cmpi ne, %1, %c0_i32_0 : i32
    scf.if %2 {
      %cst_94 = arith.constant 0.000000e+00 : f32
      %313 = vector.broadcast %cst_94 : f32 to vector<8x128xf32>
      %c0_95 = arith.constant 0 : index
      %c0_96 = arith.constant 0 : index
      %314 = vector.load %arg12[%c0_95, %c0_96] : memref<8x128xf32, #tpu.memory_space<vmem>>, vector<8x128xf32>
      tpu.vector_store %arg12[%c0_95, %c0_96], %313 {strides = array<i32>} : memref<8x128xf32, #tpu.memory_space<vmem>>, vector<8x128xf32>,
    } else {
    }
    %c0 = arith.constant 0 : index
    %c0_1 = arith.constant 0 : index
    %c0_2 = arith.constant 0 : index
    %3 = vector.load %arg2[%c0, %c0_1, %c0_2] : memref<8x8x128xf32, #tpu.memory_space<vmem>>, vector<8x8x128xf32>
    %4 = vector.shape_cast %3 : vector<8x8x128xf32> to vector<64x128xf32>
    %c0_3 = arith.constant 0 : index
    %c0_4 = arith.constant 0 : index
    %5 = vector.load %arg3[%c0_3, %c0_4] : memref<128x384xf32, #tpu.memory_space<vmem>>, vector<128x384xf32>
    %cst = arith.constant dense<0.000000e+00> : vector<64x384xf32>
    %6 = tpu.matmul %4, %5, %cst {dimension_numbers = #tpu.dot_dimension_numbers<[1], [0], [0], [1], [0, 0, 1, 1], [], []>} : vector<64x128xf32>, vector<128x384xf32>, vector<64x384xf32> -> vector<64x384xf32>
    %c0_5 = arith.constant 0 : index
    %c0_6 = arith.constant 0 : index
    %7 = vector.load %arg5[%c0_5, %c0_6] : memref<1x384xf32, #tpu.memory_space<vmem>>, vector<1x384xf32>
    %8 = vector.broadcast %7 : vector<1x384xf32> to vector<64x384xf32>
    %9 = arith.addf %6, %8 : vector<64x384xf32>
    %10 = vector.shape_cast %9 : vector<64x384xf32> to vector<8x8x384xf32>
    %c0_7 = arith.constant 0 : index
    %c0_8 = arith.constant 0 : index
    %c0_9 = arith.constant 0 : index
    %11 = vector.load %arg10[%c0_7, %c0_8, %c0_9] : memref<8x8x384xf32, #tpu.memory_space<vmem>>, vector<8x8x384xf32>
    tpu.vector_store %arg10[%c0_7, %c0_8, %c0_9], %10 {strides = array<i32>} : memref<8x8x384xf32, #tpu.memory_space<vmem>>, vector<8x8x384xf32>,
    %c0_10 = arith.constant 0 : index
    %c0_11 = arith.constant 0 : index
    %12 = vector.load %arg4[%c0_10, %c0_11] : memref<128x384xf32, #tpu.memory_space<vmem>>, vector<128x384xf32>
    %c0_12 = arith.constant 0 : index
    %c0_13 = arith.constant 0 : index
    %13 = vector.load %arg6[%c0_12, %c0_13] : memref<1x128xf32, #tpu.memory_space<vmem>>, vector<1x128xf32>
    %c0_14 = arith.constant 0 : index
    %c0_15 = arith.constant 0 : index
    %14 = vector.load %arg12[%c0_14, %c0_15] : memref<8x128xf32, #tpu.memory_space<vmem>>, vector<8x128xf32>
    %c0_i32_16 = arith.constant 0 : i32
    %15 = arith.index_cast %c0_i32_16 : i32 to index
    %c0_17 = arith.constant 0 : index
    %c0_18 = arith.constant 0 : index
    %16 = vector.load %arg10[%15, %c0_17, %c0_18] : memref<8x8x384xf32, #tpu.memory_space<vmem>>, vector<1x8x384xf32>
    %17 = vector.shape_cast %16 : vector<1x8x384xf32> to vector<8x384xf32>
    %cst_19 = arith.constant dense<0.000000e+00> : vector<8x384xf32>
    %18 = tpu.matmul %14, %12, %cst_19 {dimension_numbers = #tpu.dot_dimension_numbers<[1], [0], [0], [1], [0, 0, 1, 1], [], []>} : vector<8x128xf32>, vector<128x384xf32>, vector<8x384xf32> -> vector<8x384xf32>
    %19 = vector.extract_strided_slice %17 {offsets = [0, 0], sizes = [8, 128], strides = [1, 1]} : vector<8x384xf32> to vector<8x128xf32>
    %20 = vector.extract_strided_slice %18 {offsets = [0, 0], sizes = [8, 128], strides = [1, 1]} : vector<8x384xf32> to vector<8x128xf32>
    %21 = arith.addf %19, %20 : vector<8x128xf32>
    %22 = arith.negf %21 : vector<8x128xf32>
    %23 = math.exp %22 : vector<8x128xf32>
    %cst_20 = arith.constant 1.000000e+00 : f32
    %24 = vector.broadcast %cst_20 : f32 to vector<8x128xf32>
    %25 = arith.addf %24, %23 : vector<8x128xf32>
    %26 = arith.divf %24, %25 : vector<8x128xf32>
    %27 = vector.extract_strided_slice %17 {offsets = [0, 128], sizes = [8, 128], strides = [1, 1]} : vector<8x384xf32> to vector<8x128xf32>
    %28 = vector.extract_strided_slice %18 {offsets = [0, 128], sizes = [8, 128], strides = [1, 1]} : vector<8x384xf32> to vector<8x128xf32>
    %29 = arith.addf %27, %28 : vector<8x128xf32>
    %30 = arith.negf %29 : vector<8x128xf32>
    %31 = math.exp %30 : vector<8x128xf32>
    %cst_21 = arith.constant 1.000000e+00 : f32
    %32 = vector.broadcast %cst_21 : f32 to vector<8x128xf32>
    %33 = arith.addf %32, %31 : vector<8x128xf32>
    %34 = arith.divf %32, %33 : vector<8x128xf32>
    %35 = vector.extract_strided_slice %17 {offsets = [0, 256], sizes = [8, 128], strides = [1, 1]} : vector<8x384xf32> to vector<8x128xf32>
    %36 = vector.extract_strided_slice %18 {offsets = [0, 256], sizes = [8, 128], strides = [1, 1]} : vector<8x384xf32> to vector<8x128xf32>
    %37 = vector.broadcast %13 : vector<1x128xf32> to vector<8x128xf32>
    %38 = arith.addf %36, %37 : vector<8x128xf32>
    %39 = arith.mulf %26, %38 : vector<8x128xf32>
    %40 = arith.addf %35, %39 : vector<8x128xf32>
    %41 = math.tanh %40 : vector<8x128xf32>
    %cst_22 = arith.constant 1.000000e+00 : f32
    %42 = vector.broadcast %cst_22 : f32 to vector<8x128xf32>
    %43 = arith.subf %42, %34 : vector<8x128xf32>
    %44 = arith.mulf %43, %41 : vector<8x128xf32>
    %45 = arith.mulf %34, %14 : vector<8x128xf32>
    %46 = arith.addf %44, %45 : vector<8x128xf32>
    %47 = arith.index_cast %c0_i32_16 : i32 to index
    %c0_23 = arith.constant 0 : index
    %c0_24 = arith.constant 0 : index
    %48 = vector.load %arg11[%47, %c0_23, %c0_24] : memref<8x8x128xf32, #tpu.memory_space<vmem>>, vector<1x8x128xf32>
    %49 = vector.shape_cast %48 : vector<1x8x128xf32> to vector<8x128xf32>
    %50 = vector.shape_cast %46 : vector<8x128xf32> to vector<1x8x128xf32>
    tpu.vector_store %arg11[%47, %c0_23, %c0_24], %50 {strides = array<i32>} : memref<8x8x128xf32, #tpu.memory_space<vmem>>, vector<1x8x128xf32>,
    %c1_i32 = arith.constant 1 : i32
    %51 = arith.index_cast %c1_i32 : i32 to index
    %c0_25 = arith.constant 0 : index
    %c0_26 = arith.constant 0 : index
    %52 = vector.load %arg10[%51, %c0_25, %c0_26] : memref<8x8x384xf32, #tpu.memory_space<vmem>>, vector<1x8x384xf32>
    %53 = vector.shape_cast %52 : vector<1x8x384xf32> to vector<8x384xf32>
    %cst_27 = arith.constant dense<0.000000e+00> : vector<8x384xf32>
    %54 = tpu.matmul %46, %12, %cst_27 {dimension_numbers = #tpu.dot_dimension_numbers<[1], [0], [0], [1], [0, 0, 1, 1], [], []>} : vector<8x128xf32>, vector<128x384xf32>, vector<8x384xf32> -> vector<8x384xf32>
    %55 = vector.extract_strided_slice %53 {offsets = [0, 0], sizes = [8, 128], strides = [1, 1]} : vector<8x384xf32> to vector<8x128xf32>
    %56 = vector.extract_strided_slice %54 {offsets = [0, 0], sizes = [8, 128], strides = [1, 1]} : vector<8x384xf32> to vector<8x128xf32>
    %57 = arith.addf %55, %56 : vector<8x128xf32>
    %58 = arith.negf %57 : vector<8x128xf32>
    %59 = math.exp %58 : vector<8x128xf32>
    %cst_28 = arith.constant 1.000000e+00 : f32
    %60 = vector.broadcast %cst_28 : f32 to vector<8x128xf32>
    %61 = arith.addf %60, %59 : vector<8x128xf32>
    %62 = arith.divf %60, %61 : vector<8x128xf32>
    %63 = vector.extract_strided_slice %53 {offsets = [0, 128], sizes = [8, 128], strides = [1, 1]} : vector<8x384xf32> to vector<8x128xf32>
    %64 = vector.extract_strided_slice %54 {offsets = [0, 128], sizes = [8, 128], strides = [1, 1]} : vector<8x384xf32> to vector<8x128xf32>
    %65 = arith.addf %63, %64 : vector<8x128xf32>
    %66 = arith.negf %65 : vector<8x128xf32>
    %67 = math.exp %66 : vector<8x128xf32>
    %cst_29 = arith.constant 1.000000e+00 : f32
    %68 = vector.broadcast %cst_29 : f32 to vector<8x128xf32>
    %69 = arith.addf %68, %67 : vector<8x128xf32>
    %70 = arith.divf %68, %69 : vector<8x128xf32>
    %71 = vector.extract_strided_slice %53 {offsets = [0, 256], sizes = [8, 128], strides = [1, 1]} : vector<8x384xf32> to vector<8x128xf32>
    %72 = vector.extract_strided_slice %54 {offsets = [0, 256], sizes = [8, 128], strides = [1, 1]} : vector<8x384xf32> to vector<8x128xf32>
    %73 = vector.broadcast %13 : vector<1x128xf32> to vector<8x128xf32>
    %74 = arith.addf %72, %73 : vector<8x128xf32>
    %75 = arith.mulf %62, %74 : vector<8x128xf32>
    %76 = arith.addf %71, %75 : vector<8x128xf32>
    %77 = math.tanh %76 : vector<8x128xf32>
    %cst_30 = arith.constant 1.000000e+00 : f32
    %78 = vector.broadcast %cst_30 : f32 to vector<8x128xf32>
    %79 = arith.subf %78, %70 : vector<8x128xf32>
    %80 = arith.mulf %79, %77 : vector<8x128xf32>
    %81 = arith.mulf %70, %46 : vector<8x128xf32>
    %82 = arith.addf %80, %81 : vector<8x128xf32>
    %83 = arith.index_cast %c1_i32 : i32 to index
    %c0_31 = arith.constant 0 : index
    %c0_32 = arith.constant 0 : index
    %84 = vector.load %arg11[%83, %c0_31, %c0_32] : memref<8x8x128xf32, #tpu.memory_space<vmem>>, vector<1x8x128xf32>
    %85 = vector.shape_cast %84 : vector<1x8x128xf32> to vector<8x128xf32>
    %86 = vector.shape_cast %82 : vector<8x128xf32> to vector<1x8x128xf32>
    tpu.vector_store %arg11[%83, %c0_31, %c0_32], %86 {strides = array<i32>} : memref<8x8x128xf32, #tpu.memory_space<vmem>>, vector<1x8x128xf32>,
    %c2_i32 = arith.constant 2 : i32
    %87 = arith.index_cast %c2_i32 : i32 to index
    %c0_33 = arith.constant 0 : index
    %c0_34 = arith.constant 0 : index
    %88 = vector.load %arg10[%87, %c0_33, %c0_34] : memref<8x8x384xf32, #tpu.memory_space<vmem>>, vector<1x8x384xf32>
    %89 = vector.shape_cast %88 : vector<1x8x384xf32> to vector<8x384xf32>
    %cst_35 = arith.constant dense<0.000000e+00> : vector<8x384xf32>
    %90 = tpu.matmul %82, %12, %cst_35 {dimension_numbers = #tpu.dot_dimension_numbers<[1], [0], [0], [1], [0, 0, 1, 1], [], []>} : vector<8x128xf32>, vector<128x384xf32>, vector<8x384xf32> -> vector<8x384xf32>
    %91 = vector.extract_strided_slice %89 {offsets = [0, 0], sizes = [8, 128], strides = [1, 1]} : vector<8x384xf32> to vector<8x128xf32>
    %92 = vector.extract_strided_slice %90 {offsets = [0, 0], sizes = [8, 128], strides = [1, 1]} : vector<8x384xf32> to vector<8x128xf32>
    %93 = arith.addf %91, %92 : vector<8x128xf32>
    %94 = arith.negf %93 : vector<8x128xf32>
    %95 = math.exp %94 : vector<8x128xf32>
    %cst_36 = arith.constant 1.000000e+00 : f32
    %96 = vector.broadcast %cst_36 : f32 to vector<8x128xf32>
    %97 = arith.addf %96, %95 : vector<8x128xf32>
    %98 = arith.divf %96, %97 : vector<8x128xf32>
    %99 = vector.extract_strided_slice %89 {offsets = [0, 128], sizes = [8, 128], strides = [1, 1]} : vector<8x384xf32> to vector<8x128xf32>
    %100 = vector.extract_strided_slice %90 {offsets = [0, 128], sizes = [8, 128], strides = [1, 1]} : vector<8x384xf32> to vector<8x128xf32>
    %101 = arith.addf %99, %100 : vector<8x128xf32>
    %102 = arith.negf %101 : vector<8x128xf32>
    %103 = math.exp %102 : vector<8x128xf32>
    %cst_37 = arith.constant 1.000000e+00 : f32
    %104 = vector.broadcast %cst_37 : f32 to vector<8x128xf32>
    %105 = arith.addf %104, %103 : vector<8x128xf32>
    %106 = arith.divf %104, %105 : vector<8x128xf32>
    %107 = vector.extract_strided_slice %89 {offsets = [0, 256], sizes = [8, 128], strides = [1, 1]} : vector<8x384xf32> to vector<8x128xf32>
    %108 = vector.extract_strided_slice %90 {offsets = [0, 256], sizes = [8, 128], strides = [1, 1]} : vector<8x384xf32> to vector<8x128xf32>
    %109 = vector.broadcast %13 : vector<1x128xf32> to vector<8x128xf32>
    %110 = arith.addf %108, %109 : vector<8x128xf32>
    %111 = arith.mulf %98, %110 : vector<8x128xf32>
    %112 = arith.addf %107, %111 : vector<8x128xf32>
    %113 = math.tanh %112 : vector<8x128xf32>
    %cst_38 = arith.constant 1.000000e+00 : f32
    %114 = vector.broadcast %cst_38 : f32 to vector<8x128xf32>
    %115 = arith.subf %114, %106 : vector<8x128xf32>
    %116 = arith.mulf %115, %113 : vector<8x128xf32>
    %117 = arith.mulf %106, %82 : vector<8x128xf32>
    %118 = arith.addf %116, %117 : vector<8x128xf32>
    %119 = arith.index_cast %c2_i32 : i32 to index
    %c0_39 = arith.constant 0 : index
    %c0_40 = arith.constant 0 : index
    %120 = vector.load %arg11[%119, %c0_39, %c0_40] : memref<8x8x128xf32, #tpu.memory_space<vmem>>, vector<1x8x128xf32>
    %121 = vector.shape_cast %120 : vector<1x8x128xf32> to vector<8x128xf32>
    %122 = vector.shape_cast %118 : vector<8x128xf32> to vector<1x8x128xf32>
    tpu.vector_store %arg11[%119, %c0_39, %c0_40], %122 {strides = array<i32>} : memref<8x8x128xf32, #tpu.memory_space<vmem>>, vector<1x8x128xf32>,
    %c3_i32 = arith.constant 3 : i32
    %123 = arith.index_cast %c3_i32 : i32 to index
    %c0_41 = arith.constant 0 : index
    %c0_42 = arith.constant 0 : index
    %124 = vector.load %arg10[%123, %c0_41, %c0_42] : memref<8x8x384xf32, #tpu.memory_space<vmem>>, vector<1x8x384xf32>
    %125 = vector.shape_cast %124 : vector<1x8x384xf32> to vector<8x384xf32>
    %cst_43 = arith.constant dense<0.000000e+00> : vector<8x384xf32>
    %126 = tpu.matmul %118, %12, %cst_43 {dimension_numbers = #tpu.dot_dimension_numbers<[1], [0], [0], [1], [0, 0, 1, 1], [], []>} : vector<8x128xf32>, vector<128x384xf32>, vector<8x384xf32> -> vector<8x384xf32>
    %127 = vector.extract_strided_slice %125 {offsets = [0, 0], sizes = [8, 128], strides = [1, 1]} : vector<8x384xf32> to vector<8x128xf32>
    %128 = vector.extract_strided_slice %126 {offsets = [0, 0], sizes = [8, 128], strides = [1, 1]} : vector<8x384xf32> to vector<8x128xf32>
    %129 = arith.addf %127, %128 : vector<8x128xf32>
    %130 = arith.negf %129 : vector<8x128xf32>
    %131 = math.exp %130 : vector<8x128xf32>
    %cst_44 = arith.constant 1.000000e+00 : f32
    %132 = vector.broadcast %cst_44 : f32 to vector<8x128xf32>
    %133 = arith.addf %132, %131 : vector<8x128xf32>
    %134 = arith.divf %132, %133 : vector<8x128xf32>
    %135 = vector.extract_strided_slice %125 {offsets = [0, 128], sizes = [8, 128], strides = [1, 1]} : vector<8x384xf32> to vector<8x128xf32>
    %136 = vector.extract_strided_slice %126 {offsets = [0, 128], sizes = [8, 128], strides = [1, 1]} : vector<8x384xf32> to vector<8x128xf32>
    %137 = arith.addf %135, %136 : vector<8x128xf32>
    %138 = arith.negf %137 : vector<8x128xf32>
    %139 = math.exp %138 : vector<8x128xf32>
    %cst_45 = arith.constant 1.000000e+00 : f32
    %140 = vector.broadcast %cst_45 : f32 to vector<8x128xf32>
    %141 = arith.addf %140, %139 : vector<8x128xf32>
    %142 = arith.divf %140, %141 : vector<8x128xf32>
    %143 = vector.extract_strided_slice %125 {offsets = [0, 256], sizes = [8, 128], strides = [1, 1]} : vector<8x384xf32> to vector<8x128xf32>
    %144 = vector.extract_strided_slice %126 {offsets = [0, 256], sizes = [8, 128], strides = [1, 1]} : vector<8x384xf32> to vector<8x128xf32>
    %145 = vector.broadcast %13 : vector<1x128xf32> to vector<8x128xf32>
    %146 = arith.addf %144, %145 : vector<8x128xf32>
    %147 = arith.mulf %134, %146 : vector<8x128xf32>
    %148 = arith.addf %143, %147 : vector<8x128xf32>
    %149 = math.tanh %148 : vector<8x128xf32>
    %cst_46 = arith.constant 1.000000e+00 : f32
    %150 = vector.broadcast %cst_46 : f32 to vector<8x128xf32>
    %151 = arith.subf %150, %142 : vector<8x128xf32>
    %152 = arith.mulf %151, %149 : vector<8x128xf32>
    %153 = arith.mulf %142, %118 : vector<8x128xf32>
    %154 = arith.addf %152, %153 : vector<8x128xf32>
    %155 = arith.index_cast %c3_i32 : i32 to index
    %c0_47 = arith.constant 0 : index
    %c0_48 = arith.constant 0 : index
    %156 = vector.load %arg11[%155, %c0_47, %c0_48] : memref<8x8x128xf32, #tpu.memory_space<vmem>>, vector<1x8x128xf32>
    %157 = vector.shape_cast %156 : vector<1x8x128xf32> to vector<8x128xf32>
    %158 = vector.shape_cast %154 : vector<8x128xf32> to vector<1x8x128xf32>
    tpu.vector_store %arg11[%155, %c0_47, %c0_48], %158 {strides = array<i32>} : memref<8x8x128xf32, #tpu.memory_space<vmem>>, vector<1x8x128xf32>,
    %c4_i32 = arith.constant 4 : i32
    %159 = arith.index_cast %c4_i32 : i32 to index
    %c0_49 = arith.constant 0 : index
    %c0_50 = arith.constant 0 : index
    %160 = vector.load %arg10[%159, %c0_49, %c0_50] : memref<8x8x384xf32, #tpu.memory_space<vmem>>, vector<1x8x384xf32>
    %161 = vector.shape_cast %160 : vector<1x8x384xf32> to vector<8x384xf32>
    %cst_51 = arith.constant dense<0.000000e+00> : vector<8x384xf32>
    %162 = tpu.matmul %154, %12, %cst_51 {dimension_numbers = #tpu.dot_dimension_numbers<[1], [0], [0], [1], [0, 0, 1, 1], [], []>} : vector<8x128xf32>, vector<128x384xf32>, vector<8x384xf32> -> vector<8x384xf32>
    %163 = vector.extract_strided_slice %161 {offsets = [0, 0], sizes = [8, 128], strides = [1, 1]} : vector<8x384xf32> to vector<8x128xf32>
    %164 = vector.extract_strided_slice %162 {offsets = [0, 0], sizes = [8, 128], strides = [1, 1]} : vector<8x384xf32> to vector<8x128xf32>
    %165 = arith.addf %163, %164 : vector<8x128xf32>
    %166 = arith.negf %165 : vector<8x128xf32>
    %167 = math.exp %166 : vector<8x128xf32>
    %cst_52 = arith.constant 1.000000e+00 : f32
    %168 = vector.broadcast %cst_52 : f32 to vector<8x128xf32>
    %169 = arith.addf %168, %167 : vector<8x128xf32>
    %170 = arith.divf %168, %169 : vector<8x128xf32>
    %171 = vector.extract_strided_slice %161 {offsets = [0, 128], sizes = [8, 128], strides = [1, 1]} : vector<8x384xf32> to vector<8x128xf32>
    %172 = vector.extract_strided_slice %162 {offsets = [0, 128], sizes = [8, 128], strides = [1, 1]} : vector<8x384xf32> to vector<8x128xf32>
    %173 = arith.addf %171, %172 : vector<8x128xf32>
    %174 = arith.negf %173 : vector<8x128xf32>
    %175 = math.exp %174 : vector<8x128xf32>
    %cst_53 = arith.constant 1.000000e+00 : f32
    %176 = vector.broadcast %cst_53 : f32 to vector<8x128xf32>
    %177 = arith.addf %176, %175 : vector<8x128xf32>
    %178 = arith.divf %176, %177 : vector<8x128xf32>
    %179 = vector.extract_strided_slice %161 {offsets = [0, 256], sizes = [8, 128], strides = [1, 1]} : vector<8x384xf32> to vector<8x128xf32>
    %180 = vector.extract_strided_slice %162 {offsets = [0, 256], sizes = [8, 128], strides = [1, 1]} : vector<8x384xf32> to vector<8x128xf32>
    %181 = vector.broadcast %13 : vector<1x128xf32> to vector<8x128xf32>
    %182 = arith.addf %180, %181 : vector<8x128xf32>
    %183 = arith.mulf %170, %182 : vector<8x128xf32>
    %184 = arith.addf %179, %183 : vector<8x128xf32>
    %185 = math.tanh %184 : vector<8x128xf32>
    %cst_54 = arith.constant 1.000000e+00 : f32
    %186 = vector.broadcast %cst_54 : f32 to vector<8x128xf32>
    %187 = arith.subf %186, %178 : vector<8x128xf32>
    %188 = arith.mulf %187, %185 : vector<8x128xf32>
    %189 = arith.mulf %178, %154 : vector<8x128xf32>
    %190 = arith.addf %188, %189 : vector<8x128xf32>
    %191 = arith.index_cast %c4_i32 : i32 to index
    %c0_55 = arith.constant 0 : index
    %c0_56 = arith.constant 0 : index
    %192 = vector.load %arg11[%191, %c0_55, %c0_56] : memref<8x8x128xf32, #tpu.memory_space<vmem>>, vector<1x8x128xf32>
    %193 = vector.shape_cast %192 : vector<1x8x128xf32> to vector<8x128xf32>
    %194 = vector.shape_cast %190 : vector<8x128xf32> to vector<1x8x128xf32>
    tpu.vector_store %arg11[%191, %c0_55, %c0_56], %194 {strides = array<i32>} : memref<8x8x128xf32, #tpu.memory_space<vmem>>, vector<1x8x128xf32>,
    %c5_i32 = arith.constant 5 : i32
    %195 = arith.index_cast %c5_i32 : i32 to index
    %c0_57 = arith.constant 0 : index
    %c0_58 = arith.constant 0 : index
    %196 = vector.load %arg10[%195, %c0_57, %c0_58] : memref<8x8x384xf32, #tpu.memory_space<vmem>>, vector<1x8x384xf32>
    %197 = vector.shape_cast %196 : vector<1x8x384xf32> to vector<8x384xf32>
    %cst_59 = arith.constant dense<0.000000e+00> : vector<8x384xf32>
    %198 = tpu.matmul %190, %12, %cst_59 {dimension_numbers = #tpu.dot_dimension_numbers<[1], [0], [0], [1], [0, 0, 1, 1], [], []>} : vector<8x128xf32>, vector<128x384xf32>, vector<8x384xf32> -> vector<8x384xf32>
    %199 = vector.extract_strided_slice %197 {offsets = [0, 0], sizes = [8, 128], strides = [1, 1]} : vector<8x384xf32> to vector<8x128xf32>
    %200 = vector.extract_strided_slice %198 {offsets = [0, 0], sizes = [8, 128], strides = [1, 1]} : vector<8x384xf32> to vector<8x128xf32>
    %201 = arith.addf %199, %200 : vector<8x128xf32>
    %202 = arith.negf %201 : vector<8x128xf32>
    %203 = math.exp %202 : vector<8x128xf32>
    %cst_60 = arith.constant 1.000000e+00 : f32
    %204 = vector.broadcast %cst_60 : f32 to vector<8x128xf32>
    %205 = arith.addf %204, %203 : vector<8x128xf32>
    %206 = arith.divf %204, %205 : vector<8x128xf32>
    %207 = vector.extract_strided_slice %197 {offsets = [0, 128], sizes = [8, 128], strides = [1, 1]} : vector<8x384xf32> to vector<8x128xf32>
    %208 = vector.extract_strided_slice %198 {offsets = [0, 128], sizes = [8, 128], strides = [1, 1]} : vector<8x384xf32> to vector<8x128xf32>
    %209 = arith.addf %207, %208 : vector<8x128xf32>
    %210 = arith.negf %209 : vector<8x128xf32>
    %211 = math.exp %210 : vector<8x128xf32>
    %cst_61 = arith.constant 1.000000e+00 : f32
    %212 = vector.broadcast %cst_61 : f32 to vector<8x128xf32>
    %213 = arith.addf %212, %211 : vector<8x128xf32>
    %214 = arith.divf %212, %213 : vector<8x128xf32>
    %215 = vector.extract_strided_slice %197 {offsets = [0, 256], sizes = [8, 128], strides = [1, 1]} : vector<8x384xf32> to vector<8x128xf32>
    %216 = vector.extract_strided_slice %198 {offsets = [0, 256], sizes = [8, 128], strides = [1, 1]} : vector<8x384xf32> to vector<8x128xf32>
    %217 = vector.broadcast %13 : vector<1x128xf32> to vector<8x128xf32>
    %218 = arith.addf %216, %217 : vector<8x128xf32>
    %219 = arith.mulf %206, %218 : vector<8x128xf32>
    %220 = arith.addf %215, %219 : vector<8x128xf32>
    %221 = math.tanh %220 : vector<8x128xf32>
    %cst_62 = arith.constant 1.000000e+00 : f32
    %222 = vector.broadcast %cst_62 : f32 to vector<8x128xf32>
    %223 = arith.subf %222, %214 : vector<8x128xf32>
    %224 = arith.mulf %223, %221 : vector<8x128xf32>
    %225 = arith.mulf %214, %190 : vector<8x128xf32>
    %226 = arith.addf %224, %225 : vector<8x128xf32>
    %227 = arith.index_cast %c5_i32 : i32 to index
    %c0_63 = arith.constant 0 : index
    %c0_64 = arith.constant 0 : index
    %228 = vector.load %arg11[%227, %c0_63, %c0_64] : memref<8x8x128xf32, #tpu.memory_space<vmem>>, vector<1x8x128xf32>
    %229 = vector.shape_cast %228 : vector<1x8x128xf32> to vector<8x128xf32>
    %230 = vector.shape_cast %226 : vector<8x128xf32> to vector<1x8x128xf32>
    tpu.vector_store %arg11[%227, %c0_63, %c0_64], %230 {strides = array<i32>} : memref<8x8x128xf32, #tpu.memory_space<vmem>>, vector<1x8x128xf32>,
    %c6_i32 = arith.constant 6 : i32
    %231 = arith.index_cast %c6_i32 : i32 to index
    %c0_65 = arith.constant 0 : index
    %c0_66 = arith.constant 0 : index
    %232 = vector.load %arg10[%231, %c0_65, %c0_66] : memref<8x8x384xf32, #tpu.memory_space<vmem>>, vector<1x8x384xf32>
    %233 = vector.shape_cast %232 : vector<1x8x384xf32> to vector<8x384xf32>
    %cst_67 = arith.constant dense<0.000000e+00> : vector<8x384xf32>
    %234 = tpu.matmul %226, %12, %cst_67 {dimension_numbers = #tpu.dot_dimension_numbers<[1], [0], [0], [1], [0, 0, 1, 1], [], []>} : vector<8x128xf32>, vector<128x384xf32>, vector<8x384xf32> -> vector<8x384xf32>
    %235 = vector.extract_strided_slice %233 {offsets = [0, 0], sizes = [8, 128], strides = [1, 1]} : vector<8x384xf32> to vector<8x128xf32>
    %236 = vector.extract_strided_slice %234 {offsets = [0, 0], sizes = [8, 128], strides = [1, 1]} : vector<8x384xf32> to vector<8x128xf32>
    %237 = arith.addf %235, %236 : vector<8x128xf32>
    %238 = arith.negf %237 : vector<8x128xf32>
    %239 = math.exp %238 : vector<8x128xf32>
    %cst_68 = arith.constant 1.000000e+00 : f32
    %240 = vector.broadcast %cst_68 : f32 to vector<8x128xf32>
    %241 = arith.addf %240, %239 : vector<8x128xf32>
    %242 = arith.divf %240, %241 : vector<8x128xf32>
    %243 = vector.extract_strided_slice %233 {offsets = [0, 128], sizes = [8, 128], strides = [1, 1]} : vector<8x384xf32> to vector<8x128xf32>
    %244 = vector.extract_strided_slice %234 {offsets = [0, 128], sizes = [8, 128], strides = [1, 1]} : vector<8x384xf32> to vector<8x128xf32>
    %245 = arith.addf %243, %244 : vector<8x128xf32>
    %246 = arith.negf %245 : vector<8x128xf32>
    %247 = math.exp %246 : vector<8x128xf32>
    %cst_69 = arith.constant 1.000000e+00 : f32
    %248 = vector.broadcast %cst_69 : f32 to vector<8x128xf32>
    %249 = arith.addf %248, %247 : vector<8x128xf32>
    %250 = arith.divf %248, %249 : vector<8x128xf32>
    %251 = vector.extract_strided_slice %233 {offsets = [0, 256], sizes = [8, 128], strides = [1, 1]} : vector<8x384xf32> to vector<8x128xf32>
    %252 = vector.extract_strided_slice %234 {offsets = [0, 256], sizes = [8, 128], strides = [1, 1]} : vector<8x384xf32> to vector<8x128xf32>
    %253 = vector.broadcast %13 : vector<1x128xf32> to vector<8x128xf32>
    %254 = arith.addf %252, %253 : vector<8x128xf32>
    %255 = arith.mulf %242, %254 : vector<8x128xf32>
    %256 = arith.addf %251, %255 : vector<8x128xf32>
    %257 = math.tanh %256 : vector<8x128xf32>
    %cst_70 = arith.constant 1.000000e+00 : f32
    %258 = vector.broadcast %cst_70 : f32 to vector<8x128xf32>
    %259 = arith.subf %258, %250 : vector<8x128xf32>
    %260 = arith.mulf %259, %257 : vector<8x128xf32>
    %261 = arith.mulf %250, %226 : vector<8x128xf32>
    %262 = arith.addf %260, %261 : vector<8x128xf32>
    %263 = arith.index_cast %c6_i32 : i32 to index
    %c0_71 = arith.constant 0 : index
    %c0_72 = arith.constant 0 : index
    %264 = vector.load %arg11[%263, %c0_71, %c0_72] : memref<8x8x128xf32, #tpu.memory_space<vmem>>, vector<1x8x128xf32>
    %265 = vector.shape_cast %264 : vector<1x8x128xf32> to vector<8x128xf32>
    %266 = vector.shape_cast %262 : vector<8x128xf32> to vector<1x8x128xf32>
    tpu.vector_store %arg11[%263, %c0_71, %c0_72], %266 {strides = array<i32>} : memref<8x8x128xf32, #tpu.memory_space<vmem>>, vector<1x8x128xf32>,
    %c7_i32 = arith.constant 7 : i32
    %267 = arith.index_cast %c7_i32 : i32 to index
    %c0_73 = arith.constant 0 : index
    %c0_74 = arith.constant 0 : index
    %268 = vector.load %arg10[%267, %c0_73, %c0_74] : memref<8x8x384xf32, #tpu.memory_space<vmem>>, vector<1x8x384xf32>
    %269 = vector.shape_cast %268 : vector<1x8x384xf32> to vector<8x384xf32>
    %cst_75 = arith.constant dense<0.000000e+00> : vector<8x384xf32>
    %270 = tpu.matmul %262, %12, %cst_75 {dimension_numbers = #tpu.dot_dimension_numbers<[1], [0], [0], [1], [0, 0, 1, 1], [], []>} : vector<8x128xf32>, vector<128x384xf32>, vector<8x384xf32> -> vector<8x384xf32>
    %271 = vector.extract_strided_slice %269 {offsets = [0, 0], sizes = [8, 128], strides = [1, 1]} : vector<8x384xf32> to vector<8x128xf32>
    %272 = vector.extract_strided_slice %270 {offsets = [0, 0], sizes = [8, 128], strides = [1, 1]} : vector<8x384xf32> to vector<8x128xf32>
    %273 = arith.addf %271, %272 : vector<8x128xf32>
    %274 = arith.negf %273 : vector<8x128xf32>
    %275 = math.exp %274 : vector<8x128xf32>
    %cst_76 = arith.constant 1.000000e+00 : f32
    %276 = vector.broadcast %cst_76 : f32 to vector<8x128xf32>
    %277 = arith.addf %276, %275 : vector<8x128xf32>
    %278 = arith.divf %276, %277 : vector<8x128xf32>
    %279 = vector.extract_strided_slice %269 {offsets = [0, 128], sizes = [8, 128], strides = [1, 1]} : vector<8x384xf32> to vector<8x128xf32>
    %280 = vector.extract_strided_slice %270 {offsets = [0, 128], sizes = [8, 128], strides = [1, 1]} : vector<8x384xf32> to vector<8x128xf32>
    %281 = arith.addf %279, %280 : vector<8x128xf32>
    %282 = arith.negf %281 : vector<8x128xf32>
    %283 = math.exp %282 : vector<8x128xf32>
    %cst_77 = arith.constant 1.000000e+00 : f32
    %284 = vector.broadcast %cst_77 : f32 to vector<8x128xf32>
    %285 = arith.addf %284, %283 : vector<8x128xf32>
    %286 = arith.divf %284, %285 : vector<8x128xf32>
    %287 = vector.extract_strided_slice %269 {offsets = [0, 256], sizes = [8, 128], strides = [1, 1]} : vector<8x384xf32> to vector<8x128xf32>
    %288 = vector.extract_strided_slice %270 {offsets = [0, 256], sizes = [8, 128], strides = [1, 1]} : vector<8x384xf32> to vector<8x128xf32>
    %289 = vector.broadcast %13 : vector<1x128xf32> to vector<8x128xf32>
    %290 = arith.addf %288, %289 : vector<8x128xf32>
    %291 = arith.mulf %278, %290 : vector<8x128xf32>
    %292 = arith.addf %287, %291 : vector<8x128xf32>
    %293 = math.tanh %292 : vector<8x128xf32>
    %cst_78 = arith.constant 1.000000e+00 : f32
    %294 = vector.broadcast %cst_78 : f32 to vector<8x128xf32>
    %295 = arith.subf %294, %286 : vector<8x128xf32>
    %296 = arith.mulf %295, %293 : vector<8x128xf32>
    %297 = arith.mulf %286, %262 : vector<8x128xf32>
    %298 = arith.addf %296, %297 : vector<8x128xf32>
    %299 = arith.index_cast %c7_i32 : i32 to index
    %c0_79 = arith.constant 0 : index
    %c0_80 = arith.constant 0 : index
    %300 = vector.load %arg11[%299, %c0_79, %c0_80] : memref<8x8x128xf32, #tpu.memory_space<vmem>>, vector<1x8x128xf32>
    %301 = vector.shape_cast %300 : vector<1x8x128xf32> to vector<8x128xf32>
    %302 = vector.shape_cast %298 : vector<8x128xf32> to vector<1x8x128xf32>
    tpu.vector_store %arg11[%299, %c0_79, %c0_80], %302 {strides = array<i32>} : memref<8x8x128xf32, #tpu.memory_space<vmem>>, vector<1x8x128xf32>,
    %c8_i32 = arith.constant 8 : i32
    %c0_81 = arith.constant 0 : index
    %c0_82 = arith.constant 0 : index
    %303 = vector.load %arg12[%c0_81, %c0_82] : memref<8x128xf32, #tpu.memory_space<vmem>>, vector<8x128xf32>
    tpu.vector_store %arg12[%c0_81, %c0_82], %298 {strides = array<i32>} : memref<8x128xf32, #tpu.memory_space<vmem>>, vector<8x128xf32>,
    %c0_83 = arith.constant 0 : index
    %c0_84 = arith.constant 0 : index
    %c0_85 = arith.constant 0 : index
    %304 = vector.load %arg11[%c0_83, %c0_84, %c0_85] : memref<8x8x128xf32, #tpu.memory_space<vmem>>, vector<8x8x128xf32>
    %305 = vector.shape_cast %304 : vector<8x8x128xf32> to vector<64x128xf32>
    %c0_86 = arith.constant 0 : index
    %c0_87 = arith.constant 0 : index
    %306 = vector.load %arg7[%c0_86, %c0_87] : memref<128x128xf32, #tpu.memory_space<vmem>>, vector<128x128xf32>
    %cst_88 = arith.constant dense<0.000000e+00> : vector<64x128xf32>
    %307 = tpu.matmul %305, %306, %cst_88 {dimension_numbers = #tpu.dot_dimension_numbers<[1], [0], [0], [1], [0, 0, 1, 1], [], []>} : vector<64x128xf32>, vector<128x128xf32>, vector<64x128xf32> -> vector<64x128xf32>
    %c0_89 = arith.constant 0 : index
    %c0_90 = arith.constant 0 : index
    %308 = vector.load %arg8[%c0_89, %c0_90] : memref<1x128xf32, #tpu.memory_space<vmem>>, vector<1x128xf32>
    %309 = vector.broadcast %308 : vector<1x128xf32> to vector<64x128xf32>
    %310 = arith.addf %307, %309 : vector<64x128xf32>
    %311 = vector.shape_cast %310 : vector<64x128xf32> to vector<8x8x128xf32>
    %c0_91 = arith.constant 0 : index
    %c0_92 = arith.constant 0 : index
    %c0_93 = arith.constant 0 : index
    %312 = vector.load %arg9[%c0_91, %c0_92, %c0_93] : memref<8x8x128xf32, #tpu.memory_space<vmem>>, vector<8x8x128xf32>
    tpu.vector_store %arg9[%c0_91, %c0_92, %c0_93], %311 {strides = array<i32>} : memref<8x8x128xf32, #tpu.memory_space<vmem>>, vector<8x8x128xf32>,
    return
  }
  func.func @transform_0(%arg0: i32, %arg1: i32) -> (i32, i32, i32) {
    %c0_i32 = arith.constant 0 : i32
    %c0_i32_0 = arith.constant 0 : i32
    return %arg1, %arg0, %c0_i32 : i32, i32, i32
  }
  func.func @transform_1(%arg0: i32, %arg1: i32) -> (i32, i32) {
    %c0_i32 = arith.constant 0 : i32
    %c0_i32_0 = arith.constant 0 : i32
    %c0_i32_1 = arith.constant 0 : i32
    return %c0_i32, %c0_i32_0 : i32, i32
  }
  func.func @transform_2(%arg0: i32, %arg1: i32) -> (i32, i32) {
    %c0_i32 = arith.constant 0 : i32
    %c0_i32_0 = arith.constant 0 : i32
    %c0_i32_1 = arith.constant 0 : i32
    return %c0_i32, %c0_i32_0 : i32, i32
  }
  func.func @transform_3(%arg0: i32, %arg1: i32) -> (i32, i32) {
    %c0_i32 = arith.constant 0 : i32
    %c0_i32_0 = arith.constant 0 : i32
    %c0_i32_1 = arith.constant 0 : i32
    return %c0_i32, %c0_i32_0 : i32, i32
  }
  func.func @transform_4(%arg0: i32, %arg1: i32) -> (i32, i32) {
    %c0_i32 = arith.constant 0 : i32
    %c0_i32_0 = arith.constant 0 : i32
    %c0_i32_1 = arith.constant 0 : i32
    return %c0_i32, %c0_i32_0 : i32, i32
  }
  func.func @transform_5(%arg0: i32, %arg1: i32) -> (i32, i32) {
    %c0_i32 = arith.constant 0 : i32
    %c0_i32_0 = arith.constant 0 : i32
    %c0_i32_1 = arith.constant 0 : i32
    return %c0_i32, %c0_i32_0 : i32, i32
  }
  func.func @transform_6(%arg0: i32, %arg1: i32) -> (i32, i32) {
    %c0_i32 = arith.constant 0 : i32
    %c0_i32_0 = arith.constant 0 : i32
    %c0_i32_1 = arith.constant 0 : i32
    return %c0_i32, %c0_i32_0 : i32, i32
  }
  func.func @transform_7(%arg0: i32, %arg1: i32) -> (i32, i32, i32) {
    %c0_i32 = arith.constant 0 : i32
    %c0_i32_0 = arith.constant 0 : i32
    return %arg1, %arg0, %c0_i32 : i32, i32, i32
  }
}

module attributes {stable_mosaic.version = 11 : i64} {
  func.func @gru_linear_kernel(%arg0: i32, %arg1: i32, %arg2: memref<8x8x128xf32, #tpu.memory_space<vmem>>, %arg3: memref<128x384xf32, #tpu.memory_space<vmem>>, %arg4: memref<128x384xf32, #tpu.memory_space<vmem>>, %arg5: memref<1x384xf32, #tpu.memory_space<vmem>>, %arg6: memref<1x128xf32, #tpu.memory_space<vmem>>, %arg7: memref<128x128xf32, #tpu.memory_space<vmem>>, %arg8: memref<1x128xf32, #tpu.memory_space<vmem>>, %arg9: memref<8x8x128xf32, #tpu.memory_space<vmem>>, %arg10: memref<8x8x384xf32, #tpu.memory_space<vmem>>, %arg11: memref<8x8x128xf32, #tpu.memory_space<vmem>>, %arg12: memref<8x128xf32, #tpu.memory_space<vmem>>) attributes {dimension_semantics = [#tpu.dimension_semantics<parallel>, #tpu.dimension_semantics<arbitrary>], iteration_bounds = array<i64: 1, 1>, scalar_prefetch = 0 : i64, scratch_operands = 3 : i64, tpu.core_type = #tpu.core_type<tc>, window_params = [{transform_indices = @transform_0, window_bounds = array<i64: 8, 8, 128>}, {pipeline_mode = #tpu.pipeline_mode<synchronous>, transform_indices = @transform_1, window_bounds = array<i64: 128, 384>}, {pipeline_mode = #tpu.pipeline_mode<synchronous>, transform_indices = @transform_2, window_bounds = array<i64: 128, 384>}, {pipeline_mode = #tpu.pipeline_mode<synchronous>, transform_indices = @transform_3, window_bounds = array<i64: 1, 384>}, {pipeline_mode = #tpu.pipeline_mode<synchronous>, transform_indices = @transform_4, window_bounds = array<i64: 1, 128>}, {pipeline_mode = #tpu.pipeline_mode<synchronous>, transform_indices = @transform_5, window_bounds = array<i64: 128, 128>}, {pipeline_mode = #tpu.pipeline_mode<synchronous>, transform_indices = @transform_6, window_bounds = array<i64: 1, 128>}, {transform_indices = @transform_7, window_bounds = array<i64: 8, 8, 128>}]} {
    %c0_i32 = arith.constant 0 : i32
    %0 = arith.cmpi eq, %arg1, %c0_i32 : i32
    %1 = arith.extui %0 : i1 to i32
    %c0_i32_0 = arith.constant 0 : i32
    %2 = arith.cmpi ne, %1, %c0_i32_0 : i32
    scf.if %2 {
      %cst_94 = arith.constant 0.000000e+00 : f32
      %313 = vector.broadcast %cst_94 : f32 to vector<8x128xf32>
      %c0_95 = arith.constant 0 : index
      %c0_96 = arith.constant 0 : index
      %314 = vector.load %arg12[%c0_95, %c0_96] : memref<8x128xf32, #tpu.memory_space<vmem>>, vector<8x128xf32>
      tpu.vector_store %arg12[%c0_95, %c0_96], %313 {strides = array<i32>} : memref<8x128xf32, #tpu.memory_space<vmem>>, vector<8x128xf32>,
    } else {
    }
    %c0 = arith.constant 0 : index
    %c0_1 = arith.constant 0 : index
    %c0_2 = arith.constant 0 : index
    %3 = vector.load %arg2[%c0, %c0_1, %c0_2] : memref<8x8x128xf32, #tpu.memory_space<vmem>>, vector<8x8x128xf32>
    %4 = vector.shape_cast %3 : vector<8x8x128xf32> to vector<64x128xf32>
    %c0_3 = arith.constant 0 : index
    %c0_4 = arith.constant 0 : index
    %5 = vector.load %arg3[%c0_3, %c0_4] : memref<128x384xf32, #tpu.memory_space<vmem>>, vector<128x384xf32>
    %cst = arith.constant dense<0.000000e+00> : vector<64x384xf32>
    %6 = tpu.matmul %4, %5, %cst {dimension_numbers = #tpu.dot_dimension_numbers<[1], [0], [0], [1], [0, 0, 1, 1], [], []>} : vector<64x128xf32>, vector<128x384xf32>, vector<64x384xf32> -> vector<64x384xf32>
    %c0_5 = arith.constant 0 : index
    %c0_6 = arith.constant 0 : index
    %7 = vector.load %arg5[%c0_5, %c0_6] : memref<1x384xf32, #tpu.memory_space<vmem>>, vector<1x384xf32>
    %8 = vector.broadcast %7 : vector<1x384xf32> to vector<64x384xf32>
    %9 = arith.addf %6, %8 : vector<64x384xf32>
    %10 = vector.shape_cast %9 : vector<64x384xf32> to vector<8x8x384xf32>
    %c0_7 = arith.constant 0 : index
    %c0_8 = arith.constant 0 : index
    %c0_9 = arith.constant 0 : index
    %11 = vector.load %arg10[%c0_7, %c0_8, %c0_9] : memref<8x8x384xf32, #tpu.memory_space<vmem>>, vector<8x8x384xf32>
    tpu.vector_store %arg10[%c0_7, %c0_8, %c0_9], %10 {strides = array<i32>} : memref<8x8x384xf32, #tpu.memory_space<vmem>>, vector<8x8x384xf32>,
    %c0_10 = arith.constant 0 : index
    %c0_11 = arith.constant 0 : index
    %12 = vector.load %arg4[%c0_10, %c0_11] : memref<128x384xf32, #tpu.memory_space<vmem>>, vector<128x384xf32>
    %c0_12 = arith.constant 0 : index
    %c0_13 = arith.constant 0 : index
    %13 = vector.load %arg6[%c0_12, %c0_13] : memref<1x128xf32, #tpu.memory_space<vmem>>, vector<1x128xf32>
    %c0_14 = arith.constant 0 : index
    %c0_15 = arith.constant 0 : index
    %14 = vector.load %arg12[%c0_14, %c0_15] : memref<8x128xf32, #tpu.memory_space<vmem>>, vector<8x128xf32>
    %c0_i32_16 = arith.constant 0 : i32
    %15 = arith.index_cast %c0_i32_16 : i32 to index
    %c0_17 = arith.constant 0 : index
    %c0_18 = arith.constant 0 : index
    %16 = vector.load %arg10[%15, %c0_17, %c0_18] : memref<8x8x384xf32, #tpu.memory_space<vmem>>, vector<1x8x384xf32>
    %17 = vector.shape_cast %16 : vector<1x8x384xf32> to vector<8x384xf32>
    %cst_19 = arith.constant dense<0.000000e+00> : vector<8x384xf32>
    %18 = tpu.matmul %14, %12, %cst_19 {dimension_numbers = #tpu.dot_dimension_numbers<[1], [0], [0], [1], [0, 0, 1, 1], [], []>} : vector<8x128xf32>, vector<128x384xf32>, vector<8x384xf32> -> vector<8x384xf32>
    %19 = vector.extract_strided_slice %17 {offsets = [0, 0], sizes = [8, 128], strides = [1, 1]} : vector<8x384xf32> to vector<8x128xf32>
    %20 = vector.extract_strided_slice %18 {offsets = [0, 0], sizes = [8, 128], strides = [1, 1]} : vector<8x384xf32> to vector<8x128xf32>
    %21 = arith.addf %19, %20 : vector<8x128xf32>
    %22 = arith.negf %21 : vector<8x128xf32>
    %23 = math.exp %22 : vector<8x128xf32>
    %cst_20 = arith.constant 1.000000e+00 : f32
    %24 = vector.broadcast %cst_20 : f32 to vector<8x128xf32>
    %25 = arith.addf %24, %23 : vector<8x128xf32>
    %26 = arith.divf %24, %25 : vector<8x128xf32>
    %27 = vector.extract_strided_slice %17 {offsets = [0, 128], sizes = [8, 128], strides = [1, 1]} : vector<8x384xf32> to vector<8x128xf32>
    %28 = vector.extract_strided_slice %18 {offsets = [0, 128], sizes = [8, 128], strides = [1, 1]} : vector<8x384xf32> to vector<8x128xf32>
    %29 = arith.addf %27, %28 : vector<8x128xf32>
    %30 = arith.negf %29 : vector<8x128xf32>
    %31 = math.exp %30 : vector<8x128xf32>
    %cst_21 = arith.constant 1.000000e+00 : f32
    %32 = vector.broadcast %cst_21 : f32 to vector<8x128xf32>
    %33 = arith.addf %32, %31 : vector<8x128xf32>
    %34 = arith.divf %32, %33 : vector<8x128xf32>
    %35 = vector.extract_strided_slice %17 {offsets = [0, 256], sizes = [8, 128], strides = [1, 1]} : vector<8x384xf32> to vector<8x128xf32>
    %36 = vector.extract_strided_slice %18 {offsets = [0, 256], sizes = [8, 128], strides = [1, 1]} : vector<8x384xf32> to vector<8x128xf32>
    %37 = vector.broadcast %13 : vector<1x128xf32> to vector<8x128xf32>
    %38 = arith.addf %36, %37 : vector<8x128xf32>
    %39 = arith.mulf %26, %38 : vector<8x128xf32>
    %40 = arith.addf %35, %39 : vector<8x128xf32>
    %41 = math.tanh %40 : vector<8x128xf32>
    %cst_22 = arith.constant 1.000000e+00 : f32
    %42 = vector.broadcast %cst_22 : f32 to vector<8x128xf32>
    %43 = arith.subf %42, %34 : vector<8x128xf32>
    %44 = arith.mulf %43, %41 : vector<8x128xf32>
    %45 = arith.mulf %34, %14 : vector<8x128xf32>
    %46 = arith.addf %44, %45 : vector<8x128xf32>
    %47 = arith.index_cast %c0_i32_16 : i32 to index
    %c0_23 = arith.constant 0 : index
    %c0_24 = arith.constant 0 : index
    %48 = vector.load %arg11[%47, %c0_23, %c0_24] : memref<8x8x128xf32, #tpu.memory_space<vmem>>, vector<1x8x128xf32>
    %49 = vector.shape_cast %48 : vector<1x8x128xf32> to vector<8x128xf32>
    %50 = vector.shape_cast %46 : vector<8x128xf32> to vector<1x8x128xf32>
    tpu.vector_store %arg11[%47, %c0_23, %c0_24], %50 {strides = array<i32>} : memref<8x8x128xf32, #tpu.memory_space<vmem>>, vector<1x8x128xf32>,
    %c1_i32 = arith.constant 1 : i32
    %51 = arith.index_cast %c1_i32 : i32 to index
    %c0_25 = arith.constant 0 : index
    %c0_26 = arith.constant 0 : index
    %52 = vector.load %arg10[%51, %c0_25, %c0_26] : memref<8x8x384xf32, #tpu.memory_space<vmem>>, vector<1x8x384xf32>
    %53 = vector.shape_cast %52 : vector<1x8x384xf32> to vector<8x384xf32>
    %cst_27 = arith.constant dense<0.000000e+00> : vector<8x384xf32>
    %54 = tpu.matmul %46, %12, %cst_27 {dimension_numbers = #tpu.dot_dimension_numbers<[1], [0], [0], [1], [0, 0, 1, 1], [], []>} : vector<8x128xf32>, vector<128x384xf32>, vector<8x384xf32> -> vector<8x384xf32>
    %55 = vector.extract_strided_slice %53 {offsets = [0, 0], sizes = [8, 128], strides = [1, 1]} : vector<8x384xf32> to vector<8x128xf32>
    %56 = vector.extract_strided_slice %54 {offsets = [0, 0], sizes = [8, 128], strides = [1, 1]} : vector<8x384xf32> to vector<8x128xf32>
    %57 = arith.addf %55, %56 : vector<8x128xf32>
    %58 = arith.negf %57 : vector<8x128xf32>
    %59 = math.exp %58 : vector<8x128xf32>
    %cst_28 = arith.constant 1.000000e+00 : f32
    %60 = vector.broadcast %cst_28 : f32 to vector<8x128xf32>
    %61 = arith.addf %60, %59 : vector<8x128xf32>
    %62 = arith.divf %60, %61 : vector<8x128xf32>
    %63 = vector.extract_strided_slice %53 {offsets = [0, 128], sizes = [8, 128], strides = [1, 1]} : vector<8x384xf32> to vector<8x128xf32>
    %64 = vector.extract_strided_slice %54 {offsets = [0, 128], sizes = [8, 128], strides = [1, 1]} : vector<8x384xf32> to vector<8x128xf32>
    %65 = arith.addf %63, %64 : vector<8x128xf32>
    %66 = arith.negf %65 : vector<8x128xf32>
    %67 = math.exp %66 : vector<8x128xf32>
    %cst_29 = arith.constant 1.000000e+00 : f32
    %68 = vector.broadcast %cst_29 : f32 to vector<8x128xf32>
    %69 = arith.addf %68, %67 : vector<8x128xf32>
    %70 = arith.divf %68, %69 : vector<8x128xf32>
    %71 = vector.extract_strided_slice %53 {offsets = [0, 256], sizes = [8, 128], strides = [1, 1]} : vector<8x384xf32> to vector<8x128xf32>
    %72 = vector.extract_strided_slice %54 {offsets = [0, 256], sizes = [8, 128], strides = [1, 1]} : vector<8x384xf32> to vector<8x128xf32>
    %73 = vector.broadcast %13 : vector<1x128xf32> to vector<8x128xf32>
    %74 = arith.addf %72, %73 : vector<8x128xf32>
    %75 = arith.mulf %62, %74 : vector<8x128xf32>
    %76 = arith.addf %71, %75 : vector<8x128xf32>
    %77 = math.tanh %76 : vector<8x128xf32>
    %cst_30 = arith.constant 1.000000e+00 : f32
    %78 = vector.broadcast %cst_30 : f32 to vector<8x128xf32>
    %79 = arith.subf %78, %70 : vector<8x128xf32>
    %80 = arith.mulf %79, %77 : vector<8x128xf32>
    %81 = arith.mulf %70, %46 : vector<8x128xf32>
    %82 = arith.addf %80, %81 : vector<8x128xf32>
    %83 = arith.index_cast %c1_i32 : i32 to index
    %c0_31 = arith.constant 0 : index
    %c0_32 = arith.constant 0 : index
    %84 = vector.load %arg11[%83, %c0_31, %c0_32] : memref<8x8x128xf32, #tpu.memory_space<vmem>>, vector<1x8x128xf32>
    %85 = vector.shape_cast %84 : vector<1x8x128xf32> to vector<8x128xf32>
    %86 = vector.shape_cast %82 : vector<8x128xf32> to vector<1x8x128xf32>
    tpu.vector_store %arg11[%83, %c0_31, %c0_32], %86 {strides = array<i32>} : memref<8x8x128xf32, #tpu.memory_space<vmem>>, vector<1x8x128xf32>,
    %c2_i32 = arith.constant 2 : i32
    %87 = arith.index_cast %c2_i32 : i32 to index
    %c0_33 = arith.constant 0 : index
    %c0_34 = arith.constant 0 : index
    %88 = vector.load %arg10[%87, %c0_33, %c0_34] : memref<8x8x384xf32, #tpu.memory_space<vmem>>, vector<1x8x384xf32>
    %89 = vector.shape_cast %88 : vector<1x8x384xf32> to vector<8x384xf32>
    %cst_35 = arith.constant dense<0.000000e+00> : vector<8x384xf32>
    %90 = tpu.matmul %82, %12, %cst_35 {dimension_numbers = #tpu.dot_dimension_numbers<[1], [0], [0], [1], [0, 0, 1, 1], [], []>} : vector<8x128xf32>, vector<128x384xf32>, vector<8x384xf32> -> vector<8x384xf32>
    %91 = vector.extract_strided_slice %89 {offsets = [0, 0], sizes = [8, 128], strides = [1, 1]} : vector<8x384xf32> to vector<8x128xf32>
    %92 = vector.extract_strided_slice %90 {offsets = [0, 0], sizes = [8, 128], strides = [1, 1]} : vector<8x384xf32> to vector<8x128xf32>
    %93 = arith.addf %91, %92 : vector<8x128xf32>
    %94 = arith.negf %93 : vector<8x128xf32>
    %95 = math.exp %94 : vector<8x128xf32>
    %cst_36 = arith.constant 1.000000e+00 : f32
    %96 = vector.broadcast %cst_36 : f32 to vector<8x128xf32>
    %97 = arith.addf %96, %95 : vector<8x128xf32>
    %98 = arith.divf %96, %97 : vector<8x128xf32>
    %99 = vector.extract_strided_slice %89 {offsets = [0, 128], sizes = [8, 128], strides = [1, 1]} : vector<8x384xf32> to vector<8x128xf32>
    %100 = vector.extract_strided_slice %90 {offsets = [0, 128], sizes = [8, 128], strides = [1, 1]} : vector<8x384xf32> to vector<8x128xf32>
    %101 = arith.addf %99, %100 : vector<8x128xf32>
    %102 = arith.negf %101 : vector<8x128xf32>
    %103 = math.exp %102 : vector<8x128xf32>
    %cst_37 = arith.constant 1.000000e+00 : f32
    %104 = vector.broadcast %cst_37 : f32 to vector<8x128xf32>
    %105 = arith.addf %104, %103 : vector<8x128xf32>
    %106 = arith.divf %104, %105 : vector<8x128xf32>
    %107 = vector.extract_strided_slice %89 {offsets = [0, 256], sizes = [8, 128], strides = [1, 1]} : vector<8x384xf32> to vector<8x128xf32>
    %108 = vector.extract_strided_slice %90 {offsets = [0, 256], sizes = [8, 128], strides = [1, 1]} : vector<8x384xf32> to vector<8x128xf32>
    %109 = vector.broadcast %13 : vector<1x128xf32> to vector<8x128xf32>
    %110 = arith.addf %108, %109 : vector<8x128xf32>
    %111 = arith.mulf %98, %110 : vector<8x128xf32>
    %112 = arith.addf %107, %111 : vector<8x128xf32>
    %113 = math.tanh %112 : vector<8x128xf32>
    %cst_38 = arith.constant 1.000000e+00 : f32
    %114 = vector.broadcast %cst_38 : f32 to vector<8x128xf32>
    %115 = arith.subf %114, %106 : vector<8x128xf32>
    %116 = arith.mulf %115, %113 : vector<8x128xf32>
    %117 = arith.mulf %106, %82 : vector<8x128xf32>
    %118 = arith.addf %116, %117 : vector<8x128xf32>
    %119 = arith.index_cast %c2_i32 : i32 to index
    %c0_39 = arith.constant 0 : index
    %c0_40 = arith.constant 0 : index
    %120 = vector.load %arg11[%119, %c0_39, %c0_40] : memref<8x8x128xf32, #tpu.memory_space<vmem>>, vector<1x8x128xf32>
    %121 = vector.shape_cast %120 : vector<1x8x128xf32> to vector<8x128xf32>
    %122 = vector.shape_cast %118 : vector<8x128xf32> to vector<1x8x128xf32>
    tpu.vector_store %arg11[%119, %c0_39, %c0_40], %122 {strides = array<i32>} : memref<8x8x128xf32, #tpu.memory_space<vmem>>, vector<1x8x128xf32>,
    %c3_i32 = arith.constant 3 : i32
    %123 = arith.index_cast %c3_i32 : i32 to index
    %c0_41 = arith.constant 0 : index
    %c0_42 = arith.constant 0 : index
    %124 = vector.load %arg10[%123, %c0_41, %c0_42] : memref<8x8x384xf32, #tpu.memory_space<vmem>>, vector<1x8x384xf32>
    %125 = vector.shape_cast %124 : vector<1x8x384xf32> to vector<8x384xf32>
    %cst_43 = arith.constant dense<0.000000e+00> : vector<8x384xf32>
    %126 = tpu.matmul %118, %12, %cst_43 {dimension_numbers = #tpu.dot_dimension_numbers<[1], [0], [0], [1], [0, 0, 1, 1], [], []>} : vector<8x128xf32>, vector<128x384xf32>, vector<8x384xf32> -> vector<8x384xf32>
    %127 = vector.extract_strided_slice %125 {offsets = [0, 0], sizes = [8, 128], strides = [1, 1]} : vector<8x384xf32> to vector<8x128xf32>
    %128 = vector.extract_strided_slice %126 {offsets = [0, 0], sizes = [8, 128], strides = [1, 1]} : vector<8x384xf32> to vector<8x128xf32>
    %129 = arith.addf %127, %128 : vector<8x128xf32>
    %130 = arith.negf %129 : vector<8x128xf32>
    %131 = math.exp %130 : vector<8x128xf32>
    %cst_44 = arith.constant 1.000000e+00 : f32
    %132 = vector.broadcast %cst_44 : f32 to vector<8x128xf32>
    %133 = arith.addf %132, %131 : vector<8x128xf32>
    %134 = arith.divf %132, %133 : vector<8x128xf32>
    %135 = vector.extract_strided_slice %125 {offsets = [0, 128], sizes = [8, 128], strides = [1, 1]} : vector<8x384xf32> to vector<8x128xf32>
    %136 = vector.extract_strided_slice %126 {offsets = [0, 128], sizes = [8, 128], strides = [1, 1]} : vector<8x384xf32> to vector<8x128xf32>
    %137 = arith.addf %135, %136 : vector<8x128xf32>
    %138 = arith.negf %137 : vector<8x128xf32>
    %139 = math.exp %138 : vector<8x128xf32>
    %cst_45 = arith.constant 1.000000e+00 : f32
    %140 = vector.broadcast %cst_45 : f32 to vector<8x128xf32>
    %141 = arith.addf %140, %139 : vector<8x128xf32>
    %142 = arith.divf %140, %141 : vector<8x128xf32>
    %143 = vector.extract_strided_slice %125 {offsets = [0, 256], sizes = [8, 128], strides = [1, 1]} : vector<8x384xf32> to vector<8x128xf32>
    %144 = vector.extract_strided_slice %126 {offsets = [0, 256], sizes = [8, 128], strides = [1, 1]} : vector<8x384xf32> to vector<8x128xf32>
    %145 = vector.broadcast %13 : vector<1x128xf32> to vector<8x128xf32>
    %146 = arith.addf %144, %145 : vector<8x128xf32>
    %147 = arith.mulf %134, %146 : vector<8x128xf32>
    %148 = arith.addf %143, %147 : vector<8x128xf32>
    %149 = math.tanh %148 : vector<8x128xf32>
    %cst_46 = arith.constant 1.000000e+00 : f32
    %150 = vector.broadcast %cst_46 : f32 to vector<8x128xf32>
    %151 = arith.subf %150, %142 : vector<8x128xf32>
    %152 = arith.mulf %151, %149 : vector<8x128xf32>
    %153 = arith.mulf %142, %118 : vector<8x128xf32>
    %154 = arith.addf %152, %153 : vector<8x128xf32>
    %155 = arith.index_cast %c3_i32 : i32 to index
    %c0_47 = arith.constant 0 : index
    %c0_48 = arith.constant 0 : index
    %156 = vector.load %arg11[%155, %c0_47, %c0_48] : memref<8x8x128xf32, #tpu.memory_space<vmem>>, vector<1x8x128xf32>
    %157 = vector.shape_cast %156 : vector<1x8x128xf32> to vector<8x128xf32>
    %158 = vector.shape_cast %154 : vector<8x128xf32> to vector<1x8x128xf32>
    tpu.vector_store %arg11[%155, %c0_47, %c0_48], %158 {strides = array<i32>} : memref<8x8x128xf32, #tpu.memory_space<vmem>>, vector<1x8x128xf32>,
    %c4_i32 = arith.constant 4 : i32
    %159 = arith.index_cast %c4_i32 : i32 to index
    %c0_49 = arith.constant 0 : index
    %c0_50 = arith.constant 0 : index
    %160 = vector.load %arg10[%159, %c0_49, %c0_50] : memref<8x8x384xf32, #tpu.memory_space<vmem>>, vector<1x8x384xf32>
    %161 = vector.shape_cast %160 : vector<1x8x384xf32> to vector<8x384xf32>
    %cst_51 = arith.constant dense<0.000000e+00> : vector<8x384xf32>
    %162 = tpu.matmul %154, %12, %cst_51 {dimension_numbers = #tpu.dot_dimension_numbers<[1], [0], [0], [1], [0, 0, 1, 1], [], []>} : vector<8x128xf32>, vector<128x384xf32>, vector<8x384xf32> -> vector<8x384xf32>
    %163 = vector.extract_strided_slice %161 {offsets = [0, 0], sizes = [8, 128], strides = [1, 1]} : vector<8x384xf32> to vector<8x128xf32>
    %164 = vector.extract_strided_slice %162 {offsets = [0, 0], sizes = [8, 128], strides = [1, 1]} : vector<8x384xf32> to vector<8x128xf32>
    %165 = arith.addf %163, %164 : vector<8x128xf32>
    %166 = arith.negf %165 : vector<8x128xf32>
    %167 = math.exp %166 : vector<8x128xf32>
    %cst_52 = arith.constant 1.000000e+00 : f32
    %168 = vector.broadcast %cst_52 : f32 to vector<8x128xf32>
    %169 = arith.addf %168, %167 : vector<8x128xf32>
    %170 = arith.divf %168, %169 : vector<8x128xf32>
    %171 = vector.extract_strided_slice %161 {offsets = [0, 128], sizes = [8, 128], strides = [1, 1]} : vector<8x384xf32> to vector<8x128xf32>
    %172 = vector.extract_strided_slice %162 {offsets = [0, 128], sizes = [8, 128], strides = [1, 1]} : vector<8x384xf32> to vector<8x128xf32>
    %173 = arith.addf %171, %172 : vector<8x128xf32>
    %174 = arith.negf %173 : vector<8x128xf32>
    %175 = math.exp %174 : vector<8x128xf32>
    %cst_53 = arith.constant 1.000000e+00 : f32
    %176 = vector.broadcast %cst_53 : f32 to vector<8x128xf32>
    %177 = arith.addf %176, %175 : vector<8x128xf32>
    %178 = arith.divf %176, %177 : vector<8x128xf32>
    %179 = vector.extract_strided_slice %161 {offsets = [0, 256], sizes = [8, 128], strides = [1, 1]} : vector<8x384xf32> to vector<8x128xf32>
    %180 = vector.extract_strided_slice %162 {offsets = [0, 256], sizes = [8, 128], strides = [1, 1]} : vector<8x384xf32> to vector<8x128xf32>
    %181 = vector.broadcast %13 : vector<1x128xf32> to vector<8x128xf32>
    %182 = arith.addf %180, %181 : vector<8x128xf32>
    %183 = arith.mulf %170, %182 : vector<8x128xf32>
    %184 = arith.addf %179, %183 : vector<8x128xf32>
    %185 = math.tanh %184 : vector<8x128xf32>
    %cst_54 = arith.constant 1.000000e+00 : f32
    %186 = vector.broadcast %cst_54 : f32 to vector<8x128xf32>
    %187 = arith.subf %186, %178 : vector<8x128xf32>
    %188 = arith.mulf %187, %185 : vector<8x128xf32>
    %189 = arith.mulf %178, %154 : vector<8x128xf32>
    %190 = arith.addf %188, %189 : vector<8x128xf32>
    %191 = arith.index_cast %c4_i32 : i32 to index
    %c0_55 = arith.constant 0 : index
    %c0_56 = arith.constant 0 : index
    %192 = vector.load %arg11[%191, %c0_55, %c0_56] : memref<8x8x128xf32, #tpu.memory_space<vmem>>, vector<1x8x128xf32>
    %193 = vector.shape_cast %192 : vector<1x8x128xf32> to vector<8x128xf32>
    %194 = vector.shape_cast %190 : vector<8x128xf32> to vector<1x8x128xf32>
    tpu.vector_store %arg11[%191, %c0_55, %c0_56], %194 {strides = array<i32>} : memref<8x8x128xf32, #tpu.memory_space<vmem>>, vector<1x8x128xf32>,
    %c5_i32 = arith.constant 5 : i32
    %195 = arith.index_cast %c5_i32 : i32 to index
    %c0_57 = arith.constant 0 : index
    %c0_58 = arith.constant 0 : index
    %196 = vector.load %arg10[%195, %c0_57, %c0_58] : memref<8x8x384xf32, #tpu.memory_space<vmem>>, vector<1x8x384xf32>
    %197 = vector.shape_cast %196 : vector<1x8x384xf32> to vector<8x384xf32>
    %cst_59 = arith.constant dense<0.000000e+00> : vector<8x384xf32>
    %198 = tpu.matmul %190, %12, %cst_59 {dimension_numbers = #tpu.dot_dimension_numbers<[1], [0], [0], [1], [0, 0, 1, 1], [], []>} : vector<8x128xf32>, vector<128x384xf32>, vector<8x384xf32> -> vector<8x384xf32>
    %199 = vector.extract_strided_slice %197 {offsets = [0, 0], sizes = [8, 128], strides = [1, 1]} : vector<8x384xf32> to vector<8x128xf32>
    %200 = vector.extract_strided_slice %198 {offsets = [0, 0], sizes = [8, 128], strides = [1, 1]} : vector<8x384xf32> to vector<8x128xf32>
    %201 = arith.addf %199, %200 : vector<8x128xf32>
    %202 = arith.negf %201 : vector<8x128xf32>
    %203 = math.exp %202 : vector<8x128xf32>
    %cst_60 = arith.constant 1.000000e+00 : f32
    %204 = vector.broadcast %cst_60 : f32 to vector<8x128xf32>
    %205 = arith.addf %204, %203 : vector<8x128xf32>
    %206 = arith.divf %204, %205 : vector<8x128xf32>
    %207 = vector.extract_strided_slice %197 {offsets = [0, 128], sizes = [8, 128], strides = [1, 1]} : vector<8x384xf32> to vector<8x128xf32>
    %208 = vector.extract_strided_slice %198 {offsets = [0, 128], sizes = [8, 128], strides = [1, 1]} : vector<8x384xf32> to vector<8x128xf32>
    %209 = arith.addf %207, %208 : vector<8x128xf32>
    %210 = arith.negf %209 : vector<8x128xf32>
    %211 = math.exp %210 : vector<8x128xf32>
    %cst_61 = arith.constant 1.000000e+00 : f32
    %212 = vector.broadcast %cst_61 : f32 to vector<8x128xf32>
    %213 = arith.addf %212, %211 : vector<8x128xf32>
    %214 = arith.divf %212, %213 : vector<8x128xf32>
    %215 = vector.extract_strided_slice %197 {offsets = [0, 256], sizes = [8, 128], strides = [1, 1]} : vector<8x384xf32> to vector<8x128xf32>
    %216 = vector.extract_strided_slice %198 {offsets = [0, 256], sizes = [8, 128], strides = [1, 1]} : vector<8x384xf32> to vector<8x128xf32>
    %217 = vector.broadcast %13 : vector<1x128xf32> to vector<8x128xf32>
    %218 = arith.addf %216, %217 : vector<8x128xf32>
    %219 = arith.mulf %206, %218 : vector<8x128xf32>
    %220 = arith.addf %215, %219 : vector<8x128xf32>
    %221 = math.tanh %220 : vector<8x128xf32>
    %cst_62 = arith.constant 1.000000e+00 : f32
    %222 = vector.broadcast %cst_62 : f32 to vector<8x128xf32>
    %223 = arith.subf %222, %214 : vector<8x128xf32>
    %224 = arith.mulf %223, %221 : vector<8x128xf32>
    %225 = arith.mulf %214, %190 : vector<8x128xf32>
    %226 = arith.addf %224, %225 : vector<8x128xf32>
    %227 = arith.index_cast %c5_i32 : i32 to index
    %c0_63 = arith.constant 0 : index
    %c0_64 = arith.constant 0 : index
    %228 = vector.load %arg11[%227, %c0_63, %c0_64] : memref<8x8x128xf32, #tpu.memory_space<vmem>>, vector<1x8x128xf32>
    %229 = vector.shape_cast %228 : vector<1x8x128xf32> to vector<8x128xf32>
    %230 = vector.shape_cast %226 : vector<8x128xf32> to vector<1x8x128xf32>
    tpu.vector_store %arg11[%227, %c0_63, %c0_64], %230 {strides = array<i32>} : memref<8x8x128xf32, #tpu.memory_space<vmem>>, vector<1x8x128xf32>,
    %c6_i32 = arith.constant 6 : i32
    %231 = arith.index_cast %c6_i32 : i32 to index
    %c0_65 = arith.constant 0 : index
    %c0_66 = arith.constant 0 : index
    %232 = vector.load %arg10[%231, %c0_65, %c0_66] : memref<8x8x384xf32, #tpu.memory_space<vmem>>, vector<1x8x384xf32>
    %233 = vector.shape_cast %232 : vector<1x8x384xf32> to vector<8x384xf32>
    %cst_67 = arith.constant dense<0.000000e+00> : vector<8x384xf32>
    %234 = tpu.matmul %226, %12, %cst_67 {dimension_numbers = #tpu.dot_dimension_numbers<[1], [0], [0], [1], [0, 0, 1, 1], [], []>} : vector<8x128xf32>, vector<128x384xf32>, vector<8x384xf32> -> vector<8x384xf32>
    %235 = vector.extract_strided_slice %233 {offsets = [0, 0], sizes = [8, 128], strides = [1, 1]} : vector<8x384xf32> to vector<8x128xf32>
    %236 = vector.extract_strided_slice %234 {offsets = [0, 0], sizes = [8, 128], strides = [1, 1]} : vector<8x384xf32> to vector<8x128xf32>
    %237 = arith.addf %235, %236 : vector<8x128xf32>
    %238 = arith.negf %237 : vector<8x128xf32>
    %239 = math.exp %238 : vector<8x128xf32>
    %cst_68 = arith.constant 1.000000e+00 : f32
    %240 = vector.broadcast %cst_68 : f32 to vector<8x128xf32>
    %241 = arith.addf %240, %239 : vector<8x128xf32>
    %242 = arith.divf %240, %241 : vector<8x128xf32>
    %243 = vector.extract_strided_slice %233 {offsets = [0, 128], sizes = [8, 128], strides = [1, 1]} : vector<8x384xf32> to vector<8x128xf32>
    %244 = vector.extract_strided_slice %234 {offsets = [0, 128], sizes = [8, 128], strides = [1, 1]} : vector<8x384xf32> to vector<8x128xf32>
    %245 = arith.addf %243, %244 : vector<8x128xf32>
    %246 = arith.negf %245 : vector<8x128xf32>
    %247 = math.exp %246 : vector<8x128xf32>
    %cst_69 = arith.constant 1.000000e+00 : f32
    %248 = vector.broadcast %cst_69 : f32 to vector<8x128xf32>
    %249 = arith.addf %248, %247 : vector<8x128xf32>
    %250 = arith.divf %248, %249 : vector<8x128xf32>
    %251 = vector.extract_strided_slice %233 {offsets = [0, 256], sizes = [8, 128], strides = [1, 1]} : vector<8x384xf32> to vector<8x128xf32>
    %252 = vector.extract_strided_slice %234 {offsets = [0, 256], sizes = [8, 128], strides = [1, 1]} : vector<8x384xf32> to vector<8x128xf32>
    %253 = vector.broadcast %13 : vector<1x128xf32> to vector<8x128xf32>
    %254 = arith.addf %252, %253 : vector<8x128xf32>
    %255 = arith.mulf %242, %254 : vector<8x128xf32>
    %256 = arith.addf %251, %255 : vector<8x128xf32>
    %257 = math.tanh %256 : vector<8x128xf32>
    %cst_70 = arith.constant 1.000000e+00 : f32
    %258 = vector.broadcast %cst_70 : f32 to vector<8x128xf32>
    %259 = arith.subf %258, %250 : vector<8x128xf32>
    %260 = arith.mulf %259, %257 : vector<8x128xf32>
    %261 = arith.mulf %250, %226 : vector<8x128xf32>
    %262 = arith.addf %260, %261 : vector<8x128xf32>
    %263 = arith.index_cast %c6_i32 : i32 to index
    %c0_71 = arith.constant 0 : index
    %c0_72 = arith.constant 0 : index
    %264 = vector.load %arg11[%263, %c0_71, %c0_72] : memref<8x8x128xf32, #tpu.memory_space<vmem>>, vector<1x8x128xf32>
    %265 = vector.shape_cast %264 : vector<1x8x128xf32> to vector<8x128xf32>
    %266 = vector.shape_cast %262 : vector<8x128xf32> to vector<1x8x128xf32>
    tpu.vector_store %arg11[%263, %c0_71, %c0_72], %266 {strides = array<i32>} : memref<8x8x128xf32, #tpu.memory_space<vmem>>, vector<1x8x128xf32>,
    %c7_i32 = arith.constant 7 : i32
    %267 = arith.index_cast %c7_i32 : i32 to index
    %c0_73 = arith.constant 0 : index
    %c0_74 = arith.constant 0 : index
    %268 = vector.load %arg10[%267, %c0_73, %c0_74] : memref<8x8x384xf32, #tpu.memory_space<vmem>>, vector<1x8x384xf32>
    %269 = vector.shape_cast %268 : vector<1x8x384xf32> to vector<8x384xf32>
    %cst_75 = arith.constant dense<0.000000e+00> : vector<8x384xf32>
    %270 = tpu.matmul %262, %12, %cst_75 {dimension_numbers = #tpu.dot_dimension_numbers<[1], [0], [0], [1], [0, 0, 1, 1], [], []>} : vector<8x128xf32>, vector<128x384xf32>, vector<8x384xf32> -> vector<8x384xf32>
    %271 = vector.extract_strided_slice %269 {offsets = [0, 0], sizes = [8, 128], strides = [1, 1]} : vector<8x384xf32> to vector<8x128xf32>
    %272 = vector.extract_strided_slice %270 {offsets = [0, 0], sizes = [8, 128], strides = [1, 1]} : vector<8x384xf32> to vector<8x128xf32>
    %273 = arith.addf %271, %272 : vector<8x128xf32>
    %274 = arith.negf %273 : vector<8x128xf32>
    %275 = math.exp %274 : vector<8x128xf32>
    %cst_76 = arith.constant 1.000000e+00 : f32
    %276 = vector.broadcast %cst_76 : f32 to vector<8x128xf32>
    %277 = arith.addf %276, %275 : vector<8x128xf32>
    %278 = arith.divf %276, %277 : vector<8x128xf32>
    %279 = vector.extract_strided_slice %269 {offsets = [0, 128], sizes = [8, 128], strides = [1, 1]} : vector<8x384xf32> to vector<8x128xf32>
    %280 = vector.extract_strided_slice %270 {offsets = [0, 128], sizes = [8, 128], strides = [1, 1]} : vector<8x384xf32> to vector<8x128xf32>
    %281 = arith.addf %279, %280 : vector<8x128xf32>
    %282 = arith.negf %281 : vector<8x128xf32>
    %283 = math.exp %282 : vector<8x128xf32>
    %cst_77 = arith.constant 1.000000e+00 : f32
    %284 = vector.broadcast %cst_77 : f32 to vector<8x128xf32>
    %285 = arith.addf %284, %283 : vector<8x128xf32>
    %286 = arith.divf %284, %285 : vector<8x128xf32>
    %287 = vector.extract_strided_slice %269 {offsets = [0, 256], sizes = [8, 128], strides = [1, 1]} : vector<8x384xf32> to vector<8x128xf32>
    %288 = vector.extract_strided_slice %270 {offsets = [0, 256], sizes = [8, 128], strides = [1, 1]} : vector<8x384xf32> to vector<8x128xf32>
    %289 = vector.broadcast %13 : vector<1x128xf32> to vector<8x128xf32>
    %290 = arith.addf %288, %289 : vector<8x128xf32>
    %291 = arith.mulf %278, %290 : vector<8x128xf32>
    %292 = arith.addf %287, %291 : vector<8x128xf32>
    %293 = math.tanh %292 : vector<8x128xf32>
    %cst_78 = arith.constant 1.000000e+00 : f32
    %294 = vector.broadcast %cst_78 : f32 to vector<8x128xf32>
    %295 = arith.subf %294, %286 : vector<8x128xf32>
    %296 = arith.mulf %295, %293 : vector<8x128xf32>
    %297 = arith.mulf %286, %262 : vector<8x128xf32>
    %298 = arith.addf %296, %297 : vector<8x128xf32>
    %299 = arith.index_cast %c7_i32 : i32 to index
    %c0_79 = arith.constant 0 : index
    %c0_80 = arith.constant 0 : index
    %300 = vector.load %arg11[%299, %c0_79, %c0_80] : memref<8x8x128xf32, #tpu.memory_space<vmem>>, vector<1x8x128xf32>
    %301 = vector.shape_cast %300 : vector<1x8x128xf32> to vector<8x128xf32>
    %302 = vector.shape_cast %298 : vector<8x128xf32> to vector<1x8x128xf32>
    tpu.vector_store %arg11[%299, %c0_79, %c0_80], %302 {strides = array<i32>} : memref<8x8x128xf32, #tpu.memory_space<vmem>>, vector<1x8x128xf32>,
    %c8_i32 = arith.constant 8 : i32
    %c0_81 = arith.constant 0 : index
    %c0_82 = arith.constant 0 : index
    %303 = vector.load %arg12[%c0_81, %c0_82] : memref<8x128xf32, #tpu.memory_space<vmem>>, vector<8x128xf32>
    tpu.vector_store %arg12[%c0_81, %c0_82], %298 {strides = array<i32>} : memref<8x128xf32, #tpu.memory_space<vmem>>, vector<8x128xf32>,
    %c0_83 = arith.constant 0 : index
    %c0_84 = arith.constant 0 : index
    %c0_85 = arith.constant 0 : index
    %304 = vector.load %arg11[%c0_83, %c0_84, %c0_85] : memref<8x8x128xf32, #tpu.memory_space<vmem>>, vector<8x8x128xf32>
    %305 = vector.shape_cast %304 : vector<8x8x128xf32> to vector<64x128xf32>
    %c0_86 = arith.constant 0 : index
    %c0_87 = arith.constant 0 : index
    %306 = vector.load %arg7[%c0_86, %c0_87] : memref<128x128xf32, #tpu.memory_space<vmem>>, vector<128x128xf32>
    %cst_88 = arith.constant dense<0.000000e+00> : vector<64x128xf32>
    %307 = tpu.matmul %305, %306, %cst_88 {dimension_numbers = #tpu.dot_dimension_numbers<[1], [0], [0], [1], [0, 0, 1, 1], [], []>} : vector<64x128xf32>, vector<128x128xf32>, vector<64x128xf32> -> vector<64x128xf32>
    %c0_89 = arith.constant 0 : index
    %c0_90 = arith.constant 0 : index
    %308 = vector.load %arg8[%c0_89, %c0_90] : memref<1x128xf32, #tpu.memory_space<vmem>>, vector<1x128xf32>
    %309 = vector.broadcast %308 : vector<1x128xf32> to vector<64x128xf32>
    %310 = arith.addf %307, %309 : vector<64x128xf32>
    %311 = vector.shape_cast %310 : vector<64x128xf32> to vector<8x8x128xf32>
    %c0_91 = arith.constant 0 : index
    %c0_92 = arith.constant 0 : index
    %c0_93 = arith.constant 0 : index
    %312 = vector.load %arg9[%c0_91, %c0_92, %c0_93] : memref<8x8x128xf32, #tpu.memory_space<vmem>>, vector<8x8x128xf32>
    tpu.vector_store %arg9[%c0_91, %c0_92, %c0_93], %311 {strides = array<i32>} : memref<8x8x128xf32, #tpu.memory_space<vmem>>, vector<8x8x128xf32>,
    return
  }
  func.func @transform_0(%arg0: i32, %arg1: i32) -> (i32, i32, i32) {
    %c0_i32 = arith.constant 0 : i32
    %c0_i32_0 = arith.constant 0 : i32
    return %arg1, %arg0, %c0_i32 : i32, i32, i32
  }
  func.func @transform_1(%arg0: i32, %arg1: i32) -> (i32, i32) {
    %c0_i32 = arith.constant 0 : i32
    %c0_i32_0 = arith.constant 0 : i32
    %c0_i32_1 = arith.constant 0 : i32
    return %c0_i32, %c0_i32_0 : i32, i32
  }
  func.func @transform_2(%arg0: i32, %arg1: i32) -> (i32, i32) {
    %c0_i32 = arith.constant 0 : i32
    %c0_i32_0 = arith.constant 0 : i32
    %c0_i32_1 = arith.constant 0 : i32
    return %c0_i32, %c0_i32_0 : i32, i32
  }
  func.func @transform_3(%arg0: i32, %arg1: i32) -> (i32, i32) {
    %c0_i32 = arith.constant 0 : i32
    %c0_i32_0 = arith.constant 0 : i32
    %c0_i32_1 = arith.constant 0 : i32
    return %c0_i32, %c0_i32_0 : i32, i32
  }
  func.func @transform_4(%arg0: i32, %arg1: i32) -> (i32, i32) {
    %c0_i32 = arith.constant 0 : i32
    %c0_i32_0 = arith.constant 0 : i32
    %c0_i32_1 = arith.constant 0 : i32
    return %c0_i32, %c0_i32_0 : i32, i32
  }
  func.func @transform_5(%arg0: i32, %arg1: i32) -> (i32, i32) {
    %c0_i32 = arith.constant 0 : i32
    %c0_i32_0 = arith.constant 0 : i32
    %c0_i32_1 = arith.constant 0 : i32
    return %c0_i32, %c0_i32_0 : i32, i32
  }
  func.func @transform_6(%arg0: i32, %arg1: i32) -> (i32, i32) {
    %c0_i32 = arith.constant 0 : i32
    %c0_i32_0 = arith.constant 0 : i32
    %c0_i32_1 = arith.constant 0 : i32
    return %c0_i32, %c0_i32_0 : i32, i32
  }
  func.func @transform_7(%arg0: i32, %arg1: i32) -> (i32, i32, i32) {
    %c0_i32 = arith.constant 0 : i32
    %c0_i32_0 = arith.constant 0 : i32
    return %arg1, %arg0, %c0_i32 : i32, i32, i32
  }
}

</mosaic_0001>

<llo_original>
// kernel: tpu_custom_call.1
$region0: #{tpu_custom_call.1}
  #allocation0 [shape = 'u32[]', space=smem, size = 0x4, offset = 0x4, fixed_abs, tag = 'smem constant byte address 0x4 - core index']
  #allocation1 [shape = 'u32[144,128]{1,0:T(1,128)}', space=vmem, size = 0x12000, scoped, tag = 'internal scratch']
  #allocation2 [shape = 'f32[8,8,384]{2,1,0:T(8,128)}', space=vmem, size = 0x18000, scoped, tag = 'scratch operand']
  #allocation3 [shape = 'f32[8,8,128]{2,1,0:T(8,128)}', space=vmem, size = 0x8000, scoped, tag = 'scratch operand']
  #allocation4 [shape = 'f32[8,128]{1,0:T(8,128)}', space=vmem, size = 0x1000, scoped, tag = 'scratch operand']
  %s0 = inlined_call_operand.hbm [shape: f32[8,8,128], index: 0, kind: input, shape index: {}]
  %s1 = inlined_call_operand.hbm [shape: f32[128,384], index: 1, kind: input, shape index: {}]
  %s2 = inlined_call_operand.hbm [shape: f32[128,384], index: 2, kind: input, shape index: {}]
  %s3 = inlined_call_operand.vmem [shape: f32[1,384], index: 3, kind: input, shape index: {}]
  %s4 = inlined_call_operand.vmem [shape: f32[1,128], index: 4, kind: input, shape index: {}]
  %s5 = inlined_call_operand.hbm [shape: f32[128,128], index: 5, kind: input, shape index: {}]
  %s6 = inlined_call_operand.vmem [shape: f32[1,128], index: 6, kind: input, shape index: {}]
  %s7 = inlined_call_operand.hbm [shape: f32[8,8,128], index: 7, kind: output, shape index: {}]
  %s8 = sld [smem:[#allocation0]]
  $region58: #{tpu_custom_call.1} parent=0
    _
  %s10 = ssub.s32 1, %s8
  %s11 = scalar_select 0, %s10, %s8
  $region1: #{tpu_custom_call.1} parent=0
    #allocation5 [shape = 'u8[32768]{0}', space=vmem, size = 0x8000, scoped, tag = 'input window, operand 0, single buffered']
    #allocation6 [shape = 's32[1]{0}', space=sflag, size = 0x4, scoped, tag = 'scoped memory for tpu_custom_call.1']
    #allocation7 [shape = 's32[1]{0}', space=sflag, size = 0x4, scoped, tag = 'scoped memory for tpu_custom_call.1']
    #allocation8 [shape = 'u8[196608]{0}', space=vmem, size = 0x30000, scoped, tag = 'input window, operand 1, single buffered']
    #allocation9 [shape = 's32[1]{0}', space=sflag, size = 0x4, scoped, tag = 'scoped memory for tpu_custom_call.1']
    #allocation10 [shape = 'u8[196608]{0}', space=vmem, size = 0x30000, scoped, tag = 'input window, operand 2, single buffered']
    #allocation11 [shape = 'u8[65536]{0}', space=vmem, size = 0x10000, scoped, tag = 'input window, operand 5, single buffered']
    #allocation12 [shape = 's32[1]{0}', space=sflag, size = 0x4, scoped, tag = 'scoped memory for tpu_custom_call.1']
    #allocation13 [shape = 'u8[32768]{0}', space=vmem, size = 0x8000, scoped, tag = 'output window, operand 0, single buffered']
    %12 = vsyncpa [#allocation6], 0
    %13 = vsyncpa [#allocation9], 0
    %14 = vsyncpa [#allocation12], 0
    %15 = vsyncpa [#allocation7], 0
    // Predicated region
    $region2: #{tpu_custom_call.1} parent=1 // pred_check
      _
    $region3: #{tpu_custom_call.1} parent=1 // pred_check_branch
      %17 = sbr.rel (0) target = $region5
    $region4: #{tpu_custom_call.1} parent=1 // pred_region
      %s19 = ssub.s32 1024, 1024
      %20 = vsyncadd [#allocation6], %s19
      %s21 = sshll.u32 [#allocation5], 4
      %s22 = int_to_ptr.vmem [resolvable:$true] %s21
      %27 = dma.hbm_to_vmem [thread:$0]  %s0, 1024, %s22, [#allocation6], 128, 128, 8
    $region5: #{tpu_custom_call.1} parent=1 // pred_fallthru
      _
    // Predicated region
    $region6: #{tpu_custom_call.1} parent=1 // pred_check
      _
    $region7: #{tpu_custom_call.1} parent=1 // pred_check_branch
      %29 = sbr.rel (0) target = $region9
    $region8: #{tpu_custom_call.1} parent=1 // pred_region
      %s31 = ssub.s32 6144, 6144
      %32 = vsyncadd [#allocation9], %s31
      %s33 = sshll.u32 [#allocation8], 4
      %s34 = int_to_ptr.vmem [resolvable:$true] %s33
      %39 = dma.hbm_to_vmem [thread:$0]  %s1, 6144, %s34, [#allocation9], 384, 384, 24
    $region9: #{tpu_custom_call.1} parent=1 // pred_fallthru
      _
    // Predicated region
    $region10: #{tpu_custom_call.1} parent=1 // pred_check
      _
    $region11: #{tpu_custom_call.1} parent=1 // pred_check_branch
      %41 = sbr.rel (0) target = $region13
    $region12: #{tpu_custom_call.1} parent=1 // pred_region
      %s43 = ssub.s32 6144, 6144
      %44 = vsyncadd [#allocation9], %s43
      %s45 = sshll.u32 [#allocation10], 4
      %s46 = int_to_ptr.vmem [resolvable:$true] %s45
      %51 = dma.hbm_to_vmem [thread:$0]  %s2, 6144, %s46, [#allocation9], 384, 384, 24
    $region13: #{tpu_custom_call.1} parent=1 // pred_fallthru
      _
    // Predicated region
    $region14: #{tpu_custom_call.1} parent=1 // pred_check
      _
    $region15: #{tpu_custom_call.1} parent=1 // pred_check_branch
      %53 = sbr.rel (0) target = $region17
    $region16: #{tpu_custom_call.1} parent=1 // pred_region
      _
    $region17: #{tpu_custom_call.1} parent=1 // pred_fallthru
      _
    // Predicated region
    $region18: #{tpu_custom_call.1} parent=1 // pred_check
      _
    $region19: #{tpu_custom_call.1} parent=1 // pred_check_branch
      %55 = sbr.rel (0) target = $region21
    $region20: #{tpu_custom_call.1} parent=1 // pred_region
      _
    $region21: #{tpu_custom_call.1} parent=1 // pred_fallthru
      _
    // Predicated region
    $region22: #{tpu_custom_call.1} parent=1 // pred_check
      _
    $region23: #{tpu_custom_call.1} parent=1 // pred_check_branch
      %57 = sbr.rel (0) target = $region25
    $region24: #{tpu_custom_call.1} parent=1 // pred_region
      %s59 = ssub.s32 2048, 2048
      %60 = vsyncadd [#allocation12], %s59
      %s61 = sshll.u32 [#allocation11], 4
      %s62 = int_to_ptr.vmem [resolvable:$true] %s61
      %67 = dma.hbm_to_vmem [thread:$0]  %s5, 2048, %s62, [#allocation12], 128, 128, 8
    $region25: #{tpu_custom_call.1} parent=1 // pred_fallthru
      _
    // Predicated region
    $region26: #{tpu_custom_call.1} parent=1 // pred_check
      _
    $region27: #{tpu_custom_call.1} parent=1 // pred_check_branch
      %69 = sbr.rel (0) target = $region29
    $region28: #{tpu_custom_call.1} parent=1 // pred_region
      _
    $region29: #{tpu_custom_call.1} parent=1 // pred_fallthru
      _
    // Predicated region
    $region30: #{tpu_custom_call.1} parent=1 // pred_check
      _
    $region31: #{tpu_custom_call.1} parent=1 // pred_check_branch
      %71 = sbr.rel (0) target = $region33
    $region32: #{tpu_custom_call.1} parent=1 // pred_region
      %72 = dma.done [#allocation6], 1024
    $region33: #{tpu_custom_call.1} parent=1 // pred_fallthru
      _
    // Predicated region
    $region34: #{tpu_custom_call.1} parent=1 // pred_check
      _
    $region35: #{tpu_custom_call.1} parent=1 // pred_check_branch
      %74 = sbr.rel (0) target = $region37
    $region36: #{tpu_custom_call.1} parent=1 // pred_region
      %75 = dma.done [#allocation9], 6144
    $region37: #{tpu_custom_call.1} parent=1 // pred_fallthru
      _
    // Predicated region
    $region38: #{tpu_custom_call.1} parent=1 // pred_check
      _
    $region39: #{tpu_custom_call.1} parent=1 // pred_check_branch
      %77 = sbr.rel (0) target = $region41
    $region40: #{tpu_custom_call.1} parent=1 // pred_region
      %78 = dma.done [#allocation9], 6144
    $region41: #{tpu_custom_call.1} parent=1 // pred_fallthru
      _
    // Predicated region
    $region42: #{tpu_custom_call.1} parent=1 // pred_check
      _
    $region43: #{tpu_custom_call.1} parent=1 // pred_check_branch
      %80 = sbr.rel (0) target = $region45
    $region44: #{tpu_custom_call.1} parent=1 // pred_region
      %81 = dma.done [#allocation12], 2048
    $region45: #{tpu_custom_call.1} parent=1 // pred_fallthru
      _
    %p82 = scmp.eq.s32.totalorder 0, 0
    // Predicated region
    $region46: #{tpu_custom_call.1} parent=1 // pred_check
      %p83 = pneg %p82
    $region47: #{tpu_custom_call.1} parent=1 // pred_check_branch
      %85 = sbr.rel (%p83) target = $region49
    $region48: #{tpu_custom_call.1} parent=1 // pred_region
      %86 = vst [vmem:[#allocation4] sm:$0xff] 0.0
    $region49: #{tpu_custom_call.1} parent=1 // pred_fallthru
      _
    %v87 = vld [vmem:[#allocation5] sm:$0xff]
    %v88 = vld [vmem:[#allocation5 + $0x8] sm:$0xff]
    %v89 = vld [vmem:[#allocation5 + $0x10] sm:$0xff]
    %v90 = vld [vmem:[#allocation5 + $0x18] sm:$0xff]
    %v91 = vld [vmem:[#allocation5 + $0x20] sm:$0xff]
    %v92 = vld [vmem:[#allocation5 + $0x28] sm:$0xff]
    %v93 = vld [vmem:[#allocation5 + $0x30] sm:$0xff]
    %v94 = vld [vmem:[#allocation5 + $0x38] sm:$0xff]
    %v95 = vld [vmem:[#allocation8] sm:$0xff]
    %v96 = vld [vmem:[#allocation8 + $0x8] sm:$0xff]
    %v97 = vld [vmem:[#allocation8 + $0x10] sm:$0xff]
    %v98 = vld [vmem:[#allocation8 + $0x18] sm:$0xff]
    %v99 = vld [vmem:[#allocation8 + $0x20] sm:$0xff]
    %v100 = vld [vmem:[#allocation8 + $0x28] sm:$0xff]
    %v101 = vld [vmem:[#allocation8 + $0x30] sm:$0xff]
    %v102 = vld [vmem:[#allocation8 + $0x38] sm:$0xff]
    %v103 = vld [vmem:[#allocation8 + $0x40] sm:$0xff]
    %v104 = vld [vmem:[#allocation8 + $0x48] sm:$0xff]
    %v105 = vld [vmem:[#allocation8 + $0x50] sm:$0xff]
    %v106 = vld [vmem:[#allocation8 + $0x58] sm:$0xff]
    %v107 = vld [vmem:[#allocation8 + $0x60] sm:$0xff]
    %v108 = vld [vmem:[#allocation8 + $0x68] sm:$0xff]
    %v109 = vld [vmem:[#allocation8 + $0x70] sm:$0xff]
    %v110 = vld [vmem:[#allocation8 + $0x78] sm:$0xff]
    %v111 = vld [vmem:[#allocation8 + $0x80] sm:$0xff]
    %v112 = vld [vmem:[#allocation8 + $0x88] sm:$0xff]
    %v113 = vld [vmem:[#allocation8 + $0x90] sm:$0xff]
    %v114 = vld [vmem:[#allocation8 + $0x98] sm:$0xff]
    %v115 = vld [vmem:[#allocation8 + $0xa0] sm:$0xff]
    %v116 = vld [vmem:[#allocation8 + $0xa8] sm:$0xff]
    %v117 = vld [vmem:[#allocation8 + $0xb0] sm:$0xff]
    %v118 = vld [vmem:[#allocation8 + $0xb8] sm:$0xff]
    %v119 = vld [vmem:[#allocation8 + $0xc0] sm:$0xff]
    %v120 = vld [vmem:[#allocation8 + $0xc8] sm:$0xff]
    %v121 = vld [vmem:[#allocation8 + $0xd0] sm:$0xff]
    %v122 = vld [vmem:[#allocation8 + $0xd8] sm:$0xff]
    %v123 = vld [vmem:[#allocation8 + $0xe0] sm:$0xff]
    %v124 = vld [vmem:[#allocation8 + $0xe8] sm:$0xff]
    %v125 = vld [vmem:[#allocation8 + $0xf0] sm:$0xff]
    %v126 = vld [vmem:[#allocation8 + $0xf8] sm:$0xff]
    %v127 = vld [vmem:[#allocation8 + $0x100] sm:$0xff]
    %v128 = vld [vmem:[#allocation8 + $0x108] sm:$0xff]
    %v129 = vld [vmem:[#allocation8 + $0x110] sm:$0xff]
    %v130 = vld [vmem:[#allocation8 + $0x118] sm:$0xff]
    %v131 = vld [vmem:[#allocation8 + $0x120] sm:$0xff]
    %v132 = vld [vmem:[#allocation8 + $0x128] sm:$0xff]
    %v133 = vld [vmem:[#allocation8 + $0x130] sm:$0xff]
    %v134 = vld [vmem:[#allocation8 + $0x138] sm:$0xff]
    %v135 = vld [vmem:[#allocation8 + $0x140] sm:$0xff]
    %v136 = vld [vmem:[#allocation8 + $0x148] sm:$0xff]
    %v137 = vld [vmem:[#allocation8 + $0x150] sm:$0xff]
    %v138 = vld [vmem:[#allocation8 + $0x158] sm:$0xff]
    %v139 = vld [vmem:[#allocation8 + $0x160] sm:$0xff]
    %v140 = vld [vmem:[#allocation8 + $0x168] sm:$0xff]
    %v141 = vld [vmem:[#allocation8 + $0x170] sm:$0xff]
    %v142 = vld [vmem:[#allocation8 + $0x178] sm:$0xff]
    %v143 = vld [vmem:[%s3] sm:$0x7]
    %v145 = vlaneseq
    %v146 = vshrl.u32 %v145, 7
    %v147 = vsub.s32 0, %v146
    %v148 = vrot.slane %v143, %v147
    %v149 = vlaneseq
    %v150 = vshrl.u32 %v149, 7
    %v151 = vsub.s32 1, %v150
    %v152 = vrot.slane %v143, %v151
    %v153 = vlaneseq
    %v154 = vshrl.u32 %v153, 7
    %v155 = vsub.s32 2, %v154
    %v156 = vrot.slane %v143, %v155
    %160 = vmatprep.subr.mxu0 %v141
    %161 = vmatpush1.msra.mxu0 %v140
    %162 = vmatprep.subr.mxu0 %v138
    %163 = vmatpush1.msra.mxu0 %v137
    %164 = vmatprep.subr.mxu0 %v135
    %165 = vmatpush1.msra.mxu0 %v134
    %166 = vmatprep.subr.mxu0 %v132
    %167 = vmatpush1.msra.mxu0 %v131
    %168 = vmatprep.subr.mxu0 %v129
    %169 = vmatpush1.msra.mxu0 %v128
    %170 = vmatprep.subr.mxu0 %v126
    %171 = vmatpush1.msra.mxu0 %v125
    %172 = vmatprep.subr.mxu0 %v123
    %173 = vmatpush1.msra.mxu0 %v122
    %174 = vmatprep.subr.mxu0 %v120
    %175 = vmatpush1.msra.mxu0 %v119
    %176 = vmatprep.subr.mxu0 %v117
    %177 = vmatpush1.msra.mxu0 %v116
    %178 = vmatprep.subr.mxu0 %v114
    %179 = vmatpush1.msra.mxu0 %v113
    %180 = vmatprep.subr.mxu0 %v111
    %181 = vmatpush1.msra.mxu0 %v110
    %182 = vmatprep.subr.mxu0 %v108
    %183 = vmatpush1.msra.mxu0 %v107
    %184 = vmatprep.subr.mxu0 %v105
    %185 = vmatpush1.msra.mxu0 %v104
    %186 = vmatprep.subr.mxu0 %v102
    %187 = vmatpush1.msra.mxu0 %v101
    %188 = vmatprep.subr.mxu0 %v99
    %189 = vmatpush1.msra.mxu0 %v98
    %190 = vmatprep.subr.mxu0 %v96
    %191 = vmatpush1.msra.mxu0 %v95
    %192 = vmatprep.subr.mxu0 0.0
    %193 = vmatpush2.msra.mxu0 0.0
    %194 = vmatprep.subr.mxu0 0.0
    %195 = vmatpush2.msra.mxu0 0.0
    %196 = vmatprep.subr.mxu0 0.0
    %197 = vmatpush2.msra.mxu0 0.0
    %198 = vmatprep.subr.mxu0 0.0
    %199 = vmatpush2.msra.mxu0 0.0
    %200 = vmatprep.subr.mxu0 0.0
    %201 = vmatpush2.msra.mxu0 0.0
    %202 = vmatprep.subr.mxu0 0.0
    %203 = vmatpush2.msra.mxu0 0.0
    %204 = vmatprep.subr.mxu0 0.0
    %205 = vmatpush2.msra.mxu0 0.0
    %206 = vmatprep.subr.mxu0 0.0
    %207 = vmatpush2.msra.mxu0 0.0
    %208 = vmatprep.subr.mxu0 0.0
    %209 = vmatpush2.msra.mxu0 0.0
    %210 = vmatprep.subr.mxu0 0.0
    %211 = vmatpush2.msra.mxu0 0.0
    %212 = vmatprep.subr.mxu0 0.0
    %213 = vmatpush2.msra.mxu0 0.0
    %214 = vmatprep.subr.mxu0 0.0
    %215 = vmatpush2.msra.mxu0 0.0
    %216 = vmatprep.subr.mxu0 0.0
    %217 = vmatpush2.msra.mxu0 0.0
    %218 = vmatprep.subr.mxu0 0.0
    %219 = vmatpush2.msra.mxu0 0.0
    %220 = vmatprep.subr.mxu0 0.0
    %221 = vmatpush2.msra.mxu0 0.0
    %222 = vmatprep.subr.mxu0 0.0
    %223 = vmatpush2.msra.mxu0 0.0
    %224 = vmatprep.mubr.f32.mxu0 0.0
    %225 = vmatmul.mubr.f32.gmra.mxu0 %v87
    %v226 = vpop.f32.mrf.mxu0
    %v227 = vadd.f32 %v148, %v226
    %v228 = vpop.f32.mrf.mxu0
    %v229 = vadd.f32 %v152, %v228
    %230 = vmatprep.mubr.f32.mxu0 0.0
    %231 = vmatmul.mubr.f32.gmra.mxu0 %v88
    %v232 = vpop.f32.mrf.mxu0
    %v233 = vadd.f32 %v148, %v232
    %v234 = vpop.f32.mrf.mxu0
    %v235 = vadd.f32 %v152, %v234
    %236 = vmatprep.mubr.f32.mxu0 0.0
    %237 = vmatmul.mubr.f32.gmra.mxu0 %v89
    %v238 = vpop.f32.mrf.mxu0
    %v239 = vadd.f32 %v148, %v238
    %v240 = vpop.f32.mrf.mxu0
    %v241 = vadd.f32 %v152, %v240
    %242 = vmatprep.mubr.f32.mxu0 0.0
    %243 = vmatmul.mubr.f32.gmra.mxu0 %v90
    %v244 = vpop.f32.mrf.mxu0
    %v245 = vadd.f32 %v148, %v244
    %v246 = vpop.f32.mrf.mxu0
    %v247 = vadd.f32 %v152, %v246
    %248 = vmatprep.mubr.f32.mxu0 0.0
    %249 = vmatmul.mubr.f32.gmra.mxu0 %v91
    %v250 = vpop.f32.mrf.mxu0
    %v251 = vadd.f32 %v148, %v250
    %v252 = vpop.f32.mrf.mxu0
    %v253 = vadd.f32 %v152, %v252
    %254 = vmatprep.mubr.f32.mxu0 0.0
    %255 = vmatmul.mubr.f32.gmra.mxu0 %v92
    %v256 = vpop.f32.mrf.mxu0
    %v257 = vadd.f32 %v148, %v256
    %v258 = vpop.f32.mrf.mxu0
    %v259 = vadd.f32 %v152, %v258
    %260 = vmatprep.mubr.f32.mxu0 0.0
    %261 = vmatmul.mubr.f32.gmra.mxu0 %v93
    %v262 = vpop.f32.mrf.mxu0
    %v263 = vadd.f32 %v148, %v262
    %v264 = vpop.f32.mrf.mxu0
    %v265 = vadd.f32 %v152, %v264
    %266 = vmatprep.mubr.f32.mxu0 0.0
    %267 = vmatmul.mubr.f32.gmra.mxu0 %v94
    %v268 = vpop.f32.mrf.mxu0
    %v269 = vadd.f32 %v148, %v268
    %v270 = vpop.f32.mrf.mxu0
    %v271 = vadd.f32 %v152, %v270
    %272 = vdwg.mxu0
    %273 = vmatprep.subr.mxu0 0.0
    %274 = vmatpush1.msra.mxu0 %v142
    %275 = vmatprep.subr.mxu0 0.0
    %276 = vmatpush1.msra.mxu0 %v139
    %277 = vmatprep.subr.mxu0 0.0
    %278 = vmatpush1.msra.mxu0 %v136
    %279 = vmatprep.subr.mxu0 0.0
    %280 = vmatpush1.msra.mxu0 %v133
    %281 = vmatprep.subr.mxu0 0.0
    %282 = vmatpush1.msra.mxu0 %v130
    %283 = vmatprep.subr.mxu0 0.0
    %284 = vmatpush1.msra.mxu0 %v127
    %285 = vmatprep.subr.mxu0 0.0
    %286 = vmatpush1.msra.mxu0 %v124
    %287 = vmatprep.subr.mxu0 0.0
    %288 = vmatpush1.msra.mxu0 %v121
    %289 = vmatprep.subr.mxu0 0.0
    %290 = vmatpush1.msra.mxu0 %v118
    %291 = vmatprep.subr.mxu0 0.0
    %292 = vmatpush1.msra.mxu0 %v115
    %293 = vmatprep.subr.mxu0 0.0
    %294 = vmatpush1.msra.mxu0 %v112
    %295 = vmatprep.subr.mxu0 0.0
    %296 = vmatpush1.msra.mxu0 %v109
    %297 = vmatprep.subr.mxu0 0.0
    %298 = vmatpush1.msra.mxu0 %v106
    %299 = vmatprep.subr.mxu0 0.0
    %300 = vmatpush1.msra.mxu0 %v103
    %301 = vmatprep.subr.mxu0 0.0
    %302 = vmatpush1.msra.mxu0 %v100
    %303 = vmatprep.subr.mxu0 0.0
    %304 = vmatpush1.msra.mxu0 %v97
    %305 = vmatprep.subr.mxu0 0.0
    %306 = vmatpush2.msra.mxu0 0.0
    %307 = vmatprep.subr.mxu0 0.0
    %308 = vmatpush2.msra.mxu0 0.0
    %309 = vmatprep.subr.mxu0 0.0
    %310 = vmatpush2.msra.mxu0 0.0
    %311 = vmatprep.subr.mxu0 0.0
    %312 = vmatpush2.msra.mxu0 0.0
    %313 = vmatprep.subr.mxu0 0.0
    %314 = vmatpush2.msra.mxu0 0.0
    %315 = vmatprep.subr.mxu0 0.0
    %316 = vmatpush2.msra.mxu0 0.0
    %317 = vmatprep.subr.mxu0 0.0
    %318 = vmatpush2.msra.mxu0 0.0
    %319 = vmatprep.subr.mxu0 0.0
    %320 = vmatpush2.msra.mxu0 0.0
    %321 = vmatprep.subr.mxu0 0.0
    %322 = vmatpush2.msra.mxu0 0.0
    %323 = vmatprep.subr.mxu0 0.0
    %324 = vmatpush2.msra.mxu0 0.0
    %325 = vmatprep.subr.mxu0 0.0
    %326 = vmatpush2.msra.mxu0 0.0
    %327 = vmatprep.subr.mxu0 0.0
    %328 = vmatpush2.msra.mxu0 0.0
    %329 = vmatprep.subr.mxu0 0.0
    %330 = vmatpush2.msra.mxu0 0.0
    %331 = vmatprep.subr.mxu0 0.0
    %332 = vmatpush2.msra.mxu0 0.0
    %333 = vmatprep.subr.mxu0 0.0
    %334 = vmatpush2.msra.mxu0 0.0
    %335 = vmatprep.subr.mxu0 0.0
    %336 = vmatpush2.msra.mxu0 0.0
    %337 = vmatprep.mubr.f32.mxu0 0.0
    %338 = vmatmul.mubr.f32.gmra.mxu0 %v87
    %v339 = vpop.f32.mrf.mxu0
    %v340 = vadd.f32 %v156, %v339
    %v341 = vpop.f32.mrf.mxu0
    %342 = vmatprep.mubr.f32.mxu0 0.0
    %343 = vmatmul.mubr.f32.gmra.mxu0 %v88
    %v344 = vpop.f32.mrf.mxu0
    %v345 = vadd.f32 %v156, %v344
    %v346 = vpop.f32.mrf.mxu0
    %347 = vmatprep.mubr.f32.mxu0 0.0
    %348 = vmatmul.mubr.f32.gmra.mxu0 %v89
    %v349 = vpop.f32.mrf.mxu0
    %v350 = vadd.f32 %v156, %v349
    %v351 = vpop.f32.mrf.mxu0
    %352 = vmatprep.mubr.f32.mxu0 0.0
    %353 = vmatmul.mubr.f32.gmra.mxu0 %v90
    %v354 = vpop.f32.mrf.mxu0
    %v355 = vadd.f32 %v156, %v354
    %v356 = vpop.f32.mrf.mxu0
    %357 = vmatprep.mubr.f32.mxu0 0.0
    %358 = vmatmul.mubr.f32.gmra.mxu0 %v91
    %v359 = vpop.f32.mrf.mxu0
    %v360 = vadd.f32 %v156, %v359
    %v361 = vpop.f32.mrf.mxu0
    %362 = vmatprep.mubr.f32.mxu0 0.0
    %363 = vmatmul.mubr.f32.gmra.mxu0 %v92
    %v364 = vpop.f32.mrf.mxu0
    %v365 = vadd.f32 %v156, %v364
    %v366 = vpop.f32.mrf.mxu0
    %367 = vmatprep.mubr.f32.mxu0 0.0
    %368 = vmatmul.mubr.f32.gmra.mxu0 %v93
    %v369 = vpop.f32.mrf.mxu0
    %v370 = vadd.f32 %v156, %v369
    %v371 = vpop.f32.mrf.mxu0
    %372 = vmatprep.mubr.f32.mxu0 0.0
    %373 = vmatmul.mubr.f32.gmra.mxu0 %v94
    %v374 = vpop.f32.mrf.mxu0
    %v375 = vadd.f32 %v156, %v374
    %v376 = vpop.f32.mrf.mxu0
    %377 = vdwg.mxu0
    %378 = vst [vmem:[#allocation2] sm:$0xff] %v227
    %379 = vst [vmem:[#allocation2 + $0x8] sm:$0xff] %v229
    %380 = vst [vmem:[#allocation2 + $0x10] sm:$0xff] %v340
    %381 = vst [vmem:[#allocation2 + $0x18] sm:$0xff] %v233
    %382 = vst [vmem:[#allocation2 + $0x20] sm:$0xff] %v235
    %383 = vst [vmem:[#allocation2 + $0x28] sm:$0xff] %v345
    %384 = vst [vmem:[#allocation2 + $0x30] sm:$0xff] %v239
    %385 = vst [vmem:[#allocation2 + $0x38] sm:$0xff] %v241
    %386 = vst [vmem:[#allocation2 + $0x40] sm:$0xff] %v350
    %387 = vst [vmem:[#allocation2 + $0x48] sm:$0xff] %v245
    %388 = vst [vmem:[#allocation2 + $0x50] sm:$0xff] %v247
    %389 = vst [vmem:[#allocation2 + $0x58] sm:$0xff] %v355
    %390 = vst [vmem:[#allocation2 + $0x60] sm:$0xff] %v251
    %391 = vst [vmem:[#allocation2 + $0x68] sm:$0xff] %v253
    %392 = vst [vmem:[#allocation2 + $0x70] sm:$0xff] %v360
    %393 = vst [vmem:[#allocation2 + $0x78] sm:$0xff] %v257
    %394 = vst [vmem:[#allocation2 + $0x80] sm:$0xff] %v259
    %395 = vst [vmem:[#allocation2 + $0x88] sm:$0xff] %v365
    %396 = vst [vmem:[#allocation2 + $0x90] sm:$0xff] %v263
    %397 = vst [vmem:[#allocation2 + $0x98] sm:$0xff] %v265
    %398 = vst [vmem:[#allocation2 + $0xa0] sm:$0xff] %v370
    %399 = vst [vmem:[#allocation2 + $0xa8] sm:$0xff] %v269
    %400 = vst [vmem:[#allocation2 + $0xb0] sm:$0xff] %v271
    %401 = vst [vmem:[#allocation2 + $0xb8] sm:$0xff] %v375
    %v402 = vld [vmem:[#allocation10] sm:$0xff]
    %v403 = vld [vmem:[#allocation10 + $0x8] sm:$0xff]
    %v404 = vld [vmem:[#allocation10 + $0x10] sm:$0xff]
    %v405 = vld [vmem:[#allocation10 + $0x18] sm:$0xff]
    %v406 = vld [vmem:[#allocation10 + $0x20] sm:$0xff]
    %v407 = vld [vmem:[#allocation10 + $0x28] sm:$0xff]
    %v408 = vld [vmem:[#allocation10 + $0x30] sm:$0xff]
    %v409 = vld [vmem:[#allocation10 + $0x38] sm:$0xff]
    %v410 = vld [vmem:[#allocation10 + $0x40] sm:$0xff]
    %v411 = vld [vmem:[#allocation10 + $0x48] sm:$0xff]
    %v412 = vld [vmem:[#allocation10 + $0x50] sm:$0xff]
    %v413 = vld [vmem:[#allocation10 + $0x58] sm:$0xff]
    %v414 = vld [vmem:[#allocation10 + $0x60] sm:$0xff]
    %v415 = vld [vmem:[#allocation10 + $0x68] sm:$0xff]
    %v416 = vld [vmem:[#allocation10 + $0x70] sm:$0xff]
    %v417 = vld [vmem:[#allocation10 + $0x78] sm:$0xff]
    %v418 = vld [vmem:[#allocation10 + $0x80] sm:$0xff]
    %v419 = vld [vmem:[#allocation10 + $0x88] sm:$0xff]
    %v420 = vld [vmem:[#allocation10 + $0x90] sm:$0xff]
    %v421 = vld [vmem:[#allocation10 + $0x98] sm:$0xff]
    %v422 = vld [vmem:[#allocation10 + $0xa0] sm:$0xff]
    %v423 = vld [vmem:[#allocation10 + $0xa8] sm:$0xff]
    %v424 = vld [vmem:[#allocation10 + $0xb0] sm:$0xff]
    %v425 = vld [vmem:[#allocation10 + $0xb8] sm:$0xff]
    %v426 = vld [vmem:[#allocation10 + $0xc0] sm:$0xff]
    %v427 = vld [vmem:[#allocation10 + $0xc8] sm:$0xff]
    %v428 = vld [vmem:[#allocation10 + $0xd0] sm:$0xff]
    %v429 = vld [vmem:[#allocation10 + $0xd8] sm:$0xff]
    %v430 = vld [vmem:[#allocation10 + $0xe0] sm:$0xff]
    %v431 = vld [vmem:[#allocation10 + $0xe8] sm:$0xff]
    %v432 = vld [vmem:[#allocation10 + $0xf0] sm:$0xff]
    %v433 = vld [vmem:[#allocation10 + $0xf8] sm:$0xff]
    %v434 = vld [vmem:[#allocation10 + $0x100] sm:$0xff]
    %v435 = vld [vmem:[#allocation10 + $0x108] sm:$0xff]
    %v436 = vld [vmem:[#allocation10 + $0x110] sm:$0xff]
    %v437 = vld [vmem:[#allocation10 + $0x118] sm:$0xff]
    %v438 = vld [vmem:[#allocation10 + $0x120] sm:$0xff]
    %v439 = vld [vmem:[#allocation10 + $0x128] sm:$0xff]
    %v440 = vld [vmem:[#allocation10 + $0x130] sm:$0xff]
    %v441 = vld [vmem:[#allocation10 + $0x138] sm:$0xff]
    %v442 = vld [vmem:[#allocation10 + $0x140] sm:$0xff]
    %v443 = vld [vmem:[#allocation10 + $0x148] sm:$0xff]
    %v444 = vld [vmem:[#allocation10 + $0x150] sm:$0xff]
    %v445 = vld [vmem:[#allocation10 + $0x158] sm:$0xff]
    %v446 = vld [vmem:[#allocation10 + $0x160] sm:$0xff]
    %v447 = vld [vmem:[#allocation10 + $0x168] sm:$0xff]
    %v448 = vld [vmem:[#allocation10 + $0x170] sm:$0xff]
    %v449 = vld [vmem:[#allocation10 + $0x178] sm:$0xff]
    %v450 = vld [vmem:[%s4] sm:$0x1]
    %v451 = vld [vmem:[#allocation4] sm:$0xff]
    %v452 = vld [vmem:[#allocation2] sm:$0xff]
    %v453 = vld [vmem:[#allocation2 + $0x8] sm:$0xff]
    %v454 = vld [vmem:[#allocation2 + $0x10] sm:$0xff]
    %455 = vmatprep.subr.mxu0 %v448
    %456 = vmatpush1.msra.mxu0 %v447
    %457 = vmatprep.subr.mxu0 %v445
    %458 = vmatpush1.msra.mxu0 %v444
    %459 = vmatprep.subr.mxu0 %v442
    %460 = vmatpush1.msra.mxu0 %v441
    %461 = vmatprep.subr.mxu0 %v439
    %462 = vmatpush1.msra.mxu0 %v438
    %463 = vmatprep.subr.mxu0 %v436
    %464 = vmatpush1.msra.mxu0 %v435
    %465 = vmatprep.subr.mxu0 %v433
    %466 = vmatpush1.msra.mxu0 %v432
    %467 = vmatprep.subr.mxu0 %v430
    %468 = vmatpush1.msra.mxu0 %v429
    %469 = vmatprep.subr.mxu0 %v427
    %470 = vmatpush1.msra.mxu0 %v426
    %471 = vmatprep.subr.mxu0 %v424
    %472 = vmatpush1.msra.mxu0 %v423
    %473 = vmatprep.subr.mxu0 %v421
    %474 = vmatpush1.msra.mxu0 %v420
    %475 = vmatprep.subr.mxu0 %v418
    %476 = vmatpush1.msra.mxu0 %v417
    %477 = vmatprep.subr.mxu0 %v415
    %478 = vmatpush1.msra.mxu0 %v414
    %479 = vmatprep.subr.mxu0 %v412
    %480 = vmatpush1.msra.mxu0 %v411
    %481 = vmatprep.subr.mxu0 %v409
    %482 = vmatpush1.msra.mxu0 %v408
    %483 = vmatprep.subr.mxu0 %v406
    %484 = vmatpush1.msra.mxu0 %v405
    %485 = vmatprep.subr.mxu0 %v403
    %486 = vmatpush1.msra.mxu0 %v402
    %487 = vmatprep.subr.mxu0 0.0
    %488 = vmatpush2.msra.mxu0 0.0
    %489 = vmatprep.subr.mxu0 0.0
    %490 = vmatpush2.msra.mxu0 0.0
    %491 = vmatprep.subr.mxu0 0.0
    %492 = vmatpush2.msra.mxu0 0.0
    %493 = vmatprep.subr.mxu0 0.0
    %494 = vmatpush2.msra.mxu0 0.0
    %495 = vmatprep.subr.mxu0 0.0
    %496 = vmatpush2.msra.mxu0 0.0
    %497 = vmatprep.subr.mxu0 0.0
    %498 = vmatpush2.msra.mxu0 0.0
    %499 = vmatprep.subr.mxu0 0.0
    %500 = vmatpush2.msra.mxu0 0.0
    %501 = vmatprep.subr.mxu0 0.0
    %502 = vmatpush2.msra.mxu0 0.0
    %503 = vmatprep.subr.mxu0 0.0
    %504 = vmatpush2.msra.mxu0 0.0
    %505 = vmatprep.subr.mxu0 0.0
    %506 = vmatpush2.msra.mxu0 0.0
    %507 = vmatprep.subr.mxu0 0.0
    %508 = vmatpush2.msra.mxu0 0.0
    %509 = vmatprep.subr.mxu0 0.0
    %510 = vmatpush2.msra.mxu0 0.0
    %511 = vmatprep.subr.mxu0 0.0
    %512 = vmatpush2.msra.mxu0 0.0
    %513 = vmatprep.subr.mxu0 0.0
    %514 = vmatpush2.msra.mxu0 0.0
    %515 = vmatprep.subr.mxu0 0.0
    %516 = vmatpush2.msra.mxu0 0.0
    %517 = vmatprep.subr.mxu0 0.0
    %518 = vmatpush2.msra.mxu0 0.0
    %519 = vmatprep.mubr.f32.mxu0 0.0
    %520 = vmatmul.mubr.f32.gmra.mxu0 %v451
    %v521 = vpop.f32.mrf.mxu0
    %v522 = vadd.f32 0.0, %v521
    %v523 = vpop.f32.mrf.mxu0
    %v524 = vadd.f32 0.0, %v523
    %525 = vdwg.mxu0
    %526 = vmatprep.subr.mxu0 0.0
    %527 = vmatpush1.msra.mxu0 %v449
    %528 = vmatprep.subr.mxu0 0.0
    %529 = vmatpush1.msra.mxu0 %v446
    %530 = vmatprep.subr.mxu0 0.0
    %531 = vmatpush1.msra.mxu0 %v443
    %532 = vmatprep.subr.mxu0 0.0
    %533 = vmatpush1.msra.mxu0 %v440
    %534 = vmatprep.subr.mxu0 0.0
    %535 = vmatpush1.msra.mxu0 %v437
    %536 = vmatprep.subr.mxu0 0.0
    %537 = vmatpush1.msra.mxu0 %v434
    %538 = vmatprep.subr.mxu0 0.0
    %539 = vmatpush1.msra.mxu0 %v431
    %540 = vmatprep.subr.mxu0 0.0
    %541 = vmatpush1.msra.mxu0 %v428
    %542 = vmatprep.subr.mxu0 0.0
    %543 = vmatpush1.msra.mxu0 %v425
    %544 = vmatprep.subr.mxu0 0.0
    %545 = vmatpush1.msra.mxu0 %v422
    %546 = vmatprep.subr.mxu0 0.0
    %547 = vmatpush1.msra.mxu0 %v419
    %548 = vmatprep.subr.mxu0 0.0
    %549 = vmatpush1.msra.mxu0 %v416
    %550 = vmatprep.subr.mxu0 0.0
    %551 = vmatpush1.msra.mxu0 %v413
    %552 = vmatprep.subr.mxu0 0.0
    %553 = vmatpush1.msra.mxu0 %v410
    %554 = vmatprep.subr.mxu0 0.0
    %555 = vmatpush1.msra.mxu0 %v407
    %556 = vmatprep.subr.mxu0 0.0
    %557 = vmatpush1.msra.mxu0 %v404
    %558 = vmatprep.subr.mxu0 0.0
    %559 = vmatpush2.msra.mxu0 0.0
    %560 = vmatprep.subr.mxu0 0.0
    %561 = vmatpush2.msra.mxu0 0.0
    %562 = vmatprep.subr.mxu0 0.0
    %563 = vmatpush2.msra.mxu0 0.0
    %564 = vmatprep.subr.mxu0 0.0
    %565 = vmatpush2.msra.mxu0 0.0
    %566 = vmatprep.subr.mxu0 0.0
    %567 = vmatpush2.msra.mxu0 0.0
    %568 = vmatprep.subr.mxu0 0.0
    %569 = vmatpush2.msra.mxu0 0.0
    %570 = vmatprep.subr.mxu0 0.0
    %571 = vmatpush2.msra.mxu0 0.0
    %572 = vmatprep.subr.mxu0 0.0
    %573 = vmatpush2.msra.mxu0 0.0
    %574 = vmatprep.subr.mxu0 0.0
    %575 = vmatpush2.msra.mxu0 0.0
    %576 = vmatprep.subr.mxu0 0.0
    %577 = vmatpush2.msra.mxu0 0.0
    %578 = vmatprep.subr.mxu0 0.0
    %579 = vmatpush2.msra.mxu0 0.0
    %580 = vmatprep.subr.mxu0 0.0
    %581 = vmatpush2.msra.mxu0 0.0
    %582 = vmatprep.subr.mxu0 0.0
    %583 = vmatpush2.msra.mxu0 0.0
    %584 = vmatprep.subr.mxu0 0.0
    %585 = vmatpush2.msra.mxu0 0.0
    %586 = vmatprep.subr.mxu0 0.0
    %587 = vmatpush2.msra.mxu0 0.0
    %588 = vmatprep.subr.mxu0 0.0
    %589 = vmatpush2.msra.mxu0 0.0
    %590 = vmatprep.mubr.f32.mxu0 0.0
    %591 = vmatmul.mubr.f32.gmra.mxu0 %v451
    %v592 = vpop.f32.mrf.mxu0
    %v593 = vadd.f32 0.0, %v592
    %v594 = vpop.f32.mrf.mxu0
    %595 = vdwg.mxu0
    %v596 = vadd.f32 %v452, %v522
    %v597 = vxor.u32 %v596, 2147483648
    %v598 = vmul.f32 %v597, 1.442695
    %v599 = vpow.pop %v598
    %v600 = vadd.f32 %v599, 1.0
    %v601 = vrcp.pop %v600
    %v602 = vmul.f32 1.0, %v601
    %v603 = vadd.f32 %v453, %v524
    %v604 = vxor.u32 %v603, 2147483648
    %v605 = vmul.f32 %v604, 1.442695
    %v606 = vpow.pop %v605
    %v607 = vadd.f32 %v606, 1.0
    %v608 = vrcp.pop %v607
    %v609 = vmul.f32 1.0, %v608
    %v611 = vlaneseq
    %v612 = vshrl.u32 %v611, 7
    %v613 = vsub.s32 0, %v612
    %v614 = vrot.slane %v450, %v613
    %v616 = vadd.f32 %v593, %v614
    %v617 = vmul.f32 %v602, %v616
    %v618 = vadd.f32 %v454, %v617
    %v619 = vtanh.pop %v618
    %v620 = vsub.f32 1.0, %v609
    %v621 = vmul.f32 %v620, %v619
    %v622 = vmul.f32 %v609, %v451
    %v623 = vadd.f32 %v621, %v622
    %624 = vst [vmem:[#allocation3] sm:$0xff] %v623
    %s625 = scalar_lea.vmem [#allocation2], 24
    %v626 = vld [vmem:[%s625] sm:$0xff]
    %v627 = vld [vmem:[%s625 + $0x8] sm:$0xff]
    %v628 = vld [vmem:[%s625 + $0x10] sm:$0xff]
    %629 = vmatprep.subr.mxu0 %v448
    %630 = vmatpush1.msra.mxu0 %v447
    %631 = vmatprep.subr.mxu0 %v445
    %632 = vmatpush1.msra.mxu0 %v444
    %633 = vmatprep.subr.mxu0 %v442
    %634 = vmatpush1.msra.mxu0 %v441
    %635 = vmatprep.subr.mxu0 %v439
    %636 = vmatpush1.msra.mxu0 %v438
    %637 = vmatprep.subr.mxu0 %v436
    %638 = vmatpush1.msra.mxu0 %v435
    %639 = vmatprep.subr.mxu0 %v433
    %640 = vmatpush1.msra.mxu0 %v432
    %641 = vmatprep.subr.mxu0 %v430
    %642 = vmatpush1.msra.mxu0 %v429
    %643 = vmatprep.subr.mxu0 %v427
    %644 = vmatpush1.msra.mxu0 %v426
    %645 = vmatprep.subr.mxu0 %v424
    %646 = vmatpush1.msra.mxu0 %v423
    %647 = vmatprep.subr.mxu0 %v421
    %648 = vmatpush1.msra.mxu0 %v420
    %649 = vmatprep.subr.mxu0 %v418
    %650 = vmatpush1.msra.mxu0 %v417
    %651 = vmatprep.subr.mxu0 %v415
    %652 = vmatpush1.msra.mxu0 %v414
    %653 = vmatprep.subr.mxu0 %v412
    %654 = vmatpush1.msra.mxu0 %v411
    %655 = vmatprep.subr.mxu0 %v409
    %656 = vmatpush1.msra.mxu0 %v408
    %657 = vmatprep.subr.mxu0 %v406
    %658 = vmatpush1.msra.mxu0 %v405
    %659 = vmatprep.subr.mxu0 %v403
    %660 = vmatpush1.msra.mxu0 %v402
    %661 = vmatprep.subr.mxu0 0.0
    %662 = vmatpush2.msra.mxu0 0.0
    %663 = vmatprep.subr.mxu0 0.0
    %664 = vmatpush2.msra.mxu0 0.0
    %665 = vmatprep.subr.mxu0 0.0
    %666 = vmatpush2.msra.mxu0 0.0
    %667 = vmatprep.subr.mxu0 0.0
    %668 = vmatpush2.msra.mxu0 0.0
    %669 = vmatprep.subr.mxu0 0.0
    %670 = vmatpush2.msra.mxu0 0.0
    %671 = vmatprep.subr.mxu0 0.0
    %672 = vmatpush2.msra.mxu0 0.0
    %673 = vmatprep.subr.mxu0 0.0
    %674 = vmatpush2.msra.mxu0 0.0
    %675 = vmatprep.subr.mxu0 0.0
    %676 = vmatpush2.msra.mxu0 0.0
    %677 = vmatprep.subr.mxu0 0.0
    %678 = vmatpush2.msra.mxu0 0.0
    %679 = vmatprep.subr.mxu0 0.0
    %680 = vmatpush2.msra.mxu0 0.0
    %681 = vmatprep.subr.mxu0 0.0
    %682 = vmatpush2.msra.mxu0 0.0
    %683 = vmatprep.subr.mxu0 0.0
    %684 = vmatpush2.msra.mxu0 0.0
    %685 = vmatprep.subr.mxu0 0.0
    %686 = vmatpush2.msra.mxu0 0.0
    %687 = vmatprep.subr.mxu0 0.0
    %688 = vmatpush2.msra.mxu0 0.0
    %689 = vmatprep.subr.mxu0 0.0
    %690 = vmatpush2.msra.mxu0 0.0
    %691 = vmatprep.subr.mxu0 0.0
    %692 = vmatpush2.msra.mxu0 0.0
    %693 = vmatprep.mubr.f32.mxu0 0.0
    %694 = vmatmul.mubr.f32.gmra.mxu0 %v623
    %v695 = vpop.f32.mrf.mxu0
    %v696 = vadd.f32 0.0, %v695
    %v697 = vpop.f32.mrf.mxu0
    %v698 = vadd.f32 0.0, %v697
    %699 = vdwg.mxu0
    %700 = vmatprep.subr.mxu0 0.0
    %701 = vmatpush1.msra.mxu0 %v449
    %702 = vmatprep.subr.mxu0 0.0
    %703 = vmatpush1.msra.mxu0 %v446
    %704 = vmatprep.subr.mxu0 0.0
    %705 = vmatpush1.msra.mxu0 %v443
    %706 = vmatprep.subr.mxu0 0.0
    %707 = vmatpush1.msra.mxu0 %v440
    %708 = vmatprep.subr.mxu0 0.0
    %709 = vmatpush1.msra.mxu0 %v437
    %710 = vmatprep.subr.mxu0 0.0
    %711 = vmatpush1.msra.mxu0 %v434
    %712 = vmatprep.subr.mxu0 0.0
    %713 = vmatpush1.msra.mxu0 %v431
    %714 = vmatprep.subr.mxu0 0.0
    %715 = vmatpush1.msra.mxu0 %v428
    %716 = vmatprep.subr.mxu0 0.0
    %717 = vmatpush1.msra.mxu0 %v425
    %718 = vmatprep.subr.mxu0 0.0
    %719 = vmatpush1.msra.mxu0 %v422
    %720 = vmatprep.subr.mxu0 0.0
    %721 = vmatpush1.msra.mxu0 %v419
    %722 = vmatprep.subr.mxu0 0.0
    %723 = vmatpush1.msra.mxu0 %v416
    %724 = vmatprep.subr.mxu0 0.0
    %725 = vmatpush1.msra.mxu0 %v413
    %726 = vmatprep.subr.mxu0 0.0
    %727 = vmatpush1.msra.mxu0 %v410
    %728 = vmatprep.subr.mxu0 0.0
    %729 = vmatpush1.msra.mxu0 %v407
    %730 = vmatprep.subr.mxu0 0.0
    %731 = vmatpush1.msra.mxu0 %v404
    %732 = vmatprep.subr.mxu0 0.0
    %733 = vmatpush2.msra.mxu0 0.0
    %734 = vmatprep.subr.mxu0 0.0
    %735 = vmatpush2.msra.mxu0 0.0
    %736 = vmatprep.subr.mxu0 0.0
    %737 = vmatpush2.msra.mxu0 0.0
    %738 = vmatprep.subr.mxu0 0.0
    %739 = vmatpush2.msra.mxu0 0.0
    %740 = vmatprep.subr.mxu0 0.0
    %741 = vmatpush2.msra.mxu0 0.0
    %742 = vmatprep.subr.mxu0 0.0
    %743 = vmatpush2.msra.mxu0 0.0
    %744 = vmatprep.subr.mxu0 0.0
    %745 = vmatpush2.msra.mxu0 0.0
    %746 = vmatprep.subr.mxu0 0.0
    %747 = vmatpush2.msra.mxu0 0.0
    %748 = vmatprep.subr.mxu0 0.0
    %749 = vmatpush2.msra.mxu0 0.0
    %750 = vmatprep.subr.mxu0 0.0
    %751 = vmatpush2.msra.mxu0 0.0
    %752 = vmatprep.subr.mxu0 0.0
    %753 = vmatpush2.msra.mxu0 0.0
    %754 = vmatprep.subr.mxu0 0.0
    %755 = vmatpush2.msra.mxu0 0.0
    %756 = vmatprep.subr.mxu0 0.0
    %757 = vmatpush2.msra.mxu0 0.0
    %758 = vmatprep.subr.mxu0 0.0
    %759 = vmatpush2.msra.mxu0 0.0
    %760 = vmatprep.subr.mxu0 0.0
    %761 = vmatpush2.msra.mxu0 0.0
    %762 = vmatprep.subr.mxu0 0.0
    %763 = vmatpush2.msra.mxu0 0.0
    %764 = vmatprep.mubr.f32.mxu0 0.0
    %765 = vmatmul.mubr.f32.gmra.mxu0 %v623
    %v766 = vpop.f32.mrf.mxu0
    %v767 = vadd.f32 0.0, %v766
    %v768 = vpop.f32.mrf.mxu0
    %769 = vdwg.mxu0
    %v770 = vadd.f32 %v626, %v696
    %v771 = vxor.u32 %v770, 2147483648
    %v772 = vmul.f32 %v771, 1.442695
    %v773 = vpow.pop %v772
    %v774 = vadd.f32 %v773, 1.0
    %v775 = vrcp.pop %v774
    %v776 = vmul.f32 1.0, %v775
    %v777 = vadd.f32 %v627, %v698
    %v778 = vxor.u32 %v777, 2147483648
    %v779 = vmul.f32 %v778, 1.442695
    %v780 = vpow.pop %v779
    %v781 = vadd.f32 %v780, 1.0
    %v782 = vrcp.pop %v781
    %v783 = vmul.f32 1.0, %v782
    %v784 = vadd.f32 %v767, %v614
    %v785 = vmul.f32 %v776, %v784
    %v786 = vadd.f32 %v628, %v785
    %v787 = vtanh.pop %v786
    %v788 = vsub.f32 1.0, %v783
    %v789 = vmul.f32 %v788, %v787
    %v790 = vmul.f32 %v783, %v623
    %v791 = vadd.f32 %v789, %v790
    %s792 = scalar_lea.vmem [#allocation3], 8
    %793 = vst [vmem:[%s792] sm:$0xff] %v791
    %s794 = scalar_lea.vmem [#allocation2], 48
    %v795 = vld [vmem:[%s794] sm:$0xff]
    %v796 = vld [vmem:[%s794 + $0x8] sm:$0xff]
    %v797 = vld [vmem:[%s794 + $0x10] sm:$0xff]
    %798 = vmatprep.subr.mxu0 %v448
    %799 = vmatpush1.msra.mxu0 %v447
    %800 = vmatprep.subr.mxu0 %v445
    %801 = vmatpush1.msra.mxu0 %v444
    %802 = vmatprep.subr.mxu0 %v442
    %803 = vmatpush1.msra.mxu0 %v441
    %804 = vmatprep.subr.mxu0 %v439
    %805 = vmatpush1.msra.mxu0 %v438
    %806 = vmatprep.subr.mxu0 %v436
    %807 = vmatpush1.msra.mxu0 %v435
    %808 = vmatprep.subr.mxu0 %v433
    %809 = vmatpush1.msra.mxu0 %v432
    %810 = vmatprep.subr.mxu0 %v430
    %811 = vmatpush1.msra.mxu0 %v429
    %812 = vmatprep.subr.mxu0 %v427
    %813 = vmatpush1.msra.mxu0 %v426
    %814 = vmatprep.subr.mxu0 %v424
    %815 = vmatpush1.msra.mxu0 %v423
    %816 = vmatprep.subr.mxu0 %v421
    %817 = vmatpush1.msra.mxu0 %v420
    %818 = vmatprep.subr.mxu0 %v418
    %819 = vmatpush1.msra.mxu0 %v417
    %820 = vmatprep.subr.mxu0 %v415
    %821 = vmatpush1.msra.mxu0 %v414
    %822 = vmatprep.subr.mxu0 %v412
    %823 = vmatpush1.msra.mxu0 %v411
    %824 = vmatprep.subr.mxu0 %v409
    %825 = vmatpush1.msra.mxu0 %v408
    %826 = vmatprep.subr.mxu0 %v406
    %827 = vmatpush1.msra.mxu0 %v405
    %828 = vmatprep.subr.mxu0 %v403
    %829 = vmatpush1.msra.mxu0 %v402
    %830 = vmatprep.subr.mxu0 0.0
    %831 = vmatpush2.msra.mxu0 0.0
    %832 = vmatprep.subr.mxu0 0.0
    %833 = vmatpush2.msra.mxu0 0.0
    %834 = vmatprep.subr.mxu0 0.0
    %835 = vmatpush2.msra.mxu0 0.0
    %836 = vmatprep.subr.mxu0 0.0
    %837 = vmatpush2.msra.mxu0 0.0
    %838 = vmatprep.subr.mxu0 0.0
    %839 = vmatpush2.msra.mxu0 0.0
    %840 = vmatprep.subr.mxu0 0.0
    %841 = vmatpush2.msra.mxu0 0.0
    %842 = vmatprep.subr.mxu0 0.0
    %843 = vmatpush2.msra.mxu0 0.0
    %844 = vmatprep.subr.mxu0 0.0
    %845 = vmatpush2.msra.mxu0 0.0
    %846 = vmatprep.subr.mxu0 0.0
    %847 = vmatpush2.msra.mxu0 0.0
    %848 = vmatprep.subr.mxu0 0.0
    %849 = vmatpush2.msra.mxu0 0.0
    %850 = vmatprep.subr.mxu0 0.0
    %851 = vmatpush2.msra.mxu0 0.0
    %852 = vmatprep.subr.mxu0 0.0
    %853 = vmatpush2.msra.mxu0 0.0
    %854 = vmatprep.subr.mxu0 0.0
    %855 = vmatpush2.msra.mxu0 0.0
    %856 = vmatprep.subr.mxu0 0.0
    %857 = vmatpush2.msra.mxu0 0.0
    %858 = vmatprep.subr.mxu0 0.0
    %859 = vmatpush2.msra.mxu0 0.0
    %860 = vmatprep.subr.mxu0 0.0
    %861 = vmatpush2.msra.mxu0 0.0
    %862 = vmatprep.mubr.f32.mxu0 0.0
    %863 = vmatmul.mubr.f32.gmra.mxu0 %v791
    %v864 = vpop.f32.mrf.mxu0
    %v865 = vadd.f32 0.0, %v864
    %v866 = vpop.f32.mrf.mxu0
    %v867 = vadd.f32 0.0, %v866
    %868 = vdwg.mxu0
    %869 = vmatprep.subr.mxu0 0.0
    %870 = vmatpush1.msra.mxu0 %v449
    %871 = vmatprep.subr.mxu0 0.0
    %872 = vmatpush1.msra.mxu0 %v446
    %873 = vmatprep.subr.mxu0 0.0
    %874 = vmatpush1.msra.mxu0 %v443
    %875 = vmatprep.subr.mxu0 0.0
    %876 = vmatpush1.msra.mxu0 %v440
    %877 = vmatprep.subr.mxu0 0.0
    %878 = vmatpush1.msra.mxu0 %v437
    %879 = vmatprep.subr.mxu0 0.0
    %880 = vmatpush1.msra.mxu0 %v434
    %881 = vmatprep.subr.mxu0 0.0
    %882 = vmatpush1.msra.mxu0 %v431
    %883 = vmatprep.subr.mxu0 0.0
    %884 = vmatpush1.msra.mxu0 %v428
    %885 = vmatprep.subr.mxu0 0.0
    %886 = vmatpush1.msra.mxu0 %v425
    %887 = vmatprep.subr.mxu0 0.0
    %888 = vmatpush1.msra.mxu0 %v422
    %889 = vmatprep.subr.mxu0 0.0
    %890 = vmatpush1.msra.mxu0 %v419
    %891 = vmatprep.subr.mxu0 0.0
    %892 = vmatpush1.msra.mxu0 %v416
    %893 = vmatprep.subr.mxu0 0.0
    %894 = vmatpush1.msra.mxu0 %v413
    %895 = vmatprep.subr.mxu0 0.0
    %896 = vmatpush1.msra.mxu0 %v410
    %897 = vmatprep.subr.mxu0 0.0
    %898 = vmatpush1.msra.mxu0 %v407
    %899 = vmatprep.subr.mxu0 0.0
    %900 = vmatpush1.msra.mxu0 %v404
    %901 = vmatprep.subr.mxu0 0.0
    %902 = vmatpush2.msra.mxu0 0.0
    %903 = vmatprep.subr.mxu0 0.0
    %904 = vmatpush2.msra.mxu0 0.0
    %905 = vmatprep.subr.mxu0 0.0
    %906 = vmatpush2.msra.mxu0 0.0
    %907 = vmatprep.subr.mxu0 0.0
    %908 = vmatpush2.msra.mxu0 0.0
    %909 = vmatprep.subr.mxu0 0.0
    %910 = vmatpush2.msra.mxu0 0.0
    %911 = vmatprep.subr.mxu0 0.0
    %912 = vmatpush2.msra.mxu0 0.0
    %913 = vmatprep.subr.mxu0 0.0
    %914 = vmatpush2.msra.mxu0 0.0
    %915 = vmatprep.subr.mxu0 0.0
    %916 = vmatpush2.msra.mxu0 0.0
    %917 = vmatprep.subr.mxu0 0.0
    %918 = vmatpush2.msra.mxu0 0.0
    %919 = vmatprep.subr.mxu0 0.0
    %920 = vmatpush2.msra.mxu0 0.0
    %921 = vmatprep.subr.mxu0 0.0
    %922 = vmatpush2.msra.mxu0 0.0
    %923 = vmatprep.subr.mxu0 0.0
    %924 = vmatpush2.msra.mxu0 0.0
    %925 = vmatprep.subr.mxu0 0.0
    %926 = vmatpush2.msra.mxu0 0.0
    %927 = vmatprep.subr.mxu0 0.0
    %928 = vmatpush2.msra.mxu0 0.0
    %929 = vmatprep.subr.mxu0 0.0
    %930 = vmatpush2.msra.mxu0 0.0
    %931 = vmatprep.subr.mxu0 0.0
    %932 = vmatpush2.msra.mxu0 0.0
    %933 = vmatprep.mubr.f32.mxu0 0.0
    %934 = vmatmul.mubr.f32.gmra.mxu0 %v791
    %v935 = vpop.f32.mrf.mxu0
    %v936 = vadd.f32 0.0, %v935
    %v937 = vpop.f32.mrf.mxu0
    %938 = vdwg.mxu0
    %v939 = vadd.f32 %v795, %v865
    %v940 = vxor.u32 %v939, 2147483648
    %v941 = vmul.f32 %v940, 1.442695
    %v942 = vpow.pop %v941
    %v943 = vadd.f32 %v942, 1.0
    %v944 = vrcp.pop %v943
    %v945 = vmul.f32 1.0, %v944
    %v946 = vadd.f32 %v796, %v867
    %v947 = vxor.u32 %v946, 2147483648
    %v948 = vmul.f32 %v947, 1.442695
    %v949 = vpow.pop %v948
    %v950 = vadd.f32 %v949, 1.0
    %v951 = vrcp.pop %v950
    %v952 = vmul.f32 1.0, %v951
    %v953 = vadd.f32 %v936, %v614
    %v954 = vmul.f32 %v945, %v953
    %v955 = vadd.f32 %v797, %v954
    %v956 = vtanh.pop %v955
    %v957 = vsub.f32 1.0, %v952
    %v958 = vmul.f32 %v957, %v956
    %v959 = vmul.f32 %v952, %v791
    %v960 = vadd.f32 %v958, %v959
    %s961 = scalar_lea.vmem [#allocation3], 16
    %962 = vst [vmem:[%s961] sm:$0xff] %v960
    %s963 = scalar_lea.vmem [#allocation2], 72
    %v964 = vld [vmem:[%s963] sm:$0xff]
    %v965 = vld [vmem:[%s963 + $0x8] sm:$0xff]
    %v966 = vld [vmem:[%s963 + $0x10] sm:$0xff]
    %967 = vmatprep.subr.mxu0 %v448
    %968 = vmatpush1.msra.mxu0 %v447
    %969 = vmatprep.subr.mxu0 %v445
    %970 = vmatpush1.msra.mxu0 %v444
    %971 = vmatprep.subr.mxu0 %v442
    %972 = vmatpush1.msra.mxu0 %v441
    %973 = vmatprep.subr.mxu0 %v439
    %974 = vmatpush1.msra.mxu0 %v438
    %975 = vmatprep.subr.mxu0 %v436
    %976 = vmatpush1.msra.mxu0 %v435
    %977 = vmatprep.subr.mxu0 %v433
    %978 = vmatpush1.msra.mxu0 %v432
    %979 = vmatprep.subr.mxu0 %v430
    %980 = vmatpush1.msra.mxu0 %v429
    %981 = vmatprep.subr.mxu0 %v427
    %982 = vmatpush1.msra.mxu0 %v426
    %983 = vmatprep.subr.mxu0 %v424
    %984 = vmatpush1.msra.mxu0 %v423
    %985 = vmatprep.subr.mxu0 %v421
    %986 = vmatpush1.msra.mxu0 %v420
    %987 = vmatprep.subr.mxu0 %v418
    %988 = vmatpush1.msra.mxu0 %v417
    %989 = vmatprep.subr.mxu0 %v415
    %990 = vmatpush1.msra.mxu0 %v414
    %991 = vmatprep.subr.mxu0 %v412
    %992 = vmatpush1.msra.mxu0 %v411
    %993 = vmatprep.subr.mxu0 %v409
    %994 = vmatpush1.msra.mxu0 %v408
    %995 = vmatprep.subr.mxu0 %v406
    %996 = vmatpush1.msra.mxu0 %v405
    %997 = vmatprep.subr.mxu0 %v403
    %998 = vmatpush1.msra.mxu0 %v402
    %999 = vmatprep.subr.mxu0 0.0
    %1000 = vmatpush2.msra.mxu0 0.0
    %1001 = vmatprep.subr.mxu0 0.0
    %1002 = vmatpush2.msra.mxu0 0.0
    %1003 = vmatprep.subr.mxu0 0.0
    %1004 = vmatpush2.msra.mxu0 0.0
    %1005 = vmatprep.subr.mxu0 0.0
    %1006 = vmatpush2.msra.mxu0 0.0
    %1007 = vmatprep.subr.mxu0 0.0
    %1008 = vmatpush2.msra.mxu0 0.0
    %1009 = vmatprep.subr.mxu0 0.0
    %1010 = vmatpush2.msra.mxu0 0.0
    %1011 = vmatprep.subr.mxu0 0.0
    %1012 = vmatpush2.msra.mxu0 0.0
    %1013 = vmatprep.subr.mxu0 0.0
    %1014 = vmatpush2.msra.mxu0 0.0
    %1015 = vmatprep.subr.mxu0 0.0
    %1016 = vmatpush2.msra.mxu0 0.0
    %1017 = vmatprep.subr.mxu0 0.0
    %1018 = vmatpush2.msra.mxu0 0.0
    %1019 = vmatprep.subr.mxu0 0.0
    %1020 = vmatpush2.msra.mxu0 0.0
    %1021 = vmatprep.subr.mxu0 0.0
    %1022 = vmatpush2.msra.mxu0 0.0
    %1023 = vmatprep.subr.mxu0 0.0
    %1024 = vmatpush2.msra.mxu0 0.0
    %1025 = vmatprep.subr.mxu0 0.0
    %1026 = vmatpush2.msra.mxu0 0.0
    %1027 = vmatprep.subr.mxu0 0.0
    %1028 = vmatpush2.msra.mxu0 0.0
    %1029 = vmatprep.subr.mxu0 0.0
    %1030 = vmatpush2.msra.mxu0 0.0
    %1031 = vmatprep.mubr.f32.mxu0 0.0
    %1032 = vmatmul.mubr.f32.gmra.mxu0 %v960
    %v1033 = vpop.f32.mrf.mxu0
    %v1034 = vadd.f32 0.0, %v1033
    %v1035 = vpop.f32.mrf.mxu0
    %v1036 = vadd.f32 0.0, %v1035
    %1037 = vdwg.mxu0
    %1038 = vmatprep.subr.mxu0 0.0
    %1039 = vmatpush1.msra.mxu0 %v449
    %1040 = vmatprep.subr.mxu0 0.0
    %1041 = vmatpush1.msra.mxu0 %v446
    %1042 = vmatprep.subr.mxu0 0.0
    %1043 = vmatpush1.msra.mxu0 %v443
    %1044 = vmatprep.subr.mxu0 0.0
    %1045 = vmatpush1.msra.mxu0 %v440
    %1046 = vmatprep.subr.mxu0 0.0
    %1047 = vmatpush1.msra.mxu0 %v437
    %1048 = vmatprep.subr.mxu0 0.0
    %1049 = vmatpush1.msra.mxu0 %v434
    %1050 = vmatprep.subr.mxu0 0.0
    %1051 = vmatpush1.msra.mxu0 %v431
    %1052 = vmatprep.subr.mxu0 0.0
    %1053 = vmatpush1.msra.mxu0 %v428
    %1054 = vmatprep.subr.mxu0 0.0
    %1055 = vmatpush1.msra.mxu0 %v425
    %1056 = vmatprep.subr.mxu0 0.0
    %1057 = vmatpush1.msra.mxu0 %v422
    %1058 = vmatprep.subr.mxu0 0.0
    %1059 = vmatpush1.msra.mxu0 %v419
    %1060 = vmatprep.subr.mxu0 0.0
    %1061 = vmatpush1.msra.mxu0 %v416
    %1062 = vmatprep.subr.mxu0 0.0
    %1063 = vmatpush1.msra.mxu0 %v413
    %1064 = vmatprep.subr.mxu0 0.0
    %1065 = vmatpush1.msra.mxu0 %v410
    %1066 = vmatprep.subr.mxu0 0.0
    %1067 = vmatpush1.msra.mxu0 %v407
    %1068 = vmatprep.subr.mxu0 0.0
    %1069 = vmatpush1.msra.mxu0 %v404
    %1070 = vmatprep.subr.mxu0 0.0
    %1071 = vmatpush2.msra.mxu0 0.0
    %1072 = vmatprep.subr.mxu0 0.0
    %1073 = vmatpush2.msra.mxu0 0.0
    %1074 = vmatprep.subr.mxu0 0.0
    %1075 = vmatpush2.msra.mxu0 0.0
    %1076 = vmatprep.subr.mxu0 0.0
    %1077 = vmatpush2.msra.mxu0 0.0
    %1078 = vmatprep.subr.mxu0 0.0
    %1079 = vmatpush2.msra.mxu0 0.0
    %1080 = vmatprep.subr.mxu0 0.0
    %1081 = vmatpush2.msra.mxu0 0.0
    %1082 = vmatprep.subr.mxu0 0.0
    %1083 = vmatpush2.msra.mxu0 0.0
    %1084 = vmatprep.subr.mxu0 0.0
    %1085 = vmatpush2.msra.mxu0 0.0
    %1086 = vmatprep.subr.mxu0 0.0
    %1087 = vmatpush2.msra.mxu0 0.0
    %1088 = vmatprep.subr.mxu0 0.0
    %1089 = vmatpush2.msra.mxu0 0.0
    %1090 = vmatprep.subr.mxu0 0.0
    %1091 = vmatpush2.msra.mxu0 0.0
    %1092 = vmatprep.subr.mxu0 0.0
    %1093 = vmatpush2.msra.mxu0 0.0
    %1094 = vmatprep.subr.mxu0 0.0
    %1095 = vmatpush2.msra.mxu0 0.0
    %1096 = vmatprep.subr.mxu0 0.0
    %1097 = vmatpush2.msra.mxu0 0.0
    %1098 = vmatprep.subr.mxu0 0.0
    %1099 = vmatpush2.msra.mxu0 0.0
    %1100 = vmatprep.subr.mxu0 0.0
    %1101 = vmatpush2.msra.mxu0 0.0
    %1102 = vmatprep.mubr.f32.mxu0 0.0
    %1103 = vmatmul.mubr.f32.gmra.mxu0 %v960
    %v1104 = vpop.f32.mrf.mxu0
    %v1105 = vadd.f32 0.0, %v1104
    %v1106 = vpop.f32.mrf.mxu0
    %1107 = vdwg.mxu0
    %v1108 = vadd.f32 %v964, %v1034
    %v1109 = vxor.u32 %v1108, 2147483648
    %v1110 = vmul.f32 %v1109, 1.442695
    %v1111 = vpow.pop %v1110
    %v1112 = vadd.f32 %v1111, 1.0
    %v1113 = vrcp.pop %v1112
    %v1114 = vmul.f32 1.0, %v1113
    %v1115 = vadd.f32 %v965, %v1036
    %v1116 = vxor.u32 %v1115, 2147483648
    %v1117 = vmul.f32 %v1116, 1.442695
    %v1118 = vpow.pop %v1117
    %v1119 = vadd.f32 %v1118, 1.0
    %v1120 = vrcp.pop %v1119
    %v1121 = vmul.f32 1.0, %v1120
    %v1122 = vadd.f32 %v1105, %v614
    %v1123 = vmul.f32 %v1114, %v1122
    %v1124 = vadd.f32 %v966, %v1123
    %v1125 = vtanh.pop %v1124
    %v1126 = vsub.f32 1.0, %v1121
    %v1127 = vmul.f32 %v1126, %v1125
    %v1128 = vmul.f32 %v1121, %v960
    %v1129 = vadd.f32 %v1127, %v1128
    %s1130 = scalar_lea.vmem [#allocation3], 24
    %1131 = vst [vmem:[%s1130] sm:$0xff] %v1129
    %s1132 = scalar_lea.vmem [#allocation2], 96
    %v1133 = vld [vmem:[%s1132] sm:$0xff]
    %v1134 = vld [vmem:[%s1132 + $0x8] sm:$0xff]
    %v1135 = vld [vmem:[%s1132 + $0x10] sm:$0xff]
    %1136 = vmatprep.subr.mxu0 %v448
    %1137 = vmatpush1.msra.mxu0 %v447
    %1138 = vmatprep.subr.mxu0 %v445
    %1139 = vmatpush1.msra.mxu0 %v444
    %1140 = vmatprep.subr.mxu0 %v442
    %1141 = vmatpush1.msra.mxu0 %v441
    %1142 = vmatprep.subr.mxu0 %v439
    %1143 = vmatpush1.msra.mxu0 %v438
    %1144 = vmatprep.subr.mxu0 %v436
    %1145 = vmatpush1.msra.mxu0 %v435
    %1146 = vmatprep.subr.mxu0 %v433
    %1147 = vmatpush1.msra.mxu0 %v432
    %1148 = vmatprep.subr.mxu0 %v430
    %1149 = vmatpush1.msra.mxu0 %v429
    %1150 = vmatprep.subr.mxu0 %v427
    %1151 = vmatpush1.msra.mxu0 %v426
    %1152 = vmatprep.subr.mxu0 %v424
    %1153 = vmatpush1.msra.mxu0 %v423
    %1154 = vmatprep.subr.mxu0 %v421
    %1155 = vmatpush1.msra.mxu0 %v420
    %1156 = vmatprep.subr.mxu0 %v418
    %1157 = vmatpush1.msra.mxu0 %v417
    %1158 = vmatprep.subr.mxu0 %v415
    %1159 = vmatpush1.msra.mxu0 %v414
    %1160 = vmatprep.subr.mxu0 %v412
    %1161 = vmatpush1.msra.mxu0 %v411
    %1162 = vmatprep.subr.mxu0 %v409
    %1163 = vmatpush1.msra.mxu0 %v408
    %1164 = vmatprep.subr.mxu0 %v406
    %1165 = vmatpush1.msra.mxu0 %v405
    %1166 = vmatprep.subr.mxu0 %v403
    %1167 = vmatpush1.msra.mxu0 %v402
    %1168 = vmatprep.subr.mxu0 0.0
    %1169 = vmatpush2.msra.mxu0 0.0
    %1170 = vmatprep.subr.mxu0 0.0
    %1171 = vmatpush2.msra.mxu0 0.0
    %1172 = vmatprep.subr.mxu0 0.0
    %1173 = vmatpush2.msra.mxu0 0.0
    %1174 = vmatprep.subr.mxu0 0.0
    %1175 = vmatpush2.msra.mxu0 0.0
    %1176 = vmatprep.subr.mxu0 0.0
    %1177 = vmatpush2.msra.mxu0 0.0
    %1178 = vmatprep.subr.mxu0 0.0
    %1179 = vmatpush2.msra.mxu0 0.0
    %1180 = vmatprep.subr.mxu0 0.0
    %1181 = vmatpush2.msra.mxu0 0.0
    %1182 = vmatprep.subr.mxu0 0.0
    %1183 = vmatpush2.msra.mxu0 0.0
    %1184 = vmatprep.subr.mxu0 0.0
    %1185 = vmatpush2.msra.mxu0 0.0
    %1186 = vmatprep.subr.mxu0 0.0
    %1187 = vmatpush2.msra.mxu0 0.0
    %1188 = vmatprep.subr.mxu0 0.0
    %1189 = vmatpush2.msra.mxu0 0.0
    %1190 = vmatprep.subr.mxu0 0.0
    %1191 = vmatpush2.msra.mxu0 0.0
    %1192 = vmatprep.subr.mxu0 0.0
    %1193 = vmatpush2.msra.mxu0 0.0
    %1194 = vmatprep.subr.mxu0 0.0
    %1195 = vmatpush2.msra.mxu0 0.0
    %1196 = vmatprep.subr.mxu0 0.0
    %1197 = vmatpush2.msra.mxu0 0.0
    %1198 = vmatprep.subr.mxu0 0.0
    %1199 = vmatpush2.msra.mxu0 0.0
    %1200 = vmatprep.mubr.f32.mxu0 0.0
    %1201 = vmatmul.mubr.f32.gmra.mxu0 %v1129
    %v1202 = vpop.f32.mrf.mxu0
    %v1203 = vadd.f32 0.0, %v1202
    %v1204 = vpop.f32.mrf.mxu0
    %v1205 = vadd.f32 0.0, %v1204
    %1206 = vdwg.mxu0
    %1207 = vmatprep.subr.mxu0 0.0
    %1208 = vmatpush1.msra.mxu0 %v449
    %1209 = vmatprep.subr.mxu0 0.0
    %1210 = vmatpush1.msra.mxu0 %v446
    %1211 = vmatprep.subr.mxu0 0.0
    %1212 = vmatpush1.msra.mxu0 %v443
    %1213 = vmatprep.subr.mxu0 0.0
    %1214 = vmatpush1.msra.mxu0 %v440
    %1215 = vmatprep.subr.mxu0 0.0
    %1216 = vmatpush1.msra.mxu0 %v437
    %1217 = vmatprep.subr.mxu0 0.0
    %1218 = vmatpush1.msra.mxu0 %v434
    %1219 = vmatprep.subr.mxu0 0.0
    %1220 = vmatpush1.msra.mxu0 %v431
    %1221 = vmatprep.subr.mxu0 0.0
    %1222 = vmatpush1.msra.mxu0 %v428
    %1223 = vmatprep.subr.mxu0 0.0
    %1224 = vmatpush1.msra.mxu0 %v425
    %1225 = vmatprep.subr.mxu0 0.0
    %1226 = vmatpush1.msra.mxu0 %v422
    %1227 = vmatprep.subr.mxu0 0.0
    %1228 = vmatpush1.msra.mxu0 %v419
    %1229 = vmatprep.subr.mxu0 0.0
    %1230 = vmatpush1.msra.mxu0 %v416
    %1231 = vmatprep.subr.mxu0 0.0
    %1232 = vmatpush1.msra.mxu0 %v413
    %1233 = vmatprep.subr.mxu0 0.0
    %1234 = vmatpush1.msra.mxu0 %v410
    %1235 = vmatprep.subr.mxu0 0.0
    %1236 = vmatpush1.msra.mxu0 %v407
    %1237 = vmatprep.subr.mxu0 0.0
    %1238 = vmatpush1.msra.mxu0 %v404
    %1239 = vmatprep.subr.mxu0 0.0
    %1240 = vmatpush2.msra.mxu0 0.0
    %1241 = vmatprep.subr.mxu0 0.0
    %1242 = vmatpush2.msra.mxu0 0.0
    %1243 = vmatprep.subr.mxu0 0.0
    %1244 = vmatpush2.msra.mxu0 0.0
    %1245 = vmatprep.subr.mxu0 0.0
    %1246 = vmatpush2.msra.mxu0 0.0
    %1247 = vmatprep.subr.mxu0 0.0
    %1248 = vmatpush2.msra.mxu0 0.0
    %1249 = vmatprep.subr.mxu0 0.0
    %1250 = vmatpush2.msra.mxu0 0.0
    %1251 = vmatprep.subr.mxu0 0.0
    %1252 = vmatpush2.msra.mxu0 0.0
    %1253 = vmatprep.subr.mxu0 0.0
    %1254 = vmatpush2.msra.mxu0 0.0
    %1255 = vmatprep.subr.mxu0 0.0
    %1256 = vmatpush2.msra.mxu0 0.0
    %1257 = vmatprep.subr.mxu0 0.0
    %1258 = vmatpush2.msra.mxu0 0.0
    %1259 = vmatprep.subr.mxu0 0.0
    %1260 = vmatpush2.msra.mxu0 0.0
    %1261 = vmatprep.subr.mxu0 0.0
    %1262 = vmatpush2.msra.mxu0 0.0
    %1263 = vmatprep.subr.mxu0 0.0
    %1264 = vmatpush2.msra.mxu0 0.0
    %1265 = vmatprep.subr.mxu0 0.0
    %1266 = vmatpush2.msra.mxu0 0.0
    %1267 = vmatprep.subr.mxu0 0.0
    %1268 = vmatpush2.msra.mxu0 0.0
    %1269 = vmatprep.subr.mxu0 0.0
    %1270 = vmatpush2.msra.mxu0 0.0
    %1271 = vmatprep.mubr.f32.mxu0 0.0
    %1272 = vmatmul.mubr.f32.gmra.mxu0 %v1129
    %v1273 = vpop.f32.mrf.mxu0
    %v1274 = vadd.f32 0.0, %v1273
    %v1275 = vpop.f32.mrf.mxu0
    %1276 = vdwg.mxu0
    %v1277 = vadd.f32 %v1133, %v1203
    %v1278 = vxor.u32 %v1277, 2147483648
    %v1279 = vmul.f32 %v1278, 1.442695
    %v1280 = vpow.pop %v1279
    %v1281 = vadd.f32 %v1280, 1.0
    %v1282 = vrcp.pop %v1281
    %v1283 = vmul.f32 1.0, %v1282
    %v1284 = vadd.f32 %v1134, %v1205
    %v1285 = vxor.u32 %v1284, 2147483648
    %v1286 = vmul.f32 %v1285, 1.442695
    %v1287 = vpow.pop %v1286
    %v1288 = vadd.f32 %v1287, 1.0
    %v1289 = vrcp.pop %v1288
    %v1290 = vmul.f32 1.0, %v1289
    %v1291 = vadd.f32 %v1274, %v614
    %v1292 = vmul.f32 %v1283, %v1291
    %v1293 = vadd.f32 %v1135, %v1292
    %v1294 = vtanh.pop %v1293
    %v1295 = vsub.f32 1.0, %v1290
    %v1296 = vmul.f32 %v1295, %v1294
    %v1297 = vmul.f32 %v1290, %v1129
    %v1298 = vadd.f32 %v1296, %v1297
    %s1299 = scalar_lea.vmem [#allocation3], 32
    %1300 = vst [vmem:[%s1299] sm:$0xff] %v1298
    %s1301 = scalar_lea.vmem [#allocation2], 120
    %v1302 = vld [vmem:[%s1301] sm:$0xff]
    %v1303 = vld [vmem:[%s1301 + $0x8] sm:$0xff]
    %v1304 = vld [vmem:[%s1301 + $0x10] sm:$0xff]
    %1305 = vmatprep.subr.mxu0 %v448
    %1306 = vmatpush1.msra.mxu0 %v447
    %1307 = vmatprep.subr.mxu0 %v445
    %1308 = vmatpush1.msra.mxu0 %v444
    %1309 = vmatprep.subr.mxu0 %v442
    %1310 = vmatpush1.msra.mxu0 %v441
    %1311 = vmatprep.subr.mxu0 %v439
    %1312 = vmatpush1.msra.mxu0 %v438
    %1313 = vmatprep.subr.mxu0 %v436
    %1314 = vmatpush1.msra.mxu0 %v435
    %1315 = vmatprep.subr.mxu0 %v433
    %1316 = vmatpush1.msra.mxu0 %v432
    %1317 = vmatprep.subr.mxu0 %v430
    %1318 = vmatpush1.msra.mxu0 %v429
    %1319 = vmatprep.subr.mxu0 %v427
    %1320 = vmatpush1.msra.mxu0 %v426
    %1321 = vmatprep.subr.mxu0 %v424
    %1322 = vmatpush1.msra.mxu0 %v423
    %1323 = vmatprep.subr.mxu0 %v421
    %1324 = vmatpush1.msra.mxu0 %v420
    %1325 = vmatprep.subr.mxu0 %v418
    %1326 = vmatpush1.msra.mxu0 %v417
    %1327 = vmatprep.subr.mxu0 %v415
    %1328 = vmatpush1.msra.mxu0 %v414
    %1329 = vmatprep.subr.mxu0 %v412
    %1330 = vmatpush1.msra.mxu0 %v411
    %1331 = vmatprep.subr.mxu0 %v409
    %1332 = vmatpush1.msra.mxu0 %v408
    %1333 = vmatprep.subr.mxu0 %v406
    %1334 = vmatpush1.msra.mxu0 %v405
    %1335 = vmatprep.subr.mxu0 %v403
    %1336 = vmatpush1.msra.mxu0 %v402
    %1337 = vmatprep.subr.mxu0 0.0
    %1338 = vmatpush2.msra.mxu0 0.0
    %1339 = vmatprep.subr.mxu0 0.0
    %1340 = vmatpush2.msra.mxu0 0.0
    %1341 = vmatprep.subr.mxu0 0.0
    %1342 = vmatpush2.msra.mxu0 0.0
    %1343 = vmatprep.subr.mxu0 0.0
    %1344 = vmatpush2.msra.mxu0 0.0
    %1345 = vmatprep.subr.mxu0 0.0
    %1346 = vmatpush2.msra.mxu0 0.0
    %1347 = vmatprep.subr.mxu0 0.0
    %1348 = vmatpush2.msra.mxu0 0.0
    %1349 = vmatprep.subr.mxu0 0.0
    %1350 = vmatpush2.msra.mxu0 0.0
    %1351 = vmatprep.subr.mxu0 0.0
    %1352 = vmatpush2.msra.mxu0 0.0
    %1353 = vmatprep.subr.mxu0 0.0
    %1354 = vmatpush2.msra.mxu0 0.0
    %1355 = vmatprep.subr.mxu0 0.0
    %1356 = vmatpush2.msra.mxu0 0.0
    %1357 = vmatprep.subr.mxu0 0.0
    %1358 = vmatpush2.msra.mxu0 0.0
    %1359 = vmatprep.subr.mxu0 0.0
    %1360 = vmatpush2.msra.mxu0 0.0
    %1361 = vmatprep.subr.mxu0 0.0
    %1362 = vmatpush2.msra.mxu0 0.0
    %1363 = vmatprep.subr.mxu0 0.0
    %1364 = vmatpush2.msra.mxu0 0.0
    %1365 = vmatprep.subr.mxu0 0.0
    %1366 = vmatpush2.msra.mxu0 0.0
    %1367 = vmatprep.subr.mxu0 0.0
    %1368 = vmatpush2.msra.mxu0 0.0
    %1369 = vmatprep.mubr.f32.mxu0 0.0
    %1370 = vmatmul.mubr.f32.gmra.mxu0 %v1298
    %v1371 = vpop.f32.mrf.mxu0
    %v1372 = vadd.f32 0.0, %v1371
    %v1373 = vpop.f32.mrf.mxu0
    %v1374 = vadd.f32 0.0, %v1373
    %1375 = vdwg.mxu0
    %1376 = vmatprep.subr.mxu0 0.0
    %1377 = vmatpush1.msra.mxu0 %v449
    %1378 = vmatprep.subr.mxu0 0.0
    %1379 = vmatpush1.msra.mxu0 %v446
    %1380 = vmatprep.subr.mxu0 0.0
    %1381 = vmatpush1.msra.mxu0 %v443
    %1382 = vmatprep.subr.mxu0 0.0
    %1383 = vmatpush1.msra.mxu0 %v440
    %1384 = vmatprep.subr.mxu0 0.0
    %1385 = vmatpush1.msra.mxu0 %v437
    %1386 = vmatprep.subr.mxu0 0.0
    %1387 = vmatpush1.msra.mxu0 %v434
    %1388 = vmatprep.subr.mxu0 0.0
    %1389 = vmatpush1.msra.mxu0 %v431
    %1390 = vmatprep.subr.mxu0 0.0
    %1391 = vmatpush1.msra.mxu0 %v428
    %1392 = vmatprep.subr.mxu0 0.0
    %1393 = vmatpush1.msra.mxu0 %v425
    %1394 = vmatprep.subr.mxu0 0.0
    %1395 = vmatpush1.msra.mxu0 %v422
    %1396 = vmatprep.subr.mxu0 0.0
    %1397 = vmatpush1.msra.mxu0 %v419
    %1398 = vmatprep.subr.mxu0 0.0
    %1399 = vmatpush1.msra.mxu0 %v416
    %1400 = vmatprep.subr.mxu0 0.0
    %1401 = vmatpush1.msra.mxu0 %v413
    %1402 = vmatprep.subr.mxu0 0.0
    %1403 = vmatpush1.msra.mxu0 %v410
    %1404 = vmatprep.subr.mxu0 0.0
    %1405 = vmatpush1.msra.mxu0 %v407
    %1406 = vmatprep.subr.mxu0 0.0
    %1407 = vmatpush1.msra.mxu0 %v404
    %1408 = vmatprep.subr.mxu0 0.0
    %1409 = vmatpush2.msra.mxu0 0.0
    %1410 = vmatprep.subr.mxu0 0.0
    %1411 = vmatpush2.msra.mxu0 0.0
    %1412 = vmatprep.subr.mxu0 0.0
    %1413 = vmatpush2.msra.mxu0 0.0
    %1414 = vmatprep.subr.mxu0 0.0
    %1415 = vmatpush2.msra.mxu0 0.0
    %1416 = vmatprep.subr.mxu0 0.0
    %1417 = vmatpush2.msra.mxu0 0.0
    %1418 = vmatprep.subr.mxu0 0.0
    %1419 = vmatpush2.msra.mxu0 0.0
    %1420 = vmatprep.subr.mxu0 0.0
    %1421 = vmatpush2.msra.mxu0 0.0
    %1422 = vmatprep.subr.mxu0 0.0
    %1423 = vmatpush2.msra.mxu0 0.0
    %1424 = vmatprep.subr.mxu0 0.0
    %1425 = vmatpush2.msra.mxu0 0.0
    %1426 = vmatprep.subr.mxu0 0.0
    %1427 = vmatpush2.msra.mxu0 0.0
    %1428 = vmatprep.subr.mxu0 0.0
    %1429 = vmatpush2.msra.mxu0 0.0
    %1430 = vmatprep.subr.mxu0 0.0
    %1431 = vmatpush2.msra.mxu0 0.0
    %1432 = vmatprep.subr.mxu0 0.0
    %1433 = vmatpush2.msra.mxu0 0.0
    %1434 = vmatprep.subr.mxu0 0.0
    %1435 = vmatpush2.msra.mxu0 0.0
    %1436 = vmatprep.subr.mxu0 0.0
    %1437 = vmatpush2.msra.mxu0 0.0
    %1438 = vmatprep.subr.mxu0 0.0
    %1439 = vmatpush2.msra.mxu0 0.0
    %1440 = vmatprep.mubr.f32.mxu0 0.0
    %1441 = vmatmul.mubr.f32.gmra.mxu0 %v1298
    %v1442 = vpop.f32.mrf.mxu0
    %v1443 = vadd.f32 0.0, %v1442
    %v1444 = vpop.f32.mrf.mxu0
    %1445 = vdwg.mxu0
    %v1446 = vadd.f32 %v1302, %v1372
    %v1447 = vxor.u32 %v1446, 2147483648
    %v1448 = vmul.f32 %v1447, 1.442695
    %v1449 = vpow.pop %v1448
    %v1450 = vadd.f32 %v1449, 1.0
    %v1451 = vrcp.pop %v1450
    %v1452 = vmul.f32 1.0, %v1451
    %v1453 = vadd.f32 %v1303, %v1374
    %v1454 = vxor.u32 %v1453, 2147483648
    %v1455 = vmul.f32 %v1454, 1.442695
    %v1456 = vpow.pop %v1455
    %v1457 = vadd.f32 %v1456, 1.0
    %v1458 = vrcp.pop %v1457
    %v1459 = vmul.f32 1.0, %v1458
    %v1460 = vadd.f32 %v1443, %v614
    %v1461 = vmul.f32 %v1452, %v1460
    %v1462 = vadd.f32 %v1304, %v1461
    %v1463 = vtanh.pop %v1462
    %v1464 = vsub.f32 1.0, %v1459
    %v1465 = vmul.f32 %v1464, %v1463
    %v1466 = vmul.f32 %v1459, %v1298
    %v1467 = vadd.f32 %v1465, %v1466
    %s1468 = scalar_lea.vmem [#allocation3], 40
    %1469 = vst [vmem:[%s1468] sm:$0xff] %v1467
    %s1470 = scalar_lea.vmem [#allocation2], 144
    %v1471 = vld [vmem:[%s1470] sm:$0xff]
    %v1472 = vld [vmem:[%s1470 + $0x8] sm:$0xff]
    %v1473 = vld [vmem:[%s1470 + $0x10] sm:$0xff]
    %1474 = vmatprep.subr.mxu0 %v448
    %1475 = vmatpush1.msra.mxu0 %v447
    %1476 = vmatprep.subr.mxu0 %v445
    %1477 = vmatpush1.msra.mxu0 %v444
    %1478 = vmatprep.subr.mxu0 %v442
    %1479 = vmatpush1.msra.mxu0 %v441
    %1480 = vmatprep.subr.mxu0 %v439
    %1481 = vmatpush1.msra.mxu0 %v438
    %1482 = vmatprep.subr.mxu0 %v436
    %1483 = vmatpush1.msra.mxu0 %v435
    %1484 = vmatprep.subr.mxu0 %v433
    %1485 = vmatpush1.msra.mxu0 %v432
    %1486 = vmatprep.subr.mxu0 %v430
    %1487 = vmatpush1.msra.mxu0 %v429
    %1488 = vmatprep.subr.mxu0 %v427
    %1489 = vmatpush1.msra.mxu0 %v426
    %1490 = vmatprep.subr.mxu0 %v424
    %1491 = vmatpush1.msra.mxu0 %v423
    %1492 = vmatprep.subr.mxu0 %v421
    %1493 = vmatpush1.msra.mxu0 %v420
    %1494 = vmatprep.subr.mxu0 %v418
    %1495 = vmatpush1.msra.mxu0 %v417
    %1496 = vmatprep.subr.mxu0 %v415
    %1497 = vmatpush1.msra.mxu0 %v414
    %1498 = vmatprep.subr.mxu0 %v412
    %1499 = vmatpush1.msra.mxu0 %v411
    %1500 = vmatprep.subr.mxu0 %v409
    %1501 = vmatpush1.msra.mxu0 %v408
    %1502 = vmatprep.subr.mxu0 %v406
    %1503 = vmatpush1.msra.mxu0 %v405
    %1504 = vmatprep.subr.mxu0 %v403
    %1505 = vmatpush1.msra.mxu0 %v402
    %1506 = vmatprep.subr.mxu0 0.0
    %1507 = vmatpush2.msra.mxu0 0.0
    %1508 = vmatprep.subr.mxu0 0.0
    %1509 = vmatpush2.msra.mxu0 0.0
    %1510 = vmatprep.subr.mxu0 0.0
    %1511 = vmatpush2.msra.mxu0 0.0
    %1512 = vmatprep.subr.mxu0 0.0
    %1513 = vmatpush2.msra.mxu0 0.0
    %1514 = vmatprep.subr.mxu0 0.0
    %1515 = vmatpush2.msra.mxu0 0.0
    %1516 = vmatprep.subr.mxu0 0.0
    %1517 = vmatpush2.msra.mxu0 0.0
    %1518 = vmatprep.subr.mxu0 0.0
    %1519 = vmatpush2.msra.mxu0 0.0
    %1520 = vmatprep.subr.mxu0 0.0
    %1521 = vmatpush2.msra.mxu0 0.0
    %1522 = vmatprep.subr.mxu0 0.0
    %1523 = vmatpush2.msra.mxu0 0.0
    %1524 = vmatprep.subr.mxu0 0.0
    %1525 = vmatpush2.msra.mxu0 0.0
    %1526 = vmatprep.subr.mxu0 0.0
    %1527 = vmatpush2.msra.mxu0 0.0
    %1528 = vmatprep.subr.mxu0 0.0
    %1529 = vmatpush2.msra.mxu0 0.0
    %1530 = vmatprep.subr.mxu0 0.0
    %1531 = vmatpush2.msra.mxu0 0.0
    %1532 = vmatprep.subr.mxu0 0.0
    %1533 = vmatpush2.msra.mxu0 0.0
    %1534 = vmatprep.subr.mxu0 0.0
    %1535 = vmatpush2.msra.mxu0 0.0
    %1536 = vmatprep.subr.mxu0 0.0
    %1537 = vmatpush2.msra.mxu0 0.0
    %1538 = vmatprep.mubr.f32.mxu0 0.0
    %1539 = vmatmul.mubr.f32.gmra.mxu0 %v1467
    %v1540 = vpop.f32.mrf.mxu0
    %v1541 = vadd.f32 0.0, %v1540
    %v1542 = vpop.f32.mrf.mxu0
    %v1543 = vadd.f32 0.0, %v1542
    %1544 = vdwg.mxu0
    %1545 = vmatprep.subr.mxu0 0.0
    %1546 = vmatpush1.msra.mxu0 %v449
    %1547 = vmatprep.subr.mxu0 0.0
    %1548 = vmatpush1.msra.mxu0 %v446
    %1549 = vmatprep.subr.mxu0 0.0
    %1550 = vmatpush1.msra.mxu0 %v443
    %1551 = vmatprep.subr.mxu0 0.0
    %1552 = vmatpush1.msra.mxu0 %v440
    %1553 = vmatprep.subr.mxu0 0.0
    %1554 = vmatpush1.msra.mxu0 %v437
    %1555 = vmatprep.subr.mxu0 0.0
    %1556 = vmatpush1.msra.mxu0 %v434
    %1557 = vmatprep.subr.mxu0 0.0
    %1558 = vmatpush1.msra.mxu0 %v431
    %1559 = vmatprep.subr.mxu0 0.0
    %1560 = vmatpush1.msra.mxu0 %v428
    %1561 = vmatprep.subr.mxu0 0.0
    %1562 = vmatpush1.msra.mxu0 %v425
    %1563 = vmatprep.subr.mxu0 0.0
    %1564 = vmatpush1.msra.mxu0 %v422
    %1565 = vmatprep.subr.mxu0 0.0
    %1566 = vmatpush1.msra.mxu0 %v419
    %1567 = vmatprep.subr.mxu0 0.0
    %1568 = vmatpush1.msra.mxu0 %v416
    %1569 = vmatprep.subr.mxu0 0.0
    %1570 = vmatpush1.msra.mxu0 %v413
    %1571 = vmatprep.subr.mxu0 0.0
    %1572 = vmatpush1.msra.mxu0 %v410
    %1573 = vmatprep.subr.mxu0 0.0
    %1574 = vmatpush1.msra.mxu0 %v407
    %1575 = vmatprep.subr.mxu0 0.0
    %1576 = vmatpush1.msra.mxu0 %v404
    %1577 = vmatprep.subr.mxu0 0.0
    %1578 = vmatpush2.msra.mxu0 0.0
    %1579 = vmatprep.subr.mxu0 0.0
    %1580 = vmatpush2.msra.mxu0 0.0
    %1581 = vmatprep.subr.mxu0 0.0
    %1582 = vmatpush2.msra.mxu0 0.0
    %1583 = vmatprep.subr.mxu0 0.0
    %1584 = vmatpush2.msra.mxu0 0.0
    %1585 = vmatprep.subr.mxu0 0.0
    %1586 = vmatpush2.msra.mxu0 0.0
    %1587 = vmatprep.subr.mxu0 0.0
    %1588 = vmatpush2.msra.mxu0 0.0
    %1589 = vmatprep.subr.mxu0 0.0
    %1590 = vmatpush2.msra.mxu0 0.0
    %1591 = vmatprep.subr.mxu0 0.0
    %1592 = vmatpush2.msra.mxu0 0.0
    %1593 = vmatprep.subr.mxu0 0.0
    %1594 = vmatpush2.msra.mxu0 0.0
    %1595 = vmatprep.subr.mxu0 0.0
    %1596 = vmatpush2.msra.mxu0 0.0
    %1597 = vmatprep.subr.mxu0 0.0
    %1598 = vmatpush2.msra.mxu0 0.0
    %1599 = vmatprep.subr.mxu0 0.0
    %1600 = vmatpush2.msra.mxu0 0.0
    %1601 = vmatprep.subr.mxu0 0.0
    %1602 = vmatpush2.msra.mxu0 0.0
    %1603 = vmatprep.subr.mxu0 0.0
    %1604 = vmatpush2.msra.mxu0 0.0
    %1605 = vmatprep.subr.mxu0 0.0
    %1606 = vmatpush2.msra.mxu0 0.0
    %1607 = vmatprep.subr.mxu0 0.0
    %1608 = vmatpush2.msra.mxu0 0.0
    %1609 = vmatprep.mubr.f32.mxu0 0.0
    %1610 = vmatmul.mubr.f32.gmra.mxu0 %v1467
    %v1611 = vpop.f32.mrf.mxu0
    %v1612 = vadd.f32 0.0, %v1611
    %v1613 = vpop.f32.mrf.mxu0
    %1614 = vdwg.mxu0
    %v1615 = vadd.f32 %v1471, %v1541
    %v1616 = vxor.u32 %v1615, 2147483648
    %v1617 = vmul.f32 %v1616, 1.442695
    %v1618 = vpow.pop %v1617
    %v1619 = vadd.f32 %v1618, 1.0
    %v1620 = vrcp.pop %v1619
    %v1621 = vmul.f32 1.0, %v1620
    %v1622 = vadd.f32 %v1472, %v1543
    %v1623 = vxor.u32 %v1622, 2147483648
    %v1624 = vmul.f32 %v1623, 1.442695
    %v1625 = vpow.pop %v1624
    %v1626 = vadd.f32 %v1625, 1.0
    %v1627 = vrcp.pop %v1626
    %v1628 = vmul.f32 1.0, %v1627
    %v1629 = vadd.f32 %v1612, %v614
    %v1630 = vmul.f32 %v1621, %v1629
    %v1631 = vadd.f32 %v1473, %v1630
    %v1632 = vtanh.pop %v1631
    %v1633 = vsub.f32 1.0, %v1628
    %v1634 = vmul.f32 %v1633, %v1632
    %v1635 = vmul.f32 %v1628, %v1467
    %v1636 = vadd.f32 %v1634, %v1635
    %s1637 = scalar_lea.vmem [#allocation3], 48
    %1638 = vst [vmem:[%s1637] sm:$0xff] %v1636
    %s1639 = scalar_lea.vmem [#allocation2], 168
    %v1640 = vld [vmem:[%s1639] sm:$0xff]
    %v1641 = vld [vmem:[%s1639 + $0x8] sm:$0xff]
    %v1642 = vld [vmem:[%s1639 + $0x10] sm:$0xff]
    %1643 = vmatprep.subr.mxu0 %v448
    %1644 = vmatpush1.msra.mxu0 %v447
    %1645 = vmatprep.subr.mxu0 %v445
    %1646 = vmatpush1.msra.mxu0 %v444
    %1647 = vmatprep.subr.mxu0 %v442
    %1648 = vmatpush1.msra.mxu0 %v441
    %1649 = vmatprep.subr.mxu0 %v439
    %1650 = vmatpush1.msra.mxu0 %v438
    %1651 = vmatprep.subr.mxu0 %v436
    %1652 = vmatpush1.msra.mxu0 %v435
    %1653 = vmatprep.subr.mxu0 %v433
    %1654 = vmatpush1.msra.mxu0 %v432
    %1655 = vmatprep.subr.mxu0 %v430
    %1656 = vmatpush1.msra.mxu0 %v429
    %1657 = vmatprep.subr.mxu0 %v427
    %1658 = vmatpush1.msra.mxu0 %v426
    %1659 = vmatprep.subr.mxu0 %v424
    %1660 = vmatpush1.msra.mxu0 %v423
    %1661 = vmatprep.subr.mxu0 %v421
    %1662 = vmatpush1.msra.mxu0 %v420
    %1663 = vmatprep.subr.mxu0 %v418
    %1664 = vmatpush1.msra.mxu0 %v417
    %1665 = vmatprep.subr.mxu0 %v415
    %1666 = vmatpush1.msra.mxu0 %v414
    %1667 = vmatprep.subr.mxu0 %v412
    %1668 = vmatpush1.msra.mxu0 %v411
    %1669 = vmatprep.subr.mxu0 %v409
    %1670 = vmatpush1.msra.mxu0 %v408
    %1671 = vmatprep.subr.mxu0 %v406
    %1672 = vmatpush1.msra.mxu0 %v405
    %1673 = vmatprep.subr.mxu0 %v403
    %1674 = vmatpush1.msra.mxu0 %v402
    %1675 = vmatprep.subr.mxu0 0.0
    %1676 = vmatpush2.msra.mxu0 0.0
    %1677 = vmatprep.subr.mxu0 0.0
    %1678 = vmatpush2.msra.mxu0 0.0
    %1679 = vmatprep.subr.mxu0 0.0
    %1680 = vmatpush2.msra.mxu0 0.0
    %1681 = vmatprep.subr.mxu0 0.0
    %1682 = vmatpush2.msra.mxu0 0.0
    %1683 = vmatprep.subr.mxu0 0.0
    %1684 = vmatpush2.msra.mxu0 0.0
    %1685 = vmatprep.subr.mxu0 0.0
    %1686 = vmatpush2.msra.mxu0 0.0
    %1687 = vmatprep.subr.mxu0 0.0
    %1688 = vmatpush2.msra.mxu0 0.0
    %1689 = vmatprep.subr.mxu0 0.0
    %1690 = vmatpush2.msra.mxu0 0.0
    %1691 = vmatprep.subr.mxu0 0.0
    %1692 = vmatpush2.msra.mxu0 0.0
    %1693 = vmatprep.subr.mxu0 0.0
    %1694 = vmatpush2.msra.mxu0 0.0
    %1695 = vmatprep.subr.mxu0 0.0
    %1696 = vmatpush2.msra.mxu0 0.0
    %1697 = vmatprep.subr.mxu0 0.0
    %1698 = vmatpush2.msra.mxu0 0.0
    %1699 = vmatprep.subr.mxu0 0.0
    %1700 = vmatpush2.msra.mxu0 0.0
    %1701 = vmatprep.subr.mxu0 0.0
    %1702 = vmatpush2.msra.mxu0 0.0
    %1703 = vmatprep.subr.mxu0 0.0
    %1704 = vmatpush2.msra.mxu0 0.0
    %1705 = vmatprep.subr.mxu0 0.0
    %1706 = vmatpush2.msra.mxu0 0.0
    %1707 = vmatprep.mubr.f32.mxu0 0.0
    %1708 = vmatmul.mubr.f32.gmra.mxu0 %v1636
    %v1709 = vpop.f32.mrf.mxu0
    %v1710 = vadd.f32 0.0, %v1709
    %v1711 = vpop.f32.mrf.mxu0
    %v1712 = vadd.f32 0.0, %v1711
    %1713 = vdwg.mxu0
    %1714 = vmatprep.subr.mxu0 0.0
    %1715 = vmatpush1.msra.mxu0 %v449
    %1716 = vmatprep.subr.mxu0 0.0
    %1717 = vmatpush1.msra.mxu0 %v446
    %1718 = vmatprep.subr.mxu0 0.0
    %1719 = vmatpush1.msra.mxu0 %v443
    %1720 = vmatprep.subr.mxu0 0.0
    %1721 = vmatpush1.msra.mxu0 %v440
    %1722 = vmatprep.subr.mxu0 0.0
    %1723 = vmatpush1.msra.mxu0 %v437
    %1724 = vmatprep.subr.mxu0 0.0
    %1725 = vmatpush1.msra.mxu0 %v434
    %1726 = vmatprep.subr.mxu0 0.0
    %1727 = vmatpush1.msra.mxu0 %v431
    %1728 = vmatprep.subr.mxu0 0.0
    %1729 = vmatpush1.msra.mxu0 %v428
    %1730 = vmatprep.subr.mxu0 0.0
    %1731 = vmatpush1.msra.mxu0 %v425
    %1732 = vmatprep.subr.mxu0 0.0
    %1733 = vmatpush1.msra.mxu0 %v422
    %1734 = vmatprep.subr.mxu0 0.0
    %1735 = vmatpush1.msra.mxu0 %v419
    %1736 = vmatprep.subr.mxu0 0.0
    %1737 = vmatpush1.msra.mxu0 %v416
    %1738 = vmatprep.subr.mxu0 0.0
    %1739 = vmatpush1.msra.mxu0 %v413
    %1740 = vmatprep.subr.mxu0 0.0
    %1741 = vmatpush1.msra.mxu0 %v410
    %1742 = vmatprep.subr.mxu0 0.0
    %1743 = vmatpush1.msra.mxu0 %v407
    %1744 = vmatprep.subr.mxu0 0.0
    %1745 = vmatpush1.msra.mxu0 %v404
    %1746 = vmatprep.subr.mxu0 0.0
    %1747 = vmatpush2.msra.mxu0 0.0
    %1748 = vmatprep.subr.mxu0 0.0
    %1749 = vmatpush2.msra.mxu0 0.0
    %1750 = vmatprep.subr.mxu0 0.0
    %1751 = vmatpush2.msra.mxu0 0.0
    %1752 = vmatprep.subr.mxu0 0.0
    %1753 = vmatpush2.msra.mxu0 0.0
    %1754 = vmatprep.subr.mxu0 0.0
    %1755 = vmatpush2.msra.mxu0 0.0
    %1756 = vmatprep.subr.mxu0 0.0
    %1757 = vmatpush2.msra.mxu0 0.0
    %1758 = vmatprep.subr.mxu0 0.0
    %1759 = vmatpush2.msra.mxu0 0.0
    %1760 = vmatprep.subr.mxu0 0.0
    %1761 = vmatpush2.msra.mxu0 0.0
    %1762 = vmatprep.subr.mxu0 0.0
    %1763 = vmatpush2.msra.mxu0 0.0
    %1764 = vmatprep.subr.mxu0 0.0
    %1765 = vmatpush2.msra.mxu0 0.0
    %1766 = vmatprep.subr.mxu0 0.0
    %1767 = vmatpush2.msra.mxu0 0.0
    %1768 = vmatprep.subr.mxu0 0.0
    %1769 = vmatpush2.msra.mxu0 0.0
    %1770 = vmatprep.subr.mxu0 0.0
    %1771 = vmatpush2.msra.mxu0 0.0
    %1772 = vmatprep.subr.mxu0 0.0
    %1773 = vmatpush2.msra.mxu0 0.0
    %1774 = vmatprep.subr.mxu0 0.0
    %1775 = vmatpush2.msra.mxu0 0.0
    %1776 = vmatprep.subr.mxu0 0.0
    %1777 = vmatpush2.msra.mxu0 0.0
    %1778 = vmatprep.mubr.f32.mxu0 0.0
    %1779 = vmatmul.mubr.f32.gmra.mxu0 %v1636
    %v1780 = vpop.f32.mrf.mxu0
    %v1781 = vadd.f32 0.0, %v1780
    %v1782 = vpop.f32.mrf.mxu0
    %1783 = vdwg.mxu0
    %v1784 = vadd.f32 %v1640, %v1710
    %v1785 = vxor.u32 %v1784, 2147483648
    %v1786 = vmul.f32 %v1785, 1.442695
    %v1787 = vpow.pop %v1786
    %v1788 = vadd.f32 %v1787, 1.0
    %v1789 = vrcp.pop %v1788
    %v1790 = vmul.f32 1.0, %v1789
    %v1791 = vadd.f32 %v1641, %v1712
    %v1792 = vxor.u32 %v1791, 2147483648
    %v1793 = vmul.f32 %v1792, 1.442695
    %v1794 = vpow.pop %v1793
    %v1795 = vadd.f32 %v1794, 1.0
    %v1796 = vrcp.pop %v1795
    %v1797 = vmul.f32 1.0, %v1796
    %v1798 = vadd.f32 %v1781, %v614
    %v1799 = vmul.f32 %v1790, %v1798
    %v1800 = vadd.f32 %v1642, %v1799
    %v1801 = vtanh.pop %v1800
    %v1802 = vsub.f32 1.0, %v1797
    %v1803 = vmul.f32 %v1802, %v1801
    %v1804 = vmul.f32 %v1797, %v1636
    %v1805 = vadd.f32 %v1803, %v1804
    %s1806 = scalar_lea.vmem [#allocation3], 56
    %1807 = vst [vmem:[%s1806] sm:$0xff] %v1805
    %1808 = vst [vmem:[#allocation4] sm:$0xff] %v1805
    %v1809 = vld [vmem:[#allocation3] sm:$0xff]
    %v1810 = vld [vmem:[#allocation3 + $0x8] sm:$0xff]
    %v1811 = vld [vmem:[#allocation3 + $0x10] sm:$0xff]
    %v1812 = vld [vmem:[#allocation3 + $0x18] sm:$0xff]
    %v1813 = vld [vmem:[#allocation3 + $0x20] sm:$0xff]
    %v1814 = vld [vmem:[#allocation3 + $0x28] sm:$0xff]
    %v1815 = vld [vmem:[#allocation3 + $0x30] sm:$0xff]
    %v1816 = vld [vmem:[#allocation3 + $0x38] sm:$0xff]
    %v1817 = vld [vmem:[#allocation11] sm:$0xff]
    %v1818 = vld [vmem:[#allocation11 + $0x8] sm:$0xff]
    %v1819 = vld [vmem:[#allocation11 + $0x10] sm:$0xff]
    %v1820 = vld [vmem:[#allocation11 + $0x18] sm:$0xff]
    %v1821 = vld [vmem:[#allocation11 + $0x20] sm:$0xff]
    %v1822 = vld [vmem:[#allocation11 + $0x28] sm:$0xff]
    %v1823 = vld [vmem:[#allocation11 + $0x30] sm:$0xff]
    %v1824 = vld [vmem:[#allocation11 + $0x38] sm:$0xff]
    %v1825 = vld [vmem:[#allocation11 + $0x40] sm:$0xff]
    %v1826 = vld [vmem:[#allocation11 + $0x48] sm:$0xff]
    %v1827 = vld [vmem:[#allocation11 + $0x50] sm:$0xff]
    %v1828 = vld [vmem:[#allocation11 + $0x58] sm:$0xff]
    %v1829 = vld [vmem:[#allocation11 + $0x60] sm:$0xff]
    %v1830 = vld [vmem:[#allocation11 + $0x68] sm:$0xff]
    %v1831 = vld [vmem:[#allocation11 + $0x70] sm:$0xff]
    %v1832 = vld [vmem:[#allocation11 + $0x78] sm:$0xff]
    %v1833 = vld [vmem:[%s6] sm:$0x1]
    %v1835 = vlaneseq
    %v1836 = vshrl.u32 %v1835, 7
    %v1837 = vsub.s32 0, %v1836
    %v1838 = vrot.slane %v1833, %v1837
    %1840 = vmatprep.subr.mxu0 0.0
    %1841 = vmatpush1.msra.mxu0 %v1832
    %1842 = vmatprep.subr.mxu0 0.0
    %1843 = vmatpush1.msra.mxu0 %v1831
    %1844 = vmatprep.subr.mxu0 0.0
    %1845 = vmatpush1.msra.mxu0 %v1830
    %1846 = vmatprep.subr.mxu0 0.0
    %1847 = vmatpush1.msra.mxu0 %v1829
    %1848 = vmatprep.subr.mxu0 0.0
    %1849 = vmatpush1.msra.mxu0 %v1828
    %1850 = vmatprep.subr.mxu0 0.0
    %1851 = vmatpush1.msra.mxu0 %v1827
    %1852 = vmatprep.subr.mxu0 0.0
    %1853 = vmatpush1.msra.mxu0 %v1826
    %1854 = vmatprep.subr.mxu0 0.0
    %1855 = vmatpush1.msra.mxu0 %v1825
    %1856 = vmatprep.subr.mxu0 0.0
    %1857 = vmatpush1.msra.mxu0 %v1824
    %1858 = vmatprep.subr.mxu0 0.0
    %1859 = vmatpush1.msra.mxu0 %v1823
    %1860 = vmatprep.subr.mxu0 0.0
    %1861 = vmatpush1.msra.mxu0 %v1822
    %1862 = vmatprep.subr.mxu0 0.0
    %1863 = vmatpush1.msra.mxu0 %v1821
    %1864 = vmatprep.subr.mxu0 0.0
    %1865 = vmatpush1.msra.mxu0 %v1820
    %1866 = vmatprep.subr.mxu0 0.0
    %1867 = vmatpush1.msra.mxu0 %v1819
    %1868 = vmatprep.subr.mxu0 0.0
    %1869 = vmatpush1.msra.mxu0 %v1818
    %1870 = vmatprep.subr.mxu0 0.0
    %1871 = vmatpush1.msra.mxu0 %v1817
    %1872 = vmatprep.subr.mxu0 0.0
    %1873 = vmatpush2.msra.mxu0 0.0
    %1874 = vmatprep.subr.mxu0 0.0
    %1875 = vmatpush2.msra.mxu0 0.0
    %1876 = vmatprep.subr.mxu0 0.0
    %1877 = vmatpush2.msra.mxu0 0.0
    %1878 = vmatprep.subr.mxu0 0.0
    %1879 = vmatpush2.msra.mxu0 0.0
    %1880 = vmatprep.subr.mxu0 0.0
    %1881 = vmatpush2.msra.mxu0 0.0
    %1882 = vmatprep.subr.mxu0 0.0
    %1883 = vmatpush2.msra.mxu0 0.0
    %1884 = vmatprep.subr.mxu0 0.0
    %1885 = vmatpush2.msra.mxu0 0.0
    %1886 = vmatprep.subr.mxu0 0.0
    %1887 = vmatpush2.msra.mxu0 0.0
    %1888 = vmatprep.subr.mxu0 0.0
    %1889 = vmatpush2.msra.mxu0 0.0
    %1890 = vmatprep.subr.mxu0 0.0
    %1891 = vmatpush2.msra.mxu0 0.0
    %1892 = vmatprep.subr.mxu0 0.0
    %1893 = vmatpush2.msra.mxu0 0.0
    %1894 = vmatprep.subr.mxu0 0.0
    %1895 = vmatpush2.msra.mxu0 0.0
    %1896 = vmatprep.subr.mxu0 0.0
    %1897 = vmatpush2.msra.mxu0 0.0
    %1898 = vmatprep.subr.mxu0 0.0
    %1899 = vmatpush2.msra.mxu0 0.0
    %1900 = vmatprep.subr.mxu0 0.0
    %1901 = vmatpush2.msra.mxu0 0.0
    %1902 = vmatprep.subr.mxu0 0.0
    %1903 = vmatpush2.msra.mxu0 0.0
    %1904 = vmatprep.mubr.f32.mxu0 0.0
    %1905 = vmatmul.mubr.f32.gmra.mxu0 %v1809
    %v1906 = vpop.f32.mrf.mxu0
    %v1907 = vadd.f32 %v1838, %v1906
    %v1908 = vpop.f32.mrf.mxu0
    %1909 = vmatprep.mubr.f32.mxu0 0.0
    %1910 = vmatmul.mubr.f32.gmra.mxu0 %v1810
    %v1911 = vpop.f32.mrf.mxu0
    %v1912 = vadd.f32 %v1838, %v1911
    %v1913 = vpop.f32.mrf.mxu0
    %1914 = vmatprep.mubr.f32.mxu0 0.0
    %1915 = vmatmul.mubr.f32.gmra.mxu0 %v1811
    %v1916 = vpop.f32.mrf.mxu0
    %v1917 = vadd.f32 %v1838, %v1916
    %v1918 = vpop.f32.mrf.mxu0
    %1919 = vmatprep.mubr.f32.mxu0 0.0
    %1920 = vmatmul.mubr.f32.gmra.mxu0 %v1812
    %v1921 = vpop.f32.mrf.mxu0
    %v1922 = vadd.f32 %v1838, %v1921
    %v1923 = vpop.f32.mrf.mxu0
    %1924 = vmatprep.mubr.f32.mxu0 0.0
    %1925 = vmatmul.mubr.f32.gmra.mxu0 %v1813
    %v1926 = vpop.f32.mrf.mxu0
    %v1927 = vadd.f32 %v1838, %v1926
    %v1928 = vpop.f32.mrf.mxu0
    %1929 = vmatprep.mubr.f32.mxu0 0.0
    %1930 = vmatmul.mubr.f32.gmra.mxu0 %v1814
    %v1931 = vpop.f32.mrf.mxu0
    %v1932 = vadd.f32 %v1838, %v1931
    %v1933 = vpop.f32.mrf.mxu0
    %1934 = vmatprep.mubr.f32.mxu0 0.0
    %1935 = vmatmul.mubr.f32.gmra.mxu0 %v1815
    %v1936 = vpop.f32.mrf.mxu0
    %v1937 = vadd.f32 %v1838, %v1936
    %v1938 = vpop.f32.mrf.mxu0
    %1939 = vmatprep.mubr.f32.mxu0 0.0
    %1940 = vmatmul.mubr.f32.gmra.mxu0 %v1816
    %v1941 = vpop.f32.mrf.mxu0
    %v1942 = vadd.f32 %v1838, %v1941
    %v1943 = vpop.f32.mrf.mxu0
    %1944 = vdwg.mxu0
    %1945 = vst [vmem:[#allocation13] sm:$0xff] %v1907
    %1946 = vst [vmem:[#allocation13 + $0x8] sm:$0xff] %v1912
    %1947 = vst [vmem:[#allocation13 + $0x10] sm:$0xff] %v1917
    %1948 = vst [vmem:[#allocation13 + $0x18] sm:$0xff] %v1922
    %1949 = vst [vmem:[#allocation13 + $0x20] sm:$0xff] %v1927
    %1950 = vst [vmem:[#allocation13 + $0x28] sm:$0xff] %v1932
    %1951 = vst [vmem:[#allocation13 + $0x30] sm:$0xff] %v1937
    %1952 = vst [vmem:[#allocation13 + $0x38] sm:$0xff] %v1942
    // Predicated region
    $region50: #{tpu_custom_call.1} parent=1 // pred_check
      _
    $region51: #{tpu_custom_call.1} parent=1 // pred_check_branch
      %1954 = sbr.rel (0) target = $region53
    $region52: #{tpu_custom_call.1} parent=1 // pred_region
      %s1956 = ssub.s32 1024, 1024
      %1957 = vsyncadd [#allocation7], %s1956
      %s1958 = sshll.u32 [#allocation13], 4
      %s1959 = int_to_ptr.vmem [resolvable:$true] %s1958
      %1964 = dma.vmem_to_hbm [thread:$0]  %s1959, 1024, %s7, [#allocation7], 128, 128, 8
    $region53: #{tpu_custom_call.1} parent=1 // pred_fallthru
      _
    // Predicated region
    $region54: #{tpu_custom_call.1} parent=1 // pred_check
      _
    $region55: #{tpu_custom_call.1} parent=1 // pred_check_branch
      %1966 = sbr.rel (0) target = $region57
    $region56: #{tpu_custom_call.1} parent=1 // pred_region
      %1967 = dma.done [#allocation7], 1024
    $region57: #{tpu_custom_call.1} parent=1 // pred_fallthru
      _
    %1968 = vsyncpa [#allocation6], 1
    %1969 = vsyncpa [#allocation9], 1
    %1970 = vsyncpa [#allocation12], 1
    %1971 = vsyncpa [#allocation7], 1

// kernel: tpu_custom_call.1
$region0: #{tpu_custom_call.1}
  #allocation0 [shape = 'u32[]', space=smem, size = 0x4, offset = 0x4, fixed_abs, tag = 'smem constant byte address 0x4 - core index']
  #allocation1 [shape = 'u32[144,128]{1,0:T(1,128)}', space=vmem, size = 0x12000, scoped, tag = 'internal scratch']
  #allocation2 [shape = 'f32[8,8,384]{2,1,0:T(8,128)}', space=vmem, size = 0x18000, scoped, tag = 'scratch operand']
  #allocation3 [shape = 'f32[8,8,128]{2,1,0:T(8,128)}', space=vmem, size = 0x8000, scoped, tag = 'scratch operand']
  #allocation4 [shape = 'f32[8,128]{1,0:T(8,128)}', space=vmem, size = 0x1000, scoped, tag = 'scratch operand']
  %s0 = inlined_call_operand.hbm [shape: f32[8,8,128], index: 0, kind: input, shape index: {}]
  %s1 = inlined_call_operand.hbm [shape: f32[128,384], index: 1, kind: input, shape index: {}]
  %s2 = inlined_call_operand.hbm [shape: f32[128,384], index: 2, kind: input, shape index: {}]
  %s3 = inlined_call_operand.vmem [shape: f32[1,384], index: 3, kind: input, shape index: {}]
  %s4 = inlined_call_operand.vmem [shape: f32[1,128], index: 4, kind: input, shape index: {}]
  %s5 = inlined_call_operand.hbm [shape: f32[128,128], index: 5, kind: input, shape index: {}]
  %s6 = inlined_call_operand.vmem [shape: f32[1,128], index: 6, kind: input, shape index: {}]
  %s7 = inlined_call_operand.hbm [shape: f32[8,8,128], index: 7, kind: output, shape index: {}]
  %s8 = sld [smem:[#allocation0]]
  $region58: #{tpu_custom_call.1} parent=0
    _
  %s10 = ssub.s32 1, %s8
  %s11 = scalar_select 0, %s10, %s8
  $region1: #{tpu_custom_call.1} parent=0
    #allocation5 [shape = 'u8[32768]{0}', space=vmem, size = 0x8000, scoped, tag = 'input window, operand 0, single buffered']
    #allocation6 [shape = 's32[1]{0}', space=sflag, size = 0x4, scoped, tag = 'scoped memory for tpu_custom_call.1']
    #allocation7 [shape = 's32[1]{0}', space=sflag, size = 0x4, scoped, tag = 'scoped memory for tpu_custom_call.1']
    #allocation8 [shape = 'u8[196608]{0}', space=vmem, size = 0x30000, scoped, tag = 'input window, operand 1, single buffered']
    #allocation9 [shape = 's32[1]{0}', space=sflag, size = 0x4, scoped, tag = 'scoped memory for tpu_custom_call.1']
    #allocation10 [shape = 'u8[196608]{0}', space=vmem, size = 0x30000, scoped, tag = 'input window, operand 2, single buffered']
    #allocation11 [shape = 'u8[65536]{0}', space=vmem, size = 0x10000, scoped, tag = 'input window, operand 5, single buffered']
    #allocation12 [shape = 's32[1]{0}', space=sflag, size = 0x4, scoped, tag = 'scoped memory for tpu_custom_call.1']
    #allocation13 [shape = 'u8[32768]{0}', space=vmem, size = 0x8000, scoped, tag = 'output window, operand 0, single buffered']
    %12 = vsyncpa [#allocation6], 0
    %13 = vsyncpa [#allocation9], 0
    %14 = vsyncpa [#allocation12], 0
    %15 = vsyncpa [#allocation7], 0
    // Predicated region
    $region2: #{tpu_custom_call.1} parent=1 // pred_check
      _
    $region3: #{tpu_custom_call.1} parent=1 // pred_check_branch
      %17 = sbr.rel (0) target = $region5
    $region4: #{tpu_custom_call.1} parent=1 // pred_region
      %s19 = ssub.s32 1024, 1024
      %20 = vsyncadd [#allocation6], %s19
      %s21 = sshll.u32 [#allocation5], 4
      %s22 = int_to_ptr.vmem [resolvable:$true] %s21
      %27 = dma.hbm_to_vmem [thread:$0]  %s0, 1024, %s22, [#allocation6], 128, 128, 8
    $region5: #{tpu_custom_call.1} parent=1 // pred_fallthru
      _
    // Predicated region
    $region6: #{tpu_custom_call.1} parent=1 // pred_check
      _
    $region7: #{tpu_custom_call.1} parent=1 // pred_check_branch
      %29 = sbr.rel (0) target = $region9
    $region8: #{tpu_custom_call.1} parent=1 // pred_region
      %s31 = ssub.s32 6144, 6144
      %32 = vsyncadd [#allocation9], %s31
      %s33 = sshll.u32 [#allocation8], 4
      %s34 = int_to_ptr.vmem [resolvable:$true] %s33
      %39 = dma.hbm_to_vmem [thread:$0]  %s1, 6144, %s34, [#allocation9], 384, 384, 24
    $region9: #{tpu_custom_call.1} parent=1 // pred_fallthru
      _
    // Predicated region
    $region10: #{tpu_custom_call.1} parent=1 // pred_check
      _
    $region11: #{tpu_custom_call.1} parent=1 // pred_check_branch
      %41 = sbr.rel (0) target = $region13
    $region12: #{tpu_custom_call.1} parent=1 // pred_region
      %s43 = ssub.s32 6144, 6144
      %44 = vsyncadd [#allocation9], %s43
      %s45 = sshll.u32 [#allocation10], 4
      %s46 = int_to_ptr.vmem [resolvable:$true] %s45
      %51 = dma.hbm_to_vmem [thread:$0]  %s2, 6144, %s46, [#allocation9], 384, 384, 24
    $region13: #{tpu_custom_call.1} parent=1 // pred_fallthru
      _
    // Predicated region
    $region14: #{tpu_custom_call.1} parent=1 // pred_check
      _
    $region15: #{tpu_custom_call.1} parent=1 // pred_check_branch
      %53 = sbr.rel (0) target = $region17
    $region16: #{tpu_custom_call.1} parent=1 // pred_region
      _
    $region17: #{tpu_custom_call.1} parent=1 // pred_fallthru
      _
    // Predicated region
    $region18: #{tpu_custom_call.1} parent=1 // pred_check
      _
    $region19: #{tpu_custom_call.1} parent=1 // pred_check_branch
      %55 = sbr.rel (0) target = $region21
    $region20: #{tpu_custom_call.1} parent=1 // pred_region
      _
    $region21: #{tpu_custom_call.1} parent=1 // pred_fallthru
      _
    // Predicated region
    $region22: #{tpu_custom_call.1} parent=1 // pred_check
      _
    $region23: #{tpu_custom_call.1} parent=1 // pred_check_branch
      %57 = sbr.rel (0) target = $region25
    $region24: #{tpu_custom_call.1} parent=1 // pred_region
      %s59 = ssub.s32 2048, 2048
      %60 = vsyncadd [#allocation12], %s59
      %s61 = sshll.u32 [#allocation11], 4
      %s62 = int_to_ptr.vmem [resolvable:$true] %s61
      %67 = dma.hbm_to_vmem [thread:$0]  %s5, 2048, %s62, [#allocation12], 128, 128, 8
    $region25: #{tpu_custom_call.1} parent=1 // pred_fallthru
      _
    // Predicated region
    $region26: #{tpu_custom_call.1} parent=1 // pred_check
      _
    $region27: #{tpu_custom_call.1} parent=1 // pred_check_branch
      %69 = sbr.rel (0) target = $region29
    $region28: #{tpu_custom_call.1} parent=1 // pred_region
      _
    $region29: #{tpu_custom_call.1} parent=1 // pred_fallthru
      _
    // Predicated region
    $region30: #{tpu_custom_call.1} parent=1 // pred_check
      _
    $region31: #{tpu_custom_call.1} parent=1 // pred_check_branch
      %71 = sbr.rel (0) target = $region33
    $region32: #{tpu_custom_call.1} parent=1 // pred_region
      %72 = dma.done [#allocation6], 1024
    $region33: #{tpu_custom_call.1} parent=1 // pred_fallthru
      _
    // Predicated region
    $region34: #{tpu_custom_call.1} parent=1 // pred_check
      _
    $region35: #{tpu_custom_call.1} parent=1 // pred_check_branch
      %74 = sbr.rel (0) target = $region37
    $region36: #{tpu_custom_call.1} parent=1 // pred_region
      %75 = dma.done [#allocation9], 6144
    $region37: #{tpu_custom_call.1} parent=1 // pred_fallthru
      _
    // Predicated region
    $region38: #{tpu_custom_call.1} parent=1 // pred_check
      _
    $region39: #{tpu_custom_call.1} parent=1 // pred_check_branch
      %77 = sbr.rel (0) target = $region41
    $region40: #{tpu_custom_call.1} parent=1 // pred_region
      %78 = dma.done [#allocation9], 6144
    $region41: #{tpu_custom_call.1} parent=1 // pred_fallthru
      _
    // Predicated region
    $region42: #{tpu_custom_call.1} parent=1 // pred_check
      _
    $region43: #{tpu_custom_call.1} parent=1 // pred_check_branch
      %80 = sbr.rel (0) target = $region45
    $region44: #{tpu_custom_call.1} parent=1 // pred_region
      %81 = dma.done [#allocation12], 2048
    $region45: #{tpu_custom_call.1} parent=1 // pred_fallthru
      _
    %p82 = scmp.eq.s32.totalorder 0, 0
    // Predicated region
    $region46: #{tpu_custom_call.1} parent=1 // pred_check
      %p83 = pneg %p82
    $region47: #{tpu_custom_call.1} parent=1 // pred_check_branch
      %85 = sbr.rel (%p83) target = $region49
    $region48: #{tpu_custom_call.1} parent=1 // pred_region
      %86 = vst [vmem:[#allocation4] sm:$0xff] 0.0
    $region49: #{tpu_custom_call.1} parent=1 // pred_fallthru
      _
    %v87 = vld [vmem:[#allocation5] sm:$0xff]
    %v88 = vld [vmem:[#allocation5 + $0x8] sm:$0xff]
    %v89 = vld [vmem:[#allocation5 + $0x10] sm:$0xff]
    %v90 = vld [vmem:[#allocation5 + $0x18] sm:$0xff]
    %v91 = vld [vmem:[#allocation5 + $0x20] sm:$0xff]
    %v92 = vld [vmem:[#allocation5 + $0x28] sm:$0xff]
    %v93 = vld [vmem:[#allocation5 + $0x30] sm:$0xff]
    %v94 = vld [vmem:[#allocation5 + $0x38] sm:$0xff]
    %v95 = vld [vmem:[#allocation8] sm:$0xff]
    %v96 = vld [vmem:[#allocation8 + $0x8] sm:$0xff]
    %v97 = vld [vmem:[#allocation8 + $0x10] sm:$0xff]
    %v98 = vld [vmem:[#allocation8 + $0x18] sm:$0xff]
    %v99 = vld [vmem:[#allocation8 + $0x20] sm:$0xff]
    %v100 = vld [vmem:[#allocation8 + $0x28] sm:$0xff]
    %v101 = vld [vmem:[#allocation8 + $0x30] sm:$0xff]
    %v102 = vld [vmem:[#allocation8 + $0x38] sm:$0xff]
    %v103 = vld [vmem:[#allocation8 + $0x40] sm:$0xff]
    %v104 = vld [vmem:[#allocation8 + $0x48] sm:$0xff]
    %v105 = vld [vmem:[#allocation8 + $0x50] sm:$0xff]
    %v106 = vld [vmem:[#allocation8 + $0x58] sm:$0xff]
    %v107 = vld [vmem:[#allocation8 + $0x60] sm:$0xff]
    %v108 = vld [vmem:[#allocation8 + $0x68] sm:$0xff]
    %v109 = vld [vmem:[#allocation8 + $0x70] sm:$0xff]
    %v110 = vld [vmem:[#allocation8 + $0x78] sm:$0xff]
    %v111 = vld [vmem:[#allocation8 + $0x80] sm:$0xff]
    %v112 = vld [vmem:[#allocation8 + $0x88] sm:$0xff]
    %v113 = vld [vmem:[#allocation8 + $0x90] sm:$0xff]
    %v114 = vld [vmem:[#allocation8 + $0x98] sm:$0xff]
    %v115 = vld [vmem:[#allocation8 + $0xa0] sm:$0xff]
    %v116 = vld [vmem:[#allocation8 + $0xa8] sm:$0xff]
    %v117 = vld [vmem:[#allocation8 + $0xb0] sm:$0xff]
    %v118 = vld [vmem:[#allocation8 + $0xb8] sm:$0xff]
    %v119 = vld [vmem:[#allocation8 + $0xc0] sm:$0xff]
    %v120 = vld [vmem:[#allocation8 + $0xc8] sm:$0xff]
    %v121 = vld [vmem:[#allocation8 + $0xd0] sm:$0xff]
    %v122 = vld [vmem:[#allocation8 + $0xd8] sm:$0xff]
    %v123 = vld [vmem:[#allocation8 + $0xe0] sm:$0xff]
    %v124 = vld [vmem:[#allocation8 + $0xe8] sm:$0xff]
    %v125 = vld [vmem:[#allocation8 + $0xf0] sm:$0xff]
    %v126 = vld [vmem:[#allocation8 + $0xf8] sm:$0xff]
    %v127 = vld [vmem:[#allocation8 + $0x100] sm:$0xff]
    %v128 = vld [vmem:[#allocation8 + $0x108] sm:$0xff]
    %v129 = vld [vmem:[#allocation8 + $0x110] sm:$0xff]
    %v130 = vld [vmem:[#allocation8 + $0x118] sm:$0xff]
    %v131 = vld [vmem:[#allocation8 + $0x120] sm:$0xff]
    %v132 = vld [vmem:[#allocation8 + $0x128] sm:$0xff]
    %v133 = vld [vmem:[#allocation8 + $0x130] sm:$0xff]
    %v134 = vld [vmem:[#allocation8 + $0x138] sm:$0xff]
    %v135 = vld [vmem:[#allocation8 + $0x140] sm:$0xff]
    %v136 = vld [vmem:[#allocation8 + $0x148] sm:$0xff]
    %v137 = vld [vmem:[#allocation8 + $0x150] sm:$0xff]
    %v138 = vld [vmem:[#allocation8 + $0x158] sm:$0xff]
    %v139 = vld [vmem:[#allocation8 + $0x160] sm:$0xff]
    %v140 = vld [vmem:[#allocation8 + $0x168] sm:$0xff]
    %v141 = vld [vmem:[#allocation8 + $0x170] sm:$0xff]
    %v142 = vld [vmem:[#allocation8 + $0x178] sm:$0xff]
    %v143 = vld [vmem:[%s3] sm:$0x7]
    %v145 = vlaneseq
    %v146 = vshrl.u32 %v145, 7
    %v147 = vsub.s32 0, %v146
    %v148 = vrot.slane %v143, %v147
    %v149 = vlaneseq
    %v150 = vshrl.u32 %v149, 7
    %v151 = vsub.s32 1, %v150
    %v152 = vrot.slane %v143, %v151
    %v153 = vlaneseq
    %v154 = vshrl.u32 %v153, 7
    %v155 = vsub.s32 2, %v154
    %v156 = vrot.slane %v143, %v155
    %160 = vmatprep.subr.mxu0 %v141
    %161 = vmatpush1.msra.mxu0 %v140
    %162 = vmatprep.subr.mxu0 %v138
    %163 = vmatpush1.msra.mxu0 %v137
    %164 = vmatprep.subr.mxu0 %v135
    %165 = vmatpush1.msra.mxu0 %v134
    %166 = vmatprep.subr.mxu0 %v132
    %167 = vmatpush1.msra.mxu0 %v131
    %168 = vmatprep.subr.mxu0 %v129
    %169 = vmatpush1.msra.mxu0 %v128
    %170 = vmatprep.subr.mxu0 %v126
    %171 = vmatpush1.msra.mxu0 %v125
    %172 = vmatprep.subr.mxu0 %v123
    %173 = vmatpush1.msra.mxu0 %v122
    %174 = vmatprep.subr.mxu0 %v120
    %175 = vmatpush1.msra.mxu0 %v119
    %176 = vmatprep.subr.mxu0 %v117
    %177 = vmatpush1.msra.mxu0 %v116
    %178 = vmatprep.subr.mxu0 %v114
    %179 = vmatpush1.msra.mxu0 %v113
    %180 = vmatprep.subr.mxu0 %v111
    %181 = vmatpush1.msra.mxu0 %v110
    %182 = vmatprep.subr.mxu0 %v108
    %183 = vmatpush1.msra.mxu0 %v107
    %184 = vmatprep.subr.mxu0 %v105
    %185 = vmatpush1.msra.mxu0 %v104
    %186 = vmatprep.subr.mxu0 %v102
    %187 = vmatpush1.msra.mxu0 %v101
    %188 = vmatprep.subr.mxu0 %v99
    %189 = vmatpush1.msra.mxu0 %v98
    %190 = vmatprep.subr.mxu0 %v96
    %191 = vmatpush1.msra.mxu0 %v95
    %192 = vmatprep.subr.mxu0 0.0
    %193 = vmatpush2.msra.mxu0 0.0
    %194 = vmatprep.subr.mxu0 0.0
    %195 = vmatpush2.msra.mxu0 0.0
    %196 = vmatprep.subr.mxu0 0.0
    %197 = vmatpush2.msra.mxu0 0.0
    %198 = vmatprep.subr.mxu0 0.0
    %199 = vmatpush2.msra.mxu0 0.0
    %200 = vmatprep.subr.mxu0 0.0
    %201 = vmatpush2.msra.mxu0 0.0
    %202 = vmatprep.subr.mxu0 0.0
    %203 = vmatpush2.msra.mxu0 0.0
    %204 = vmatprep.subr.mxu0 0.0
    %205 = vmatpush2.msra.mxu0 0.0
    %206 = vmatprep.subr.mxu0 0.0
    %207 = vmatpush2.msra.mxu0 0.0
    %208 = vmatprep.subr.mxu0 0.0
    %209 = vmatpush2.msra.mxu0 0.0
    %210 = vmatprep.subr.mxu0 0.0
    %211 = vmatpush2.msra.mxu0 0.0
    %212 = vmatprep.subr.mxu0 0.0
    %213 = vmatpush2.msra.mxu0 0.0
    %214 = vmatprep.subr.mxu0 0.0
    %215 = vmatpush2.msra.mxu0 0.0
    %216 = vmatprep.subr.mxu0 0.0
    %217 = vmatpush2.msra.mxu0 0.0
    %218 = vmatprep.subr.mxu0 0.0
    %219 = vmatpush2.msra.mxu0 0.0
    %220 = vmatprep.subr.mxu0 0.0
    %221 = vmatpush2.msra.mxu0 0.0
    %222 = vmatprep.subr.mxu0 0.0
    %223 = vmatpush2.msra.mxu0 0.0
    %224 = vmatprep.mubr.f32.mxu0 0.0
    %225 = vmatmul.mubr.f32.gmra.mxu0 %v87
    %v226 = vpop.f32.mrf.mxu0
    %v227 = vadd.f32 %v148, %v226
    %v228 = vpop.f32.mrf.mxu0
    %v229 = vadd.f32 %v152, %v228
    %230 = vmatprep.mubr.f32.mxu0 0.0
    %231 = vmatmul.mubr.f32.gmra.mxu0 %v88
    %v232 = vpop.f32.mrf.mxu0
    %v233 = vadd.f32 %v148, %v232
    %v234 = vpop.f32.mrf.mxu0
    %v235 = vadd.f32 %v152, %v234
    %236 = vmatprep.mubr.f32.mxu0 0.0
    %237 = vmatmul.mubr.f32.gmra.mxu0 %v89
    %v238 = vpop.f32.mrf.mxu0
    %v239 = vadd.f32 %v148, %v238
    %v240 = vpop.f32.mrf.mxu0
    %v241 = vadd.f32 %v152, %v240
    %242 = vmatprep.mubr.f32.mxu0 0.0
    %243 = vmatmul.mubr.f32.gmra.mxu0 %v90
    %v244 = vpop.f32.mrf.mxu0
    %v245 = vadd.f32 %v148, %v244
    %v246 = vpop.f32.mrf.mxu0
    %v247 = vadd.f32 %v152, %v246
    %248 = vmatprep.mubr.f32.mxu0 0.0
    %249 = vmatmul.mubr.f32.gmra.mxu0 %v91
    %v250 = vpop.f32.mrf.mxu0
    %v251 = vadd.f32 %v148, %v250
    %v252 = vpop.f32.mrf.mxu0
    %v253 = vadd.f32 %v152, %v252
    %254 = vmatprep.mubr.f32.mxu0 0.0
    %255 = vmatmul.mubr.f32.gmra.mxu0 %v92
    %v256 = vpop.f32.mrf.mxu0
    %v257 = vadd.f32 %v148, %v256
    %v258 = vpop.f32.mrf.mxu0
    %v259 = vadd.f32 %v152, %v258
    %260 = vmatprep.mubr.f32.mxu0 0.0
    %261 = vmatmul.mubr.f32.gmra.mxu0 %v93
    %v262 = vpop.f32.mrf.mxu0
    %v263 = vadd.f32 %v148, %v262
    %v264 = vpop.f32.mrf.mxu0
    %v265 = vadd.f32 %v152, %v264
    %266 = vmatprep.mubr.f32.mxu0 0.0
    %267 = vmatmul.mubr.f32.gmra.mxu0 %v94
    %v268 = vpop.f32.mrf.mxu0
    %v269 = vadd.f32 %v148, %v268
    %v270 = vpop.f32.mrf.mxu0
    %v271 = vadd.f32 %v152, %v270
    %272 = vdwg.mxu0
    %273 = vmatprep.subr.mxu0 0.0
    %274 = vmatpush1.msra.mxu0 %v142
    %275 = vmatprep.subr.mxu0 0.0
    %276 = vmatpush1.msra.mxu0 %v139
    %277 = vmatprep.subr.mxu0 0.0
    %278 = vmatpush1.msra.mxu0 %v136
    %279 = vmatprep.subr.mxu0 0.0
    %280 = vmatpush1.msra.mxu0 %v133
    %281 = vmatprep.subr.mxu0 0.0
    %282 = vmatpush1.msra.mxu0 %v130
    %283 = vmatprep.subr.mxu0 0.0
    %284 = vmatpush1.msra.mxu0 %v127
    %285 = vmatprep.subr.mxu0 0.0
    %286 = vmatpush1.msra.mxu0 %v124
    %287 = vmatprep.subr.mxu0 0.0
    %288 = vmatpush1.msra.mxu0 %v121
    %289 = vmatprep.subr.mxu0 0.0
    %290 = vmatpush1.msra.mxu0 %v118
    %291 = vmatprep.subr.mxu0 0.0
    %292 = vmatpush1.msra.mxu0 %v115
    %293 = vmatprep.subr.mxu0 0.0
    %294 = vmatpush1.msra.mxu0 %v112
    %295 = vmatprep.subr.mxu0 0.0
    %296 = vmatpush1.msra.mxu0 %v109
    %297 = vmatprep.subr.mxu0 0.0
    %298 = vmatpush1.msra.mxu0 %v106
    %299 = vmatprep.subr.mxu0 0.0
    %300 = vmatpush1.msra.mxu0 %v103
    %301 = vmatprep.subr.mxu0 0.0
    %302 = vmatpush1.msra.mxu0 %v100
    %303 = vmatprep.subr.mxu0 0.0
    %304 = vmatpush1.msra.mxu0 %v97
    %305 = vmatprep.subr.mxu0 0.0
    %306 = vmatpush2.msra.mxu0 0.0
    %307 = vmatprep.subr.mxu0 0.0
    %308 = vmatpush2.msra.mxu0 0.0
    %309 = vmatprep.subr.mxu0 0.0
    %310 = vmatpush2.msra.mxu0 0.0
    %311 = vmatprep.subr.mxu0 0.0
    %312 = vmatpush2.msra.mxu0 0.0
    %313 = vmatprep.subr.mxu0 0.0
    %314 = vmatpush2.msra.mxu0 0.0
    %315 = vmatprep.subr.mxu0 0.0
    %316 = vmatpush2.msra.mxu0 0.0
    %317 = vmatprep.subr.mxu0 0.0
    %318 = vmatpush2.msra.mxu0 0.0
    %319 = vmatprep.subr.mxu0 0.0
    %320 = vmatpush2.msra.mxu0 0.0
    %321 = vmatprep.subr.mxu0 0.0
    %322 = vmatpush2.msra.mxu0 0.0
    %323 = vmatprep.subr.mxu0 0.0
    %324 = vmatpush2.msra.mxu0 0.0
    %325 = vmatprep.subr.mxu0 0.0
    %326 = vmatpush2.msra.mxu0 0.0
    %327 = vmatprep.subr.mxu0 0.0
    %328 = vmatpush2.msra.mxu0 0.0
    %329 = vmatprep.subr.mxu0 0.0
    %330 = vmatpush2.msra.mxu0 0.0
    %331 = vmatprep.subr.mxu0 0.0
    %332 = vmatpush2.msra.mxu0 0.0
    %333 = vmatprep.subr.mxu0 0.0
    %334 = vmatpush2.msra.mxu0 0.0
    %335 = vmatprep.subr.mxu0 0.0
    %336 = vmatpush2.msra.mxu0 0.0
    %337 = vmatprep.mubr.f32.mxu0 0.0
    %338 = vmatmul.mubr.f32.gmra.mxu0 %v87
    %v339 = vpop.f32.mrf.mxu0
    %v340 = vadd.f32 %v156, %v339
    %v341 = vpop.f32.mrf.mxu0
    %342 = vmatprep.mubr.f32.mxu0 0.0
    %343 = vmatmul.mubr.f32.gmra.mxu0 %v88
    %v344 = vpop.f32.mrf.mxu0
    %v345 = vadd.f32 %v156, %v344
    %v346 = vpop.f32.mrf.mxu0
    %347 = vmatprep.mubr.f32.mxu0 0.0
    %348 = vmatmul.mubr.f32.gmra.mxu0 %v89
    %v349 = vpop.f32.mrf.mxu0
    %v350 = vadd.f32 %v156, %v349
    %v351 = vpop.f32.mrf.mxu0
    %352 = vmatprep.mubr.f32.mxu0 0.0
    %353 = vmatmul.mubr.f32.gmra.mxu0 %v90
    %v354 = vpop.f32.mrf.mxu0
    %v355 = vadd.f32 %v156, %v354
    %v356 = vpop.f32.mrf.mxu0
    %357 = vmatprep.mubr.f32.mxu0 0.0
    %358 = vmatmul.mubr.f32.gmra.mxu0 %v91
    %v359 = vpop.f32.mrf.mxu0
    %v360 = vadd.f32 %v156, %v359
    %v361 = vpop.f32.mrf.mxu0
    %362 = vmatprep.mubr.f32.mxu0 0.0
    %363 = vmatmul.mubr.f32.gmra.mxu0 %v92
    %v364 = vpop.f32.mrf.mxu0
    %v365 = vadd.f32 %v156, %v364
    %v366 = vpop.f32.mrf.mxu0
    %367 = vmatprep.mubr.f32.mxu0 0.0
    %368 = vmatmul.mubr.f32.gmra.mxu0 %v93
    %v369 = vpop.f32.mrf.mxu0
    %v370 = vadd.f32 %v156, %v369
    %v371 = vpop.f32.mrf.mxu0
    %372 = vmatprep.mubr.f32.mxu0 0.0
    %373 = vmatmul.mubr.f32.gmra.mxu0 %v94
    %v374 = vpop.f32.mrf.mxu0
    %v375 = vadd.f32 %v156, %v374
    %v376 = vpop.f32.mrf.mxu0
    %377 = vdwg.mxu0
    %378 = vst [vmem:[#allocation2] sm:$0xff] %v227
    %379 = vst [vmem:[#allocation2 + $0x8] sm:$0xff] %v229
    %380 = vst [vmem:[#allocation2 + $0x10] sm:$0xff] %v340
    %381 = vst [vmem:[#allocation2 + $0x18] sm:$0xff] %v233
    %382 = vst [vmem:[#allocation2 + $0x20] sm:$0xff] %v235
    %383 = vst [vmem:[#allocation2 + $0x28] sm:$0xff] %v345
    %384 = vst [vmem:[#allocation2 + $0x30] sm:$0xff] %v239
    %385 = vst [vmem:[#allocation2 + $0x38] sm:$0xff] %v241
    %386 = vst [vmem:[#allocation2 + $0x40] sm:$0xff] %v350
    %387 = vst [vmem:[#allocation2 + $0x48] sm:$0xff] %v245
    %388 = vst [vmem:[#allocation2 + $0x50] sm:$0xff] %v247
    %389 = vst [vmem:[#allocation2 + $0x58] sm:$0xff] %v355
    %390 = vst [vmem:[#allocation2 + $0x60] sm:$0xff] %v251
    %391 = vst [vmem:[#allocation2 + $0x68] sm:$0xff] %v253
    %392 = vst [vmem:[#allocation2 + $0x70] sm:$0xff] %v360
    %393 = vst [vmem:[#allocation2 + $0x78] sm:$0xff] %v257
    %394 = vst [vmem:[#allocation2 + $0x80] sm:$0xff] %v259
    %395 = vst [vmem:[#allocation2 + $0x88] sm:$0xff] %v365
    %396 = vst [vmem:[#allocation2 + $0x90] sm:$0xff] %v263
    %397 = vst [vmem:[#allocation2 + $0x98] sm:$0xff] %v265
    %398 = vst [vmem:[#allocation2 + $0xa0] sm:$0xff] %v370
    %399 = vst [vmem:[#allocation2 + $0xa8] sm:$0xff] %v269
    %400 = vst [vmem:[#allocation2 + $0xb0] sm:$0xff] %v271
    %401 = vst [vmem:[#allocation2 + $0xb8] sm:$0xff] %v375
    %v402 = vld [vmem:[#allocation10] sm:$0xff]
    %v403 = vld [vmem:[#allocation10 + $0x8] sm:$0xff]
    %v404 = vld [vmem:[#allocation10 + $0x10] sm:$0xff]
    %v405 = vld [vmem:[#allocation10 + $0x18] sm:$0xff]
    %v406 = vld [vmem:[#allocation10 + $0x20] sm:$0xff]
    %v407 = vld [vmem:[#allocation10 + $0x28] sm:$0xff]
    %v408 = vld [vmem:[#allocation10 + $0x30] sm:$0xff]
    %v409 = vld [vmem:[#allocation10 + $0x38] sm:$0xff]
    %v410 = vld [vmem:[#allocation10 + $0x40] sm:$0xff]
    %v411 = vld [vmem:[#allocation10 + $0x48] sm:$0xff]
    %v412 = vld [vmem:[#allocation10 + $0x50] sm:$0xff]
    %v413 = vld [vmem:[#allocation10 + $0x58] sm:$0xff]
    %v414 = vld [vmem:[#allocation10 + $0x60] sm:$0xff]
    %v415 = vld [vmem:[#allocation10 + $0x68] sm:$0xff]
    %v416 = vld [vmem:[#allocation10 + $0x70] sm:$0xff]
    %v417 = vld [vmem:[#allocation10 + $0x78] sm:$0xff]
    %v418 = vld [vmem:[#allocation10 + $0x80] sm:$0xff]
    %v419 = vld [vmem:[#allocation10 + $0x88] sm:$0xff]
    %v420 = vld [vmem:[#allocation10 + $0x90] sm:$0xff]
    %v421 = vld [vmem:[#allocation10 + $0x98] sm:$0xff]
    %v422 = vld [vmem:[#allocation10 + $0xa0] sm:$0xff]
    %v423 = vld [vmem:[#allocation10 + $0xa8] sm:$0xff]
    %v424 = vld [vmem:[#allocation10 + $0xb0] sm:$0xff]
    %v425 = vld [vmem:[#allocation10 + $0xb8] sm:$0xff]
    %v426 = vld [vmem:[#allocation10 + $0xc0] sm:$0xff]
    %v427 = vld [vmem:[#allocation10 + $0xc8] sm:$0xff]
    %v428 = vld [vmem:[#allocation10 + $0xd0] sm:$0xff]
    %v429 = vld [vmem:[#allocation10 + $0xd8] sm:$0xff]
    %v430 = vld [vmem:[#allocation10 + $0xe0] sm:$0xff]
    %v431 = vld [vmem:[#allocation10 + $0xe8] sm:$0xff]
    %v432 = vld [vmem:[#allocation10 + $0xf0] sm:$0xff]
    %v433 = vld [vmem:[#allocation10 + $0xf8] sm:$0xff]
    %v434 = vld [vmem:[#allocation10 + $0x100] sm:$0xff]
    %v435 = vld [vmem:[#allocation10 + $0x108] sm:$0xff]
    %v436 = vld [vmem:[#allocation10 + $0x110] sm:$0xff]
    %v437 = vld [vmem:[#allocation10 + $0x118] sm:$0xff]
    %v438 = vld [vmem:[#allocation10 + $0x120] sm:$0xff]
    %v439 = vld [vmem:[#allocation10 + $0x128] sm:$0xff]
    %v440 = vld [vmem:[#allocation10 + $0x130] sm:$0xff]
    %v441 = vld [vmem:[#allocation10 + $0x138] sm:$0xff]
    %v442 = vld [vmem:[#allocation10 + $0x140] sm:$0xff]
    %v443 = vld [vmem:[#allocation10 + $0x148] sm:$0xff]
    %v444 = vld [vmem:[#allocation10 + $0x150] sm:$0xff]
    %v445 = vld [vmem:[#allocation10 + $0x158] sm:$0xff]
    %v446 = vld [vmem:[#allocation10 + $0x160] sm:$0xff]
    %v447 = vld [vmem:[#allocation10 + $0x168] sm:$0xff]
    %v448 = vld [vmem:[#allocation10 + $0x170] sm:$0xff]
    %v449 = vld [vmem:[#allocation10 + $0x178] sm:$0xff]
    %v450 = vld [vmem:[%s4] sm:$0x1]
    %v451 = vld [vmem:[#allocation4] sm:$0xff]
    %v452 = vld [vmem:[#allocation2] sm:$0xff]
    %v453 = vld [vmem:[#allocation2 + $0x8] sm:$0xff]
    %v454 = vld [vmem:[#allocation2 + $0x10] sm:$0xff]
    %455 = vmatprep.subr.mxu0 %v448
    %456 = vmatpush1.msra.mxu0 %v447
    %457 = vmatprep.subr.mxu0 %v445
    %458 = vmatpush1.msra.mxu0 %v444
    %459 = vmatprep.subr.mxu0 %v442
    %460 = vmatpush1.msra.mxu0 %v441
    %461 = vmatprep.subr.mxu0 %v439
    %462 = vmatpush1.msra.mxu0 %v438
    %463 = vmatprep.subr.mxu0 %v436
    %464 = vmatpush1.msra.mxu0 %v435
    %465 = vmatprep.subr.mxu0 %v433
    %466 = vmatpush1.msra.mxu0 %v432
    %467 = vmatprep.subr.mxu0 %v430
    %468 = vmatpush1.msra.mxu0 %v429
    %469 = vmatprep.subr.mxu0 %v427
    %470 = vmatpush1.msra.mxu0 %v426
    %471 = vmatprep.subr.mxu0 %v424
    %472 = vmatpush1.msra.mxu0 %v423
    %473 = vmatprep.subr.mxu0 %v421
    %474 = vmatpush1.msra.mxu0 %v420
    %475 = vmatprep.subr.mxu0 %v418
    %476 = vmatpush1.msra.mxu0 %v417
    %477 = vmatprep.subr.mxu0 %v415
    %478 = vmatpush1.msra.mxu0 %v414
    %479 = vmatprep.subr.mxu0 %v412
    %480 = vmatpush1.msra.mxu0 %v411
    %481 = vmatprep.subr.mxu0 %v409
    %482 = vmatpush1.msra.mxu0 %v408
    %483 = vmatprep.subr.mxu0 %v406
    %484 = vmatpush1.msra.mxu0 %v405
    %485 = vmatprep.subr.mxu0 %v403
    %486 = vmatpush1.msra.mxu0 %v402
    %487 = vmatprep.subr.mxu0 0.0
    %488 = vmatpush2.msra.mxu0 0.0
    %489 = vmatprep.subr.mxu0 0.0
    %490 = vmatpush2.msra.mxu0 0.0
    %491 = vmatprep.subr.mxu0 0.0
    %492 = vmatpush2.msra.mxu0 0.0
    %493 = vmatprep.subr.mxu0 0.0
    %494 = vmatpush2.msra.mxu0 0.0
    %495 = vmatprep.subr.mxu0 0.0
    %496 = vmatpush2.msra.mxu0 0.0
    %497 = vmatprep.subr.mxu0 0.0
    %498 = vmatpush2.msra.mxu0 0.0
    %499 = vmatprep.subr.mxu0 0.0
    %500 = vmatpush2.msra.mxu0 0.0
    %501 = vmatprep.subr.mxu0 0.0
    %502 = vmatpush2.msra.mxu0 0.0
    %503 = vmatprep.subr.mxu0 0.0
    %504 = vmatpush2.msra.mxu0 0.0
    %505 = vmatprep.subr.mxu0 0.0
    %506 = vmatpush2.msra.mxu0 0.0
    %507 = vmatprep.subr.mxu0 0.0
    %508 = vmatpush2.msra.mxu0 0.0
    %509 = vmatprep.subr.mxu0 0.0
    %510 = vmatpush2.msra.mxu0 0.0
    %511 = vmatprep.subr.mxu0 0.0
    %512 = vmatpush2.msra.mxu0 0.0
    %513 = vmatprep.subr.mxu0 0.0
    %514 = vmatpush2.msra.mxu0 0.0
    %515 = vmatprep.subr.mxu0 0.0
    %516 = vmatpush2.msra.mxu0 0.0
    %517 = vmatprep.subr.mxu0 0.0
    %518 = vmatpush2.msra.mxu0 0.0
    %519 = vmatprep.mubr.f32.mxu0 0.0
    %520 = vmatmul.mubr.f32.gmra.mxu0 %v451
    %v521 = vpop.f32.mrf.mxu0
    %v522 = vadd.f32 0.0, %v521
    %v523 = vpop.f32.mrf.mxu0
    %v524 = vadd.f32 0.0, %v523
    %525 = vdwg.mxu0
    %526 = vmatprep.subr.mxu0 0.0
    %527 = vmatpush1.msra.mxu0 %v449
    %528 = vmatprep.subr.mxu0 0.0
    %529 = vmatpush1.msra.mxu0 %v446
    %530 = vmatprep.subr.mxu0 0.0
    %531 = vmatpush1.msra.mxu0 %v443
    %532 = vmatprep.subr.mxu0 0.0
    %533 = vmatpush1.msra.mxu0 %v440
    %534 = vmatprep.subr.mxu0 0.0
    %535 = vmatpush1.msra.mxu0 %v437
    %536 = vmatprep.subr.mxu0 0.0
    %537 = vmatpush1.msra.mxu0 %v434
    %538 = vmatprep.subr.mxu0 0.0
    %539 = vmatpush1.msra.mxu0 %v431
    %540 = vmatprep.subr.mxu0 0.0
    %541 = vmatpush1.msra.mxu0 %v428
    %542 = vmatprep.subr.mxu0 0.0
    %543 = vmatpush1.msra.mxu0 %v425
    %544 = vmatprep.subr.mxu0 0.0
    %545 = vmatpush1.msra.mxu0 %v422
    %546 = vmatprep.subr.mxu0 0.0
    %547 = vmatpush1.msra.mxu0 %v419
    %548 = vmatprep.subr.mxu0 0.0
    %549 = vmatpush1.msra.mxu0 %v416
    %550 = vmatprep.subr.mxu0 0.0
    %551 = vmatpush1.msra.mxu0 %v413
    %552 = vmatprep.subr.mxu0 0.0
    %553 = vmatpush1.msra.mxu0 %v410
    %554 = vmatprep.subr.mxu0 0.0
    %555 = vmatpush1.msra.mxu0 %v407
    %556 = vmatprep.subr.mxu0 0.0
    %557 = vmatpush1.msra.mxu0 %v404
    %558 = vmatprep.subr.mxu0 0.0
    %559 = vmatpush2.msra.mxu0 0.0
    %560 = vmatprep.subr.mxu0 0.0
    %561 = vmatpush2.msra.mxu0 0.0
    %562 = vmatprep.subr.mxu0 0.0
    %563 = vmatpush2.msra.mxu0 0.0
    %564 = vmatprep.subr.mxu0 0.0
    %565 = vmatpush2.msra.mxu0 0.0
    %566 = vmatprep.subr.mxu0 0.0
    %567 = vmatpush2.msra.mxu0 0.0
    %568 = vmatprep.subr.mxu0 0.0
    %569 = vmatpush2.msra.mxu0 0.0
    %570 = vmatprep.subr.mxu0 0.0
    %571 = vmatpush2.msra.mxu0 0.0
    %572 = vmatprep.subr.mxu0 0.0
    %573 = vmatpush2.msra.mxu0 0.0
    %574 = vmatprep.subr.mxu0 0.0
    %575 = vmatpush2.msra.mxu0 0.0
    %576 = vmatprep.subr.mxu0 0.0
    %577 = vmatpush2.msra.mxu0 0.0
    %578 = vmatprep.subr.mxu0 0.0
    %579 = vmatpush2.msra.mxu0 0.0
    %580 = vmatprep.subr.mxu0 0.0
    %581 = vmatpush2.msra.mxu0 0.0
    %582 = vmatprep.subr.mxu0 0.0
    %583 = vmatpush2.msra.mxu0 0.0
    %584 = vmatprep.subr.mxu0 0.0
    %585 = vmatpush2.msra.mxu0 0.0
    %586 = vmatprep.subr.mxu0 0.0
    %587 = vmatpush2.msra.mxu0 0.0
    %588 = vmatprep.subr.mxu0 0.0
    %589 = vmatpush2.msra.mxu0 0.0
    %590 = vmatprep.mubr.f32.mxu0 0.0
    %591 = vmatmul.mubr.f32.gmra.mxu0 %v451
    %v592 = vpop.f32.mrf.mxu0
    %v593 = vadd.f32 0.0, %v592
    %v594 = vpop.f32.mrf.mxu0
    %595 = vdwg.mxu0
    %v596 = vadd.f32 %v452, %v522
    %v597 = vxor.u32 %v596, 2147483648
    %v598 = vmul.f32 %v597, 1.442695
    %v599 = vpow.pop %v598
    %v600 = vadd.f32 %v599, 1.0
    %v601 = vrcp.pop %v600
    %v602 = vmul.f32 1.0, %v601
    %v603 = vadd.f32 %v453, %v524
    %v604 = vxor.u32 %v603, 2147483648
    %v605 = vmul.f32 %v604, 1.442695
    %v606 = vpow.pop %v605
    %v607 = vadd.f32 %v606, 1.0
    %v608 = vrcp.pop %v607
    %v609 = vmul.f32 1.0, %v608
    %v611 = vlaneseq
    %v612 = vshrl.u32 %v611, 7
    %v613 = vsub.s32 0, %v612
    %v614 = vrot.slane %v450, %v613
    %v616 = vadd.f32 %v593, %v614
    %v617 = vmul.f32 %v602, %v616
    %v618 = vadd.f32 %v454, %v617
    %v619 = vtanh.pop %v618
    %v620 = vsub.f32 1.0, %v609
    %v621 = vmul.f32 %v620, %v619
    %v622 = vmul.f32 %v609, %v451
    %v623 = vadd.f32 %v621, %v622
    %624 = vst [vmem:[#allocation3] sm:$0xff] %v623
    %s625 = scalar_lea.vmem [#allocation2], 24
    %v626 = vld [vmem:[%s625] sm:$0xff]
    %v627 = vld [vmem:[%s625 + $0x8] sm:$0xff]
    %v628 = vld [vmem:[%s625 + $0x10] sm:$0xff]
    %629 = vmatprep.subr.mxu0 %v448
    %630 = vmatpush1.msra.mxu0 %v447
    %631 = vmatprep.subr.mxu0 %v445
    %632 = vmatpush1.msra.mxu0 %v444
    %633 = vmatprep.subr.mxu0 %v442
    %634 = vmatpush1.msra.mxu0 %v441
    %635 = vmatprep.subr.mxu0 %v439
    %636 = vmatpush1.msra.mxu0 %v438
    %637 = vmatprep.subr.mxu0 %v436
    %638 = vmatpush1.msra.mxu0 %v435
    %639 = vmatprep.subr.mxu0 %v433
    %640 = vmatpush1.msra.mxu0 %v432
    %641 = vmatprep.subr.mxu0 %v430
    %642 = vmatpush1.msra.mxu0 %v429
    %643 = vmatprep.subr.mxu0 %v427
    %644 = vmatpush1.msra.mxu0 %v426
    %645 = vmatprep.subr.mxu0 %v424
    %646 = vmatpush1.msra.mxu0 %v423
    %647 = vmatprep.subr.mxu0 %v421
    %648 = vmatpush1.msra.mxu0 %v420
    %649 = vmatprep.subr.mxu0 %v418
    %650 = vmatpush1.msra.mxu0 %v417
    %651 = vmatprep.subr.mxu0 %v415
    %652 = vmatpush1.msra.mxu0 %v414
    %653 = vmatprep.subr.mxu0 %v412
    %654 = vmatpush1.msra.mxu0 %v411
    %655 = vmatprep.subr.mxu0 %v409
    %656 = vmatpush1.msra.mxu0 %v408
    %657 = vmatprep.subr.mxu0 %v406
    %658 = vmatpush1.msra.mxu0 %v405
    %659 = vmatprep.subr.mxu0 %v403
    %660 = vmatpush1.msra.mxu0 %v402
    %661 = vmatprep.subr.mxu0 0.0
    %662 = vmatpush2.msra.mxu0 0.0
    %663 = vmatprep.subr.mxu0 0.0
    %664 = vmatpush2.msra.mxu0 0.0
    %665 = vmatprep.subr.mxu0 0.0
    %666 = vmatpush2.msra.mxu0 0.0
    %667 = vmatprep.subr.mxu0 0.0
    %668 = vmatpush2.msra.mxu0 0.0
    %669 = vmatprep.subr.mxu0 0.0
    %670 = vmatpush2.msra.mxu0 0.0
    %671 = vmatprep.subr.mxu0 0.0
    %672 = vmatpush2.msra.mxu0 0.0
    %673 = vmatprep.subr.mxu0 0.0
    %674 = vmatpush2.msra.mxu0 0.0
    %675 = vmatprep.subr.mxu0 0.0
    %676 = vmatpush2.msra.mxu0 0.0
    %677 = vmatprep.subr.mxu0 0.0
    %678 = vmatpush2.msra.mxu0 0.0
    %679 = vmatprep.subr.mxu0 0.0
    %680 = vmatpush2.msra.mxu0 0.0
    %681 = vmatprep.subr.mxu0 0.0
    %682 = vmatpush2.msra.mxu0 0.0
    %683 = vmatprep.subr.mxu0 0.0
    %684 = vmatpush2.msra.mxu0 0.0
    %685 = vmatprep.subr.mxu0 0.0
    %686 = vmatpush2.msra.mxu0 0.0
    %687 = vmatprep.subr.mxu0 0.0
    %688 = vmatpush2.msra.mxu0 0.0
    %689 = vmatprep.subr.mxu0 0.0
    %690 = vmatpush2.msra.mxu0 0.0
    %691 = vmatprep.subr.mxu0 0.0
    %692 = vmatpush2.msra.mxu0 0.0
    %693 = vmatprep.mubr.f32.mxu0 0.0
    %694 = vmatmul.mubr.f32.gmra.mxu0 %v623
    %v695 = vpop.f32.mrf.mxu0
    %v696 = vadd.f32 0.0, %v695
    %v697 = vpop.f32.mrf.mxu0
    %v698 = vadd.f32 0.0, %v697
    %699 = vdwg.mxu0
    %700 = vmatprep.subr.mxu0 0.0
    %701 = vmatpush1.msra.mxu0 %v449
    %702 = vmatprep.subr.mxu0 0.0
    %703 = vmatpush1.msra.mxu0 %v446
    %704 = vmatprep.subr.mxu0 0.0
    %705 = vmatpush1.msra.mxu0 %v443
    %706 = vmatprep.subr.mxu0 0.0
    %707 = vmatpush1.msra.mxu0 %v440
    %708 = vmatprep.subr.mxu0 0.0
    %709 = vmatpush1.msra.mxu0 %v437
    %710 = vmatprep.subr.mxu0 0.0
    %711 = vmatpush1.msra.mxu0 %v434
    %712 = vmatprep.subr.mxu0 0.0
    %713 = vmatpush1.msra.mxu0 %v431
    %714 = vmatprep.subr.mxu0 0.0
    %715 = vmatpush1.msra.mxu0 %v428
    %716 = vmatprep.subr.mxu0 0.0
    %717 = vmatpush1.msra.mxu0 %v425
    %718 = vmatprep.subr.mxu0 0.0
    %719 = vmatpush1.msra.mxu0 %v422
    %720 = vmatprep.subr.mxu0 0.0
    %721 = vmatpush1.msra.mxu0 %v419
    %722 = vmatprep.subr.mxu0 0.0
    %723 = vmatpush1.msra.mxu0 %v416
    %724 = vmatprep.subr.mxu0 0.0
    %725 = vmatpush1.msra.mxu0 %v413
    %726 = vmatprep.subr.mxu0 0.0
    %727 = vmatpush1.msra.mxu0 %v410
    %728 = vmatprep.subr.mxu0 0.0
    %729 = vmatpush1.msra.mxu0 %v407
    %730 = vmatprep.subr.mxu0 0.0
    %731 = vmatpush1.msra.mxu0 %v404
    %732 = vmatprep.subr.mxu0 0.0
    %733 = vmatpush2.msra.mxu0 0.0
    %734 = vmatprep.subr.mxu0 0.0
    %735 = vmatpush2.msra.mxu0 0.0
    %736 = vmatprep.subr.mxu0 0.0
    %737 = vmatpush2.msra.mxu0 0.0
    %738 = vmatprep.subr.mxu0 0.0
    %739 = vmatpush2.msra.mxu0 0.0
    %740 = vmatprep.subr.mxu0 0.0
    %741 = vmatpush2.msra.mxu0 0.0
    %742 = vmatprep.subr.mxu0 0.0
    %743 = vmatpush2.msra.mxu0 0.0
    %744 = vmatprep.subr.mxu0 0.0
    %745 = vmatpush2.msra.mxu0 0.0
    %746 = vmatprep.subr.mxu0 0.0
    %747 = vmatpush2.msra.mxu0 0.0
    %748 = vmatprep.subr.mxu0 0.0
    %749 = vmatpush2.msra.mxu0 0.0
    %750 = vmatprep.subr.mxu0 0.0
    %751 = vmatpush2.msra.mxu0 0.0
    %752 = vmatprep.subr.mxu0 0.0
    %753 = vmatpush2.msra.mxu0 0.0
    %754 = vmatprep.subr.mxu0 0.0
    %755 = vmatpush2.msra.mxu0 0.0
    %756 = vmatprep.subr.mxu0 0.0
    %757 = vmatpush2.msra.mxu0 0.0
    %758 = vmatprep.subr.mxu0 0.0
    %759 = vmatpush2.msra.mxu0 0.0
    %760 = vmatprep.subr.mxu0 0.0
    %761 = vmatpush2.msra.mxu0 0.0
    %762 = vmatprep.subr.mxu0 0.0
    %763 = vmatpush2.msra.mxu0 0.0
    %764 = vmatprep.mubr.f32.mxu0 0.0
    %765 = vmatmul.mubr.f32.gmra.mxu0 %v623
    %v766 = vpop.f32.mrf.mxu0
    %v767 = vadd.f32 0.0, %v766
    %v768 = vpop.f32.mrf.mxu0
    %769 = vdwg.mxu0
    %v770 = vadd.f32 %v626, %v696
    %v771 = vxor.u32 %v770, 2147483648
    %v772 = vmul.f32 %v771, 1.442695
    %v773 = vpow.pop %v772
    %v774 = vadd.f32 %v773, 1.0
    %v775 = vrcp.pop %v774
    %v776 = vmul.f32 1.0, %v775
    %v777 = vadd.f32 %v627, %v698
    %v778 = vxor.u32 %v777, 2147483648
    %v779 = vmul.f32 %v778, 1.442695
    %v780 = vpow.pop %v779
    %v781 = vadd.f32 %v780, 1.0
    %v782 = vrcp.pop %v781
    %v783 = vmul.f32 1.0, %v782
    %v784 = vadd.f32 %v767, %v614
    %v785 = vmul.f32 %v776, %v784
    %v786 = vadd.f32 %v628, %v785
    %v787 = vtanh.pop %v786
    %v788 = vsub.f32 1.0, %v783
    %v789 = vmul.f32 %v788, %v787
    %v790 = vmul.f32 %v783, %v623
    %v791 = vadd.f32 %v789, %v790
    %s792 = scalar_lea.vmem [#allocation3], 8
    %793 = vst [vmem:[%s792] sm:$0xff] %v791
    %s794 = scalar_lea.vmem [#allocation2], 48
    %v795 = vld [vmem:[%s794] sm:$0xff]
    %v796 = vld [vmem:[%s794 + $0x8] sm:$0xff]
    %v797 = vld [vmem:[%s794 + $0x10] sm:$0xff]
    %798 = vmatprep.subr.mxu0 %v448
    %799 = vmatpush1.msra.mxu0 %v447
    %800 = vmatprep.subr.mxu0 %v445
    %801 = vmatpush1.msra.mxu0 %v444
    %802 = vmatprep.subr.mxu0 %v442
    %803 = vmatpush1.msra.mxu0 %v441
    %804 = vmatprep.subr.mxu0 %v439
    %805 = vmatpush1.msra.mxu0 %v438
    %806 = vmatprep.subr.mxu0 %v436
    %807 = vmatpush1.msra.mxu0 %v435
    %808 = vmatprep.subr.mxu0 %v433
    %809 = vmatpush1.msra.mxu0 %v432
    %810 = vmatprep.subr.mxu0 %v430
    %811 = vmatpush1.msra.mxu0 %v429
    %812 = vmatprep.subr.mxu0 %v427
    %813 = vmatpush1.msra.mxu0 %v426
    %814 = vmatprep.subr.mxu0 %v424
    %815 = vmatpush1.msra.mxu0 %v423
    %816 = vmatprep.subr.mxu0 %v421
    %817 = vmatpush1.msra.mxu0 %v420
    %818 = vmatprep.subr.mxu0 %v418
    %819 = vmatpush1.msra.mxu0 %v417
    %820 = vmatprep.subr.mxu0 %v415
    %821 = vmatpush1.msra.mxu0 %v414
    %822 = vmatprep.subr.mxu0 %v412
    %823 = vmatpush1.msra.mxu0 %v411
    %824 = vmatprep.subr.mxu0 %v409
    %825 = vmatpush1.msra.mxu0 %v408
    %826 = vmatprep.subr.mxu0 %v406
    %827 = vmatpush1.msra.mxu0 %v405
    %828 = vmatprep.subr.mxu0 %v403
    %829 = vmatpush1.msra.mxu0 %v402
    %830 = vmatprep.subr.mxu0 0.0
    %831 = vmatpush2.msra.mxu0 0.0
    %832 = vmatprep.subr.mxu0 0.0
    %833 = vmatpush2.msra.mxu0 0.0
    %834 = vmatprep.subr.mxu0 0.0
    %835 = vmatpush2.msra.mxu0 0.0
    %836 = vmatprep.subr.mxu0 0.0
    %837 = vmatpush2.msra.mxu0 0.0
    %838 = vmatprep.subr.mxu0 0.0
    %839 = vmatpush2.msra.mxu0 0.0
    %840 = vmatprep.subr.mxu0 0.0
    %841 = vmatpush2.msra.mxu0 0.0
    %842 = vmatprep.subr.mxu0 0.0
    %843 = vmatpush2.msra.mxu0 0.0
    %844 = vmatprep.subr.mxu0 0.0
    %845 = vmatpush2.msra.mxu0 0.0
    %846 = vmatprep.subr.mxu0 0.0
    %847 = vmatpush2.msra.mxu0 0.0
    %848 = vmatprep.subr.mxu0 0.0
    %849 = vmatpush2.msra.mxu0 0.0
    %850 = vmatprep.subr.mxu0 0.0
    %851 = vmatpush2.msra.mxu0 0.0
    %852 = vmatprep.subr.mxu0 0.0
    %853 = vmatpush2.msra.mxu0 0.0
    %854 = vmatprep.subr.mxu0 0.0
    %855 = vmatpush2.msra.mxu0 0.0
    %856 = vmatprep.subr.mxu0 0.0
    %857 = vmatpush2.msra.mxu0 0.0
    %858 = vmatprep.subr.mxu0 0.0
    %859 = vmatpush2.msra.mxu0 0.0
    %860 = vmatprep.subr.mxu0 0.0
    %861 = vmatpush2.msra.mxu0 0.0
    %862 = vmatprep.mubr.f32.mxu0 0.0
    %863 = vmatmul.mubr.f32.gmra.mxu0 %v791
    %v864 = vpop.f32.mrf.mxu0
    %v865 = vadd.f32 0.0, %v864
    %v866 = vpop.f32.mrf.mxu0
    %v867 = vadd.f32 0.0, %v866
    %868 = vdwg.mxu0
    %869 = vmatprep.subr.mxu0 0.0
    %870 = vmatpush1.msra.mxu0 %v449
    %871 = vmatprep.subr.mxu0 0.0
    %872 = vmatpush1.msra.mxu0 %v446
    %873 = vmatprep.subr.mxu0 0.0
    %874 = vmatpush1.msra.mxu0 %v443
    %875 = vmatprep.subr.mxu0 0.0
    %876 = vmatpush1.msra.mxu0 %v440
    %877 = vmatprep.subr.mxu0 0.0
    %878 = vmatpush1.msra.mxu0 %v437
    %879 = vmatprep.subr.mxu0 0.0
    %880 = vmatpush1.msra.mxu0 %v434
    %881 = vmatprep.subr.mxu0 0.0
    %882 = vmatpush1.msra.mxu0 %v431
    %883 = vmatprep.subr.mxu0 0.0
    %884 = vmatpush1.msra.mxu0 %v428
    %885 = vmatprep.subr.mxu0 0.0
    %886 = vmatpush1.msra.mxu0 %v425
    %887 = vmatprep.subr.mxu0 0.0
    %888 = vmatpush1.msra.mxu0 %v422
    %889 = vmatprep.subr.mxu0 0.0
    %890 = vmatpush1.msra.mxu0 %v419
    %891 = vmatprep.subr.mxu0 0.0
    %892 = vmatpush1.msra.mxu0 %v416
    %893 = vmatprep.subr.mxu0 0.0
    %894 = vmatpush1.msra.mxu0 %v413
    %895 = vmatprep.subr.mxu0 0.0
    %896 = vmatpush1.msra.mxu0 %v410
    %897 = vmatprep.subr.mxu0 0.0
    %898 = vmatpush1.msra.mxu0 %v407
    %899 = vmatprep.subr.mxu0 0.0
    %900 = vmatpush1.msra.mxu0 %v404
    %901 = vmatprep.subr.mxu0 0.0
    %902 = vmatpush2.msra.mxu0 0.0
    %903 = vmatprep.subr.mxu0 0.0
    %904 = vmatpush2.msra.mxu0 0.0
    %905 = vmatprep.subr.mxu0 0.0
    %906 = vmatpush2.msra.mxu0 0.0
    %907 = vmatprep.subr.mxu0 0.0
    %908 = vmatpush2.msra.mxu0 0.0
    %909 = vmatprep.subr.mxu0 0.0
    %910 = vmatpush2.msra.mxu0 0.0
    %911 = vmatprep.subr.mxu0 0.0
    %912 = vmatpush2.msra.mxu0 0.0
    %913 = vmatprep.subr.mxu0 0.0
    %914 = vmatpush2.msra.mxu0 0.0
    %915 = vmatprep.subr.mxu0 0.0
    %916 = vmatpush2.msra.mxu0 0.0
    %917 = vmatprep.subr.mxu0 0.0
    %918 = vmatpush2.msra.mxu0 0.0
    %919 = vmatprep.subr.mxu0 0.0
    %920 = vmatpush2.msra.mxu0 0.0
    %921 = vmatprep.subr.mxu0 0.0
    %922 = vmatpush2.msra.mxu0 0.0
    %923 = vmatprep.subr.mxu0 0.0
    %924 = vmatpush2.msra.mxu0 0.0
    %925 = vmatprep.subr.mxu0 0.0
    %926 = vmatpush2.msra.mxu0 0.0
    %927 = vmatprep.subr.mxu0 0.0
    %928 = vmatpush2.msra.mxu0 0.0
    %929 = vmatprep.subr.mxu0 0.0
    %930 = vmatpush2.msra.mxu0 0.0
    %931 = vmatprep.subr.mxu0 0.0
    %932 = vmatpush2.msra.mxu0 0.0
    %933 = vmatprep.mubr.f32.mxu0 0.0
    %934 = vmatmul.mubr.f32.gmra.mxu0 %v791
    %v935 = vpop.f32.mrf.mxu0
    %v936 = vadd.f32 0.0, %v935
    %v937 = vpop.f32.mrf.mxu0
    %938 = vdwg.mxu0
    %v939 = vadd.f32 %v795, %v865
    %v940 = vxor.u32 %v939, 2147483648
    %v941 = vmul.f32 %v940, 1.442695
    %v942 = vpow.pop %v941
    %v943 = vadd.f32 %v942, 1.0
    %v944 = vrcp.pop %v943
    %v945 = vmul.f32 1.0, %v944
    %v946 = vadd.f32 %v796, %v867
    %v947 = vxor.u32 %v946, 2147483648
    %v948 = vmul.f32 %v947, 1.442695
    %v949 = vpow.pop %v948
    %v950 = vadd.f32 %v949, 1.0
    %v951 = vrcp.pop %v950
    %v952 = vmul.f32 1.0, %v951
    %v953 = vadd.f32 %v936, %v614
    %v954 = vmul.f32 %v945, %v953
    %v955 = vadd.f32 %v797, %v954
    %v956 = vtanh.pop %v955
    %v957 = vsub.f32 1.0, %v952
    %v958 = vmul.f32 %v957, %v956
    %v959 = vmul.f32 %v952, %v791
    %v960 = vadd.f32 %v958, %v959
    %s961 = scalar_lea.vmem [#allocation3], 16
    %962 = vst [vmem:[%s961] sm:$0xff] %v960
    %s963 = scalar_lea.vmem [#allocation2], 72
    %v964 = vld [vmem:[%s963] sm:$0xff]
    %v965 = vld [vmem:[%s963 + $0x8] sm:$0xff]
    %v966 = vld [vmem:[%s963 + $0x10] sm:$0xff]
    %967 = vmatprep.subr.mxu0 %v448
    %968 = vmatpush1.msra.mxu0 %v447
    %969 = vmatprep.subr.mxu0 %v445
    %970 = vmatpush1.msra.mxu0 %v444
    %971 = vmatprep.subr.mxu0 %v442
    %972 = vmatpush1.msra.mxu0 %v441
    %973 = vmatprep.subr.mxu0 %v439
    %974 = vmatpush1.msra.mxu0 %v438
    %975 = vmatprep.subr.mxu0 %v436
    %976 = vmatpush1.msra.mxu0 %v435
    %977 = vmatprep.subr.mxu0 %v433
    %978 = vmatpush1.msra.mxu0 %v432
    %979 = vmatprep.subr.mxu0 %v430
    %980 = vmatpush1.msra.mxu0 %v429
    %981 = vmatprep.subr.mxu0 %v427
    %982 = vmatpush1.msra.mxu0 %v426
    %983 = vmatprep.subr.mxu0 %v424
    %984 = vmatpush1.msra.mxu0 %v423
    %985 = vmatprep.subr.mxu0 %v421
    %986 = vmatpush1.msra.mxu0 %v420
    %987 = vmatprep.subr.mxu0 %v418
    %988 = vmatpush1.msra.mxu0 %v417
    %989 = vmatprep.subr.mxu0 %v415
    %990 = vmatpush1.msra.mxu0 %v414
    %991 = vmatprep.subr.mxu0 %v412
    %992 = vmatpush1.msra.mxu0 %v411
    %993 = vmatprep.subr.mxu0 %v409
    %994 = vmatpush1.msra.mxu0 %v408
    %995 = vmatprep.subr.mxu0 %v406
    %996 = vmatpush1.msra.mxu0 %v405
    %997 = vmatprep.subr.mxu0 %v403
    %998 = vmatpush1.msra.mxu0 %v402
    %999 = vmatprep.subr.mxu0 0.0
    %1000 = vmatpush2.msra.mxu0 0.0
    %1001 = vmatprep.subr.mxu0 0.0
    %1002 = vmatpush2.msra.mxu0 0.0
    %1003 = vmatprep.subr.mxu0 0.0
    %1004 = vmatpush2.msra.mxu0 0.0
    %1005 = vmatprep.subr.mxu0 0.0
    %1006 = vmatpush2.msra.mxu0 0.0
    %1007 = vmatprep.subr.mxu0 0.0
    %1008 = vmatpush2.msra.mxu0 0.0
    %1009 = vmatprep.subr.mxu0 0.0
    %1010 = vmatpush2.msra.mxu0 0.0
    %1011 = vmatprep.subr.mxu0 0.0
    %1012 = vmatpush2.msra.mxu0 0.0
    %1013 = vmatprep.subr.mxu0 0.0
    %1014 = vmatpush2.msra.mxu0 0.0
    %1015 = vmatprep.subr.mxu0 0.0
    %1016 = vmatpush2.msra.mxu0 0.0
    %1017 = vmatprep.subr.mxu0 0.0
    %1018 = vmatpush2.msra.mxu0 0.0
    %1019 = vmatprep.subr.mxu0 0.0
    %1020 = vmatpush2.msra.mxu0 0.0
    %1021 = vmatprep.subr.mxu0 0.0
    %1022 = vmatpush2.msra.mxu0 0.0
    %1023 = vmatprep.subr.mxu0 0.0
    %1024 = vmatpush2.msra.mxu0 0.0
    %1025 = vmatprep.subr.mxu0 0.0
    %1026 = vmatpush2.msra.mxu0 0.0
    %1027 = vmatprep.subr.mxu0 0.0
    %1028 = vmatpush2.msra.mxu0 0.0
    %1029 = vmatprep.subr.mxu0 0.0
    %1030 = vmatpush2.msra.mxu0 0.0
    %1031 = vmatprep.mubr.f32.mxu0 0.0
    %1032 = vmatmul.mubr.f32.gmra.mxu0 %v960
    %v1033 = vpop.f32.mrf.mxu0
    %v1034 = vadd.f32 0.0, %v1033
    %v1035 = vpop.f32.mrf.mxu0
    %v1036 = vadd.f32 0.0, %v1035
    %1037 = vdwg.mxu0
    %1038 = vmatprep.subr.mxu0 0.0
    %1039 = vmatpush1.msra.mxu0 %v449
    %1040 = vmatprep.subr.mxu0 0.0
    %1041 = vmatpush1.msra.mxu0 %v446
    %1042 = vmatprep.subr.mxu0 0.0
    %1043 = vmatpush1.msra.mxu0 %v443
    %1044 = vmatprep.subr.mxu0 0.0
    %1045 = vmatpush1.msra.mxu0 %v440
    %1046 = vmatprep.subr.mxu0 0.0
    %1047 = vmatpush1.msra.mxu0 %v437
    %1048 = vmatprep.subr.mxu0 0.0
    %1049 = vmatpush1.msra.mxu0 %v434
    %1050 = vmatprep.subr.mxu0 0.0
    %1051 = vmatpush1.msra.mxu0 %v431
    %1052 = vmatprep.subr.mxu0 0.0
    %1053 = vmatpush1.msra.mxu0 %v428
    %1054 = vmatprep.subr.mxu0 0.0
    %1055 = vmatpush1.msra.mxu0 %v425
    %1056 = vmatprep.subr.mxu0 0.0
    %1057 = vmatpush1.msra.mxu0 %v422
    %1058 = vmatprep.subr.mxu0 0.0
    %1059 = vmatpush1.msra.mxu0 %v419
    %1060 = vmatprep.subr.mxu0 0.0
    %1061 = vmatpush1.msra.mxu0 %v416
    %1062 = vmatprep.subr.mxu0 0.0
    %1063 = vmatpush1.msra.mxu0 %v413
    %1064 = vmatprep.subr.mxu0 0.0
    %1065 = vmatpush1.msra.mxu0 %v410
    %1066 = vmatprep.subr.mxu0 0.0
    %1067 = vmatpush1.msra.mxu0 %v407
    %1068 = vmatprep.subr.mxu0 0.0
    %1069 = vmatpush1.msra.mxu0 %v404
    %1070 = vmatprep.subr.mxu0 0.0
    %1071 = vmatpush2.msra.mxu0 0.0
    %1072 = vmatprep.subr.mxu0 0.0
    %1073 = vmatpush2.msra.mxu0 0.0
    %1074 = vmatprep.subr.mxu0 0.0
    %1075 = vmatpush2.msra.mxu0 0.0
    %1076 = vmatprep.subr.mxu0 0.0
    %1077 = vmatpush2.msra.mxu0 0.0
    %1078 = vmatprep.subr.mxu0 0.0
    %1079 = vmatpush2.msra.mxu0 0.0
    %1080 = vmatprep.subr.mxu0 0.0
    %1081 = vmatpush2.msra.mxu0 0.0
    %1082 = vmatprep.subr.mxu0 0.0
    %1083 = vmatpush2.msra.mxu0 0.0
    %1084 = vmatprep.subr.mxu0 0.0
    %1085 = vmatpush2.msra.mxu0 0.0
    %1086 = vmatprep.subr.mxu0 0.0
    %1087 = vmatpush2.msra.mxu0 0.0
    %1088 = vmatprep.subr.mxu0 0.0
    %1089 = vmatpush2.msra.mxu0 0.0
    %1090 = vmatprep.subr.mxu0 0.0
    %1091 = vmatpush2.msra.mxu0 0.0
    %1092 = vmatprep.subr.mxu0 0.0
    %1093 = vmatpush2.msra.mxu0 0.0
    %1094 = vmatprep.subr.mxu0 0.0
    %1095 = vmatpush2.msra.mxu0 0.0
    %1096 = vmatprep.subr.mxu0 0.0
    %1097 = vmatpush2.msra.mxu0 0.0
    %1098 = vmatprep.subr.mxu0 0.0
    %1099 = vmatpush2.msra.mxu0 0.0
    %1100 = vmatprep.subr.mxu0 0.0
    %1101 = vmatpush2.msra.mxu0 0.0
    %1102 = vmatprep.mubr.f32.mxu0 0.0
    %1103 = vmatmul.mubr.f32.gmra.mxu0 %v960
    %v1104 = vpop.f32.mrf.mxu0
    %v1105 = vadd.f32 0.0, %v1104
    %v1106 = vpop.f32.mrf.mxu0
    %1107 = vdwg.mxu0
    %v1108 = vadd.f32 %v964, %v1034
    %v1109 = vxor.u32 %v1108, 2147483648
    %v1110 = vmul.f32 %v1109, 1.442695
    %v1111 = vpow.pop %v1110
    %v1112 = vadd.f32 %v1111, 1.0
    %v1113 = vrcp.pop %v1112
    %v1114 = vmul.f32 1.0, %v1113
    %v1115 = vadd.f32 %v965, %v1036
    %v1116 = vxor.u32 %v1115, 2147483648
    %v1117 = vmul.f32 %v1116, 1.442695
    %v1118 = vpow.pop %v1117
    %v1119 = vadd.f32 %v1118, 1.0
    %v1120 = vrcp.pop %v1119
    %v1121 = vmul.f32 1.0, %v1120
    %v1122 = vadd.f32 %v1105, %v614
    %v1123 = vmul.f32 %v1114, %v1122
    %v1124 = vadd.f32 %v966, %v1123
    %v1125 = vtanh.pop %v1124
    %v1126 = vsub.f32 1.0, %v1121
    %v1127 = vmul.f32 %v1126, %v1125
    %v1128 = vmul.f32 %v1121, %v960
    %v1129 = vadd.f32 %v1127, %v1128
    %s1130 = scalar_lea.vmem [#allocation3], 24
    %1131 = vst [vmem:[%s1130] sm:$0xff] %v1129
    %s1132 = scalar_lea.vmem [#allocation2], 96
    %v1133 = vld [vmem:[%s1132] sm:$0xff]
    %v1134 = vld [vmem:[%s1132 + $0x8] sm:$0xff]
    %v1135 = vld [vmem:[%s1132 + $0x10] sm:$0xff]
    %1136 = vmatprep.subr.mxu0 %v448
    %1137 = vmatpush1.msra.mxu0 %v447
    %1138 = vmatprep.subr.mxu0 %v445
    %1139 = vmatpush1.msra.mxu0 %v444
    %1140 = vmatprep.subr.mxu0 %v442
    %1141 = vmatpush1.msra.mxu0 %v441
    %1142 = vmatprep.subr.mxu0 %v439
    %1143 = vmatpush1.msra.mxu0 %v438
    %1144 = vmatprep.subr.mxu0 %v436
    %1145 = vmatpush1.msra.mxu0 %v435
    %1146 = vmatprep.subr.mxu0 %v433
    %1147 = vmatpush1.msra.mxu0 %v432
    %1148 = vmatprep.subr.mxu0 %v430
    %1149 = vmatpush1.msra.mxu0 %v429
    %1150 = vmatprep.subr.mxu0 %v427
    %1151 = vmatpush1.msra.mxu0 %v426
    %1152 = vmatprep.subr.mxu0 %v424
    %1153 = vmatpush1.msra.mxu0 %v423
    %1154 = vmatprep.subr.mxu0 %v421
    %1155 = vmatpush1.msra.mxu0 %v420
    %1156 = vmatprep.subr.mxu0 %v418
    %1157 = vmatpush1.msra.mxu0 %v417
    %1158 = vmatprep.subr.mxu0 %v415
    %1159 = vmatpush1.msra.mxu0 %v414
    %1160 = vmatprep.subr.mxu0 %v412
    %1161 = vmatpush1.msra.mxu0 %v411
    %1162 = vmatprep.subr.mxu0 %v409
    %1163 = vmatpush1.msra.mxu0 %v408
    %1164 = vmatprep.subr.mxu0 %v406
    %1165 = vmatpush1.msra.mxu0 %v405
    %1166 = vmatprep.subr.mxu0 %v403
    %1167 = vmatpush1.msra.mxu0 %v402
    %1168 = vmatprep.subr.mxu0 0.0
    %1169 = vmatpush2.msra.mxu0 0.0
    %1170 = vmatprep.subr.mxu0 0.0
    %1171 = vmatpush2.msra.mxu0 0.0
    %1172 = vmatprep.subr.mxu0 0.0
    %1173 = vmatpush2.msra.mxu0 0.0
    %1174 = vmatprep.subr.mxu0 0.0
    %1175 = vmatpush2.msra.mxu0 0.0
    %1176 = vmatprep.subr.mxu0 0.0
    %1177 = vmatpush2.msra.mxu0 0.0
    %1178 = vmatprep.subr.mxu0 0.0
    %1179 = vmatpush2.msra.mxu0 0.0
    %1180 = vmatprep.subr.mxu0 0.0
    %1181 = vmatpush2.msra.mxu0 0.0
    %1182 = vmatprep.subr.mxu0 0.0
    %1183 = vmatpush2.msra.mxu0 0.0
    %1184 = vmatprep.subr.mxu0 0.0
    %1185 = vmatpush2.msra.mxu0 0.0
    %1186 = vmatprep.subr.mxu0 0.0
    %1187 = vmatpush2.msra.mxu0 0.0
    %1188 = vmatprep.subr.mxu0 0.0
    %1189 = vmatpush2.msra.mxu0 0.0
    %1190 = vmatprep.subr.mxu0 0.0
    %1191 = vmatpush2.msra.mxu0 0.0
    %1192 = vmatprep.subr.mxu0 0.0
    %1193 = vmatpush2.msra.mxu0 0.0
    %1194 = vmatprep.subr.mxu0 0.0
    %1195 = vmatpush2.msra.mxu0 0.0
    %1196 = vmatprep.subr.mxu0 0.0
    %1197 = vmatpush2.msra.mxu0 0.0
    %1198 = vmatprep.subr.mxu0 0.0
    %1199 = vmatpush2.msra.mxu0 0.0
    %1200 = vmatprep.mubr.f32.mxu0 0.0
    %1201 = vmatmul.mubr.f32.gmra.mxu0 %v1129
    %v1202 = vpop.f32.mrf.mxu0
    %v1203 = vadd.f32 0.0, %v1202
    %v1204 = vpop.f32.mrf.mxu0
    %v1205 = vadd.f32 0.0, %v1204
    %1206 = vdwg.mxu0
    %1207 = vmatprep.subr.mxu0 0.0
    %1208 = vmatpush1.msra.mxu0 %v449
    %1209 = vmatprep.subr.mxu0 0.0
    %1210 = vmatpush1.msra.mxu0 %v446
    %1211 = vmatprep.subr.mxu0 0.0
    %1212 = vmatpush1.msra.mxu0 %v443
    %1213 = vmatprep.subr.mxu0 0.0
    %1214 = vmatpush1.msra.mxu0 %v440
    %1215 = vmatprep.subr.mxu0 0.0
    %1216 = vmatpush1.msra.mxu0 %v437
    %1217 = vmatprep.subr.mxu0 0.0
    %1218 = vmatpush1.msra.mxu0 %v434
    %1219 = vmatprep.subr.mxu0 0.0
    %1220 = vmatpush1.msra.mxu0 %v431
    %1221 = vmatprep.subr.mxu0 0.0
    %1222 = vmatpush1.msra.mxu0 %v428
    %1223 = vmatprep.subr.mxu0 0.0
    %1224 = vmatpush1.msra.mxu0 %v425
    %1225 = vmatprep.subr.mxu0 0.0
    %1226 = vmatpush1.msra.mxu0 %v422
    %1227 = vmatprep.subr.mxu0 0.0
    %1228 = vmatpush1.msra.mxu0 %v419
    %1229 = vmatprep.subr.mxu0 0.0
    %1230 = vmatpush1.msra.mxu0 %v416
    %1231 = vmatprep.subr.mxu0 0.0
    %1232 = vmatpush1.msra.mxu0 %v413
    %1233 = vmatprep.subr.mxu0 0.0
    %1234 = vmatpush1.msra.mxu0 %v410
    %1235 = vmatprep.subr.mxu0 0.0
    %1236 = vmatpush1.msra.mxu0 %v407
    %1237 = vmatprep.subr.mxu0 0.0
    %1238 = vmatpush1.msra.mxu0 %v404
    %1239 = vmatprep.subr.mxu0 0.0
    %1240 = vmatpush2.msra.mxu0 0.0
    %1241 = vmatprep.subr.mxu0 0.0
    %1242 = vmatpush2.msra.mxu0 0.0
    %1243 = vmatprep.subr.mxu0 0.0
    %1244 = vmatpush2.msra.mxu0 0.0
    %1245 = vmatprep.subr.mxu0 0.0
    %1246 = vmatpush2.msra.mxu0 0.0
    %1247 = vmatprep.subr.mxu0 0.0
    %1248 = vmatpush2.msra.mxu0 0.0
    %1249 = vmatprep.subr.mxu0 0.0
    %1250 = vmatpush2.msra.mxu0 0.0
    %1251 = vmatprep.subr.mxu0 0.0
    %1252 = vmatpush2.msra.mxu0 0.0
    %1253 = vmatprep.subr.mxu0 0.0
    %1254 = vmatpush2.msra.mxu0 0.0
    %1255 = vmatprep.subr.mxu0 0.0
    %1256 = vmatpush2.msra.mxu0 0.0
    %1257 = vmatprep.subr.mxu0 0.0
    %1258 = vmatpush2.msra.mxu0 0.0
    %1259 = vmatprep.subr.mxu0 0.0
    %1260 = vmatpush2.msra.mxu0 0.0
    %1261 = vmatprep.subr.mxu0 0.0
    %1262 = vmatpush2.msra.mxu0 0.0
    %1263 = vmatprep.subr.mxu0 0.0
    %1264 = vmatpush2.msra.mxu0 0.0
    %1265 = vmatprep.subr.mxu0 0.0
    %1266 = vmatpush2.msra.mxu0 0.0
    %1267 = vmatprep.subr.mxu0 0.0
    %1268 = vmatpush2.msra.mxu0 0.0
    %1269 = vmatprep.subr.mxu0 0.0
    %1270 = vmatpush2.msra.mxu0 0.0
    %1271 = vmatprep.mubr.f32.mxu0 0.0
    %1272 = vmatmul.mubr.f32.gmra.mxu0 %v1129
    %v1273 = vpop.f32.mrf.mxu0
    %v1274 = vadd.f32 0.0, %v1273
    %v1275 = vpop.f32.mrf.mxu0
    %1276 = vdwg.mxu0
    %v1277 = vadd.f32 %v1133, %v1203
    %v1278 = vxor.u32 %v1277, 2147483648
    %v1279 = vmul.f32 %v1278, 1.442695
    %v1280 = vpow.pop %v1279
    %v1281 = vadd.f32 %v1280, 1.0
    %v1282 = vrcp.pop %v1281
    %v1283 = vmul.f32 1.0, %v1282
    %v1284 = vadd.f32 %v1134, %v1205
    %v1285 = vxor.u32 %v1284, 2147483648
    %v1286 = vmul.f32 %v1285, 1.442695
    %v1287 = vpow.pop %v1286
    %v1288 = vadd.f32 %v1287, 1.0
    %v1289 = vrcp.pop %v1288
    %v1290 = vmul.f32 1.0, %v1289
    %v1291 = vadd.f32 %v1274, %v614
    %v1292 = vmul.f32 %v1283, %v1291
    %v1293 = vadd.f32 %v1135, %v1292
    %v1294 = vtanh.pop %v1293
    %v1295 = vsub.f32 1.0, %v1290
    %v1296 = vmul.f32 %v1295, %v1294
    %v1297 = vmul.f32 %v1290, %v1129
    %v1298 = vadd.f32 %v1296, %v1297
    %s1299 = scalar_lea.vmem [#allocation3], 32
    %1300 = vst [vmem:[%s1299] sm:$0xff] %v1298
    %s1301 = scalar_lea.vmem [#allocation2], 120
    %v1302 = vld [vmem:[%s1301] sm:$0xff]
    %v1303 = vld [vmem:[%s1301 + $0x8] sm:$0xff]
    %v1304 = vld [vmem:[%s1301 + $0x10] sm:$0xff]
    %1305 = vmatprep.subr.mxu0 %v448
    %1306 = vmatpush1.msra.mxu0 %v447
    %1307 = vmatprep.subr.mxu0 %v445
    %1308 = vmatpush1.msra.mxu0 %v444
    %1309 = vmatprep.subr.mxu0 %v442
    %1310 = vmatpush1.msra.mxu0 %v441
    %1311 = vmatprep.subr.mxu0 %v439
    %1312 = vmatpush1.msra.mxu0 %v438
    %1313 = vmatprep.subr.mxu0 %v436
    %1314 = vmatpush1.msra.mxu0 %v435
    %1315 = vmatprep.subr.mxu0 %v433
    %1316 = vmatpush1.msra.mxu0 %v432
    %1317 = vmatprep.subr.mxu0 %v430
    %1318 = vmatpush1.msra.mxu0 %v429
    %1319 = vmatprep.subr.mxu0 %v427
    %1320 = vmatpush1.msra.mxu0 %v426
    %1321 = vmatprep.subr.mxu0 %v424
    %1322 = vmatpush1.msra.mxu0 %v423
    %1323 = vmatprep.subr.mxu0 %v421
    %1324 = vmatpush1.msra.mxu0 %v420
    %1325 = vmatprep.subr.mxu0 %v418
    %1326 = vmatpush1.msra.mxu0 %v417
    %1327 = vmatprep.subr.mxu0 %v415
    %1328 = vmatpush1.msra.mxu0 %v414
    %1329 = vmatprep.subr.mxu0 %v412
    %1330 = vmatpush1.msra.mxu0 %v411
    %1331 = vmatprep.subr.mxu0 %v409
    %1332 = vmatpush1.msra.mxu0 %v408
    %1333 = vmatprep.subr.mxu0 %v406
    %1334 = vmatpush1.msra.mxu0 %v405
    %1335 = vmatprep.subr.mxu0 %v403
    %1336 = vmatpush1.msra.mxu0 %v402
    %1337 = vmatprep.subr.mxu0 0.0
    %1338 = vmatpush2.msra.mxu0 0.0
    %1339 = vmatprep.subr.mxu0 0.0
    %1340 = vmatpush2.msra.mxu0 0.0
    %1341 = vmatprep.subr.mxu0 0.0
    %1342 = vmatpush2.msra.mxu0 0.0
    %1343 = vmatprep.subr.mxu0 0.0
    %1344 = vmatpush2.msra.mxu0 0.0
    %1345 = vmatprep.subr.mxu0 0.0
    %1346 = vmatpush2.msra.mxu0 0.0
    %1347 = vmatprep.subr.mxu0 0.0
    %1348 = vmatpush2.msra.mxu0 0.0
    %1349 = vmatprep.subr.mxu0 0.0
    %1350 = vmatpush2.msra.mxu0 0.0
    %1351 = vmatprep.subr.mxu0 0.0
    %1352 = vmatpush2.msra.mxu0 0.0
    %1353 = vmatprep.subr.mxu0 0.0
    %1354 = vmatpush2.msra.mxu0 0.0
    %1355 = vmatprep.subr.mxu0 0.0
    %1356 = vmatpush2.msra.mxu0 0.0
    %1357 = vmatprep.subr.mxu0 0.0
    %1358 = vmatpush2.msra.mxu0 0.0
    %1359 = vmatprep.subr.mxu0 0.0
    %1360 = vmatpush2.msra.mxu0 0.0
    %1361 = vmatprep.subr.mxu0 0.0
    %1362 = vmatpush2.msra.mxu0 0.0
    %1363 = vmatprep.subr.mxu0 0.0
    %1364 = vmatpush2.msra.mxu0 0.0
    %1365 = vmatprep.subr.mxu0 0.0
    %1366 = vmatpush2.msra.mxu0 0.0
    %1367 = vmatprep.subr.mxu0 0.0
    %1368 = vmatpush2.msra.mxu0 0.0
    %1369 = vmatprep.mubr.f32.mxu0 0.0
    %1370 = vmatmul.mubr.f32.gmra.mxu0 %v1298
    %v1371 = vpop.f32.mrf.mxu0
    %v1372 = vadd.f32 0.0, %v1371
    %v1373 = vpop.f32.mrf.mxu0
    %v1374 = vadd.f32 0.0, %v1373
    %1375 = vdwg.mxu0
    %1376 = vmatprep.subr.mxu0 0.0
    %1377 = vmatpush1.msra.mxu0 %v449
    %1378 = vmatprep.subr.mxu0 0.0
    %1379 = vmatpush1.msra.mxu0 %v446
    %1380 = vmatprep.subr.mxu0 0.0
    %1381 = vmatpush1.msra.mxu0 %v443
    %1382 = vmatprep.subr.mxu0 0.0
    %1383 = vmatpush1.msra.mxu0 %v440
    %1384 = vmatprep.subr.mxu0 0.0
    %1385 = vmatpush1.msra.mxu0 %v437
    %1386 = vmatprep.subr.mxu0 0.0
    %1387 = vmatpush1.msra.mxu0 %v434
    %1388 = vmatprep.subr.mxu0 0.0
    %1389 = vmatpush1.msra.mxu0 %v431
    %1390 = vmatprep.subr.mxu0 0.0
    %1391 = vmatpush1.msra.mxu0 %v428
    %1392 = vmatprep.subr.mxu0 0.0
    %1393 = vmatpush1.msra.mxu0 %v425
    %1394 = vmatprep.subr.mxu0 0.0
    %1395 = vmatpush1.msra.mxu0 %v422
    %1396 = vmatprep.subr.mxu0 0.0
    %1397 = vmatpush1.msra.mxu0 %v419
    %1398 = vmatprep.subr.mxu0 0.0
    %1399 = vmatpush1.msra.mxu0 %v416
    %1400 = vmatprep.subr.mxu0 0.0
    %1401 = vmatpush1.msra.mxu0 %v413
    %1402 = vmatprep.subr.mxu0 0.0
    %1403 = vmatpush1.msra.mxu0 %v410
    %1404 = vmatprep.subr.mxu0 0.0
    %1405 = vmatpush1.msra.mxu0 %v407
    %1406 = vmatprep.subr.mxu0 0.0
    %1407 = vmatpush1.msra.mxu0 %v404
    %1408 = vmatprep.subr.mxu0 0.0
    %1409 = vmatpush2.msra.mxu0 0.0
    %1410 = vmatprep.subr.mxu0 0.0
    %1411 = vmatpush2.msra.mxu0 0.0
    %1412 = vmatprep.subr.mxu0 0.0
    %1413 = vmatpush2.msra.mxu0 0.0
    %1414 = vmatprep.subr.mxu0 0.0
    %1415 = vmatpush2.msra.mxu0 0.0
    %1416 = vmatprep.subr.mxu0 0.0
    %1417 = vmatpush2.msra.mxu0 0.0
    %1418 = vmatprep.subr.mxu0 0.0
    %1419 = vmatpush2.msra.mxu0 0.0
    %1420 = vmatprep.subr.mxu0 0.0
    %1421 = vmatpush2.msra.mxu0 0.0
    %1422 = vmatprep.subr.mxu0 0.0
    %1423 = vmatpush2.msra.mxu0 0.0
    %1424 = vmatprep.subr.mxu0 0.0
    %1425 = vmatpush2.msra.mxu0 0.0
    %1426 = vmatprep.subr.mxu0 0.0
    %1427 = vmatpush2.msra.mxu0 0.0
    %1428 = vmatprep.subr.mxu0 0.0
    %1429 = vmatpush2.msra.mxu0 0.0
    %1430 = vmatprep.subr.mxu0 0.0
    %1431 = vmatpush2.msra.mxu0 0.0
    %1432 = vmatprep.subr.mxu0 0.0
    %1433 = vmatpush2.msra.mxu0 0.0
    %1434 = vmatprep.subr.mxu0 0.0
    %1435 = vmatpush2.msra.mxu0 0.0
    %1436 = vmatprep.subr.mxu0 0.0
    %1437 = vmatpush2.msra.mxu0 0.0
    %1438 = vmatprep.subr.mxu0 0.0
    %1439 = vmatpush2.msra.mxu0 0.0
    %1440 = vmatprep.mubr.f32.mxu0 0.0
    %1441 = vmatmul.mubr.f32.gmra.mxu0 %v1298
    %v1442 = vpop.f32.mrf.mxu0
    %v1443 = vadd.f32 0.0, %v1442
    %v1444 = vpop.f32.mrf.mxu0
    %1445 = vdwg.mxu0
    %v1446 = vadd.f32 %v1302, %v1372
    %v1447 = vxor.u32 %v1446, 2147483648
    %v1448 = vmul.f32 %v1447, 1.442695
    %v1449 = vpow.pop %v1448
    %v1450 = vadd.f32 %v1449, 1.0
    %v1451 = vrcp.pop %v1450
    %v1452 = vmul.f32 1.0, %v1451
    %v1453 = vadd.f32 %v1303, %v1374
    %v1454 = vxor.u32 %v1453, 2147483648
    %v1455 = vmul.f32 %v1454, 1.442695
    %v1456 = vpow.pop %v1455
    %v1457 = vadd.f32 %v1456, 1.0
    %v1458 = vrcp.pop %v1457
    %v1459 = vmul.f32 1.0, %v1458
    %v1460 = vadd.f32 %v1443, %v614
    %v1461 = vmul.f32 %v1452, %v1460
    %v1462 = vadd.f32 %v1304, %v1461
    %v1463 = vtanh.pop %v1462
    %v1464 = vsub.f32 1.0, %v1459
    %v1465 = vmul.f32 %v1464, %v1463
    %v1466 = vmul.f32 %v1459, %v1298
    %v1467 = vadd.f32 %v1465, %v1466
    %s1468 = scalar_lea.vmem [#allocation3], 40
    %1469 = vst [vmem:[%s1468] sm:$0xff] %v1467
    %s1470 = scalar_lea.vmem [#allocation2], 144
    %v1471 = vld [vmem:[%s1470] sm:$0xff]
    %v1472 = vld [vmem:[%s1470 + $0x8] sm:$0xff]
    %v1473 = vld [vmem:[%s1470 + $0x10] sm:$0xff]
    %1474 = vmatprep.subr.mxu0 %v448
    %1475 = vmatpush1.msra.mxu0 %v447
    %1476 = vmatprep.subr.mxu0 %v445
    %1477 = vmatpush1.msra.mxu0 %v444
    %1478 = vmatprep.subr.mxu0 %v442
    %1479 = vmatpush1.msra.mxu0 %v441
    %1480 = vmatprep.subr.mxu0 %v439
    %1481 = vmatpush1.msra.mxu0 %v438
    %1482 = vmatprep.subr.mxu0 %v436
    %1483 = vmatpush1.msra.mxu0 %v435
    %1484 = vmatprep.subr.mxu0 %v433
    %1485 = vmatpush1.msra.mxu0 %v432
    %1486 = vmatprep.subr.mxu0 %v430
    %1487 = vmatpush1.msra.mxu0 %v429
    %1488 = vmatprep.subr.mxu0 %v427
    %1489 = vmatpush1.msra.mxu0 %v426
    %1490 = vmatprep.subr.mxu0 %v424
    %1491 = vmatpush1.msra.mxu0 %v423
    %1492 = vmatprep.subr.mxu0 %v421
    %1493 = vmatpush1.msra.mxu0 %v420
    %1494 = vmatprep.subr.mxu0 %v418
    %1495 = vmatpush1.msra.mxu0 %v417
    %1496 = vmatprep.subr.mxu0 %v415
    %1497 = vmatpush1.msra.mxu0 %v414
    %1498 = vmatprep.subr.mxu0 %v412
    %1499 = vmatpush1.msra.mxu0 %v411
    %1500 = vmatprep.subr.mxu0 %v409
    %1501 = vmatpush1.msra.mxu0 %v408
    %1502 = vmatprep.subr.mxu0 %v406
    %1503 = vmatpush1.msra.mxu0 %v405
    %1504 = vmatprep.subr.mxu0 %v403
    %1505 = vmatpush1.msra.mxu0 %v402
    %1506 = vmatprep.subr.mxu0 0.0
    %1507 = vmatpush2.msra.mxu0 0.0
    %1508 = vmatprep.subr.mxu0 0.0
    %1509 = vmatpush2.msra.mxu0 0.0
    %1510 = vmatprep.subr.mxu0 0.0
    %1511 = vmatpush2.msra.mxu0 0.0
    %1512 = vmatprep.subr.mxu0 0.0
    %1513 = vmatpush2.msra.mxu0 0.0
    %1514 = vmatprep.subr.mxu0 0.0
    %1515 = vmatpush2.msra.mxu0 0.0
    %1516 = vmatprep.subr.mxu0 0.0
    %1517 = vmatpush2.msra.mxu0 0.0
    %1518 = vmatprep.subr.mxu0 0.0
    %1519 = vmatpush2.msra.mxu0 0.0
    %1520 = vmatprep.subr.mxu0 0.0
    %1521 = vmatpush2.msra.mxu0 0.0
    %1522 = vmatprep.subr.mxu0 0.0
    %1523 = vmatpush2.msra.mxu0 0.0
    %1524 = vmatprep.subr.mxu0 0.0
    %1525 = vmatpush2.msra.mxu0 0.0
    %1526 = vmatprep.subr.mxu0 0.0
    %1527 = vmatpush2.msra.mxu0 0.0
    %1528 = vmatprep.subr.mxu0 0.0
    %1529 = vmatpush2.msra.mxu0 0.0
    %1530 = vmatprep.subr.mxu0 0.0
    %1531 = vmatpush2.msra.mxu0 0.0
    %1532 = vmatprep.subr.mxu0 0.0
    %1533 = vmatpush2.msra.mxu0 0.0
    %1534 = vmatprep.subr.mxu0 0.0
    %1535 = vmatpush2.msra.mxu0 0.0
    %1536 = vmatprep.subr.mxu0 0.0
    %1537 = vmatpush2.msra.mxu0 0.0
    %1538 = vmatprep.mubr.f32.mxu0 0.0
    %1539 = vmatmul.mubr.f32.gmra.mxu0 %v1467
    %v1540 = vpop.f32.mrf.mxu0
    %v1541 = vadd.f32 0.0, %v1540
    %v1542 = vpop.f32.mrf.mxu0
    %v1543 = vadd.f32 0.0, %v1542
    %1544 = vdwg.mxu0
    %1545 = vmatprep.subr.mxu0 0.0
    %1546 = vmatpush1.msra.mxu0 %v449
    %1547 = vmatprep.subr.mxu0 0.0
    %1548 = vmatpush1.msra.mxu0 %v446
    %1549 = vmatprep.subr.mxu0 0.0
    %1550 = vmatpush1.msra.mxu0 %v443
    %1551 = vmatprep.subr.mxu0 0.0
    %1552 = vmatpush1.msra.mxu0 %v440
    %1553 = vmatprep.subr.mxu0 0.0
    %1554 = vmatpush1.msra.mxu0 %v437
    %1555 = vmatprep.subr.mxu0 0.0
    %1556 = vmatpush1.msra.mxu0 %v434
    %1557 = vmatprep.subr.mxu0 0.0
    %1558 = vmatpush1.msra.mxu0 %v431
    %1559 = vmatprep.subr.mxu0 0.0
    %1560 = vmatpush1.msra.mxu0 %v428
    %1561 = vmatprep.subr.mxu0 0.0
    %1562 = vmatpush1.msra.mxu0 %v425
    %1563 = vmatprep.subr.mxu0 0.0
    %1564 = vmatpush1.msra.mxu0 %v422
    %1565 = vmatprep.subr.mxu0 0.0
    %1566 = vmatpush1.msra.mxu0 %v419
    %1567 = vmatprep.subr.mxu0 0.0
    %1568 = vmatpush1.msra.mxu0 %v416
    %1569 = vmatprep.subr.mxu0 0.0
    %1570 = vmatpush1.msra.mxu0 %v413
    %1571 = vmatprep.subr.mxu0 0.0
    %1572 = vmatpush1.msra.mxu0 %v410
    %1573 = vmatprep.subr.mxu0 0.0
    %1574 = vmatpush1.msra.mxu0 %v407
    %1575 = vmatprep.subr.mxu0 0.0
    %1576 = vmatpush1.msra.mxu0 %v404
    %1577 = vmatprep.subr.mxu0 0.0
    %1578 = vmatpush2.msra.mxu0 0.0
    %1579 = vmatprep.subr.mxu0 0.0
    %1580 = vmatpush2.msra.mxu0 0.0
    %1581 = vmatprep.subr.mxu0 0.0
    %1582 = vmatpush2.msra.mxu0 0.0
    %1583 = vmatprep.subr.mxu0 0.0
    %1584 = vmatpush2.msra.mxu0 0.0
    %1585 = vmatprep.subr.mxu0 0.0
    %1586 = vmatpush2.msra.mxu0 0.0
    %1587 = vmatprep.subr.mxu0 0.0
    %1588 = vmatpush2.msra.mxu0 0.0
    %1589 = vmatprep.subr.mxu0 0.0
    %1590 = vmatpush2.msra.mxu0 0.0
    %1591 = vmatprep.subr.mxu0 0.0
    %1592 = vmatpush2.msra.mxu0 0.0
    %1593 = vmatprep.subr.mxu0 0.0
    %1594 = vmatpush2.msra.mxu0 0.0
    %1595 = vmatprep.subr.mxu0 0.0
    %1596 = vmatpush2.msra.mxu0 0.0
    %1597 = vmatprep.subr.mxu0 0.0
    %1598 = vmatpush2.msra.mxu0 0.0
    %1599 = vmatprep.subr.mxu0 0.0
    %1600 = vmatpush2.msra.mxu0 0.0
    %1601 = vmatprep.subr.mxu0 0.0
    %1602 = vmatpush2.msra.mxu0 0.0
    %1603 = vmatprep.subr.mxu0 0.0
    %1604 = vmatpush2.msra.mxu0 0.0
    %1605 = vmatprep.subr.mxu0 0.0
    %1606 = vmatpush2.msra.mxu0 0.0
    %1607 = vmatprep.subr.mxu0 0.0
    %1608 = vmatpush2.msra.mxu0 0.0
    %1609 = vmatprep.mubr.f32.mxu0 0.0
    %1610 = vmatmul.mubr.f32.gmra.mxu0 %v1467
    %v1611 = vpop.f32.mrf.mxu0
    %v1612 = vadd.f32 0.0, %v1611
    %v1613 = vpop.f32.mrf.mxu0
    %1614 = vdwg.mxu0
    %v1615 = vadd.f32 %v1471, %v1541
    %v1616 = vxor.u32 %v1615, 2147483648
    %v1617 = vmul.f32 %v1616, 1.442695
    %v1618 = vpow.pop %v1617
    %v1619 = vadd.f32 %v1618, 1.0
    %v1620 = vrcp.pop %v1619
    %v1621 = vmul.f32 1.0, %v1620
    %v1622 = vadd.f32 %v1472, %v1543
    %v1623 = vxor.u32 %v1622, 2147483648
    %v1624 = vmul.f32 %v1623, 1.442695
    %v1625 = vpow.pop %v1624
    %v1626 = vadd.f32 %v1625, 1.0
    %v1627 = vrcp.pop %v1626
    %v1628 = vmul.f32 1.0, %v1627
    %v1629 = vadd.f32 %v1612, %v614
    %v1630 = vmul.f32 %v1621, %v1629
    %v1631 = vadd.f32 %v1473, %v1630
    %v1632 = vtanh.pop %v1631
    %v1633 = vsub.f32 1.0, %v1628
    %v1634 = vmul.f32 %v1633, %v1632
    %v1635 = vmul.f32 %v1628, %v1467
    %v1636 = vadd.f32 %v1634, %v1635
    %s1637 = scalar_lea.vmem [#allocation3], 48
    %1638 = vst [vmem:[%s1637] sm:$0xff] %v1636
    %s1639 = scalar_lea.vmem [#allocation2], 168
    %v1640 = vld [vmem:[%s1639] sm:$0xff]
    %v1641 = vld [vmem:[%s1639 + $0x8] sm:$0xff]
    %v1642 = vld [vmem:[%s1639 + $0x10] sm:$0xff]
    %1643 = vmatprep.subr.mxu0 %v448
    %1644 = vmatpush1.msra.mxu0 %v447
    %1645 = vmatprep.subr.mxu0 %v445
    %1646 = vmatpush1.msra.mxu0 %v444
    %1647 = vmatprep.subr.mxu0 %v442
    %1648 = vmatpush1.msra.mxu0 %v441
    %1649 = vmatprep.subr.mxu0 %v439
    %1650 = vmatpush1.msra.mxu0 %v438
    %1651 = vmatprep.subr.mxu0 %v436
    %1652 = vmatpush1.msra.mxu0 %v435
    %1653 = vmatprep.subr.mxu0 %v433
    %1654 = vmatpush1.msra.mxu0 %v432
    %1655 = vmatprep.subr.mxu0 %v430
    %1656 = vmatpush1.msra.mxu0 %v429
    %1657 = vmatprep.subr.mxu0 %v427
    %1658 = vmatpush1.msra.mxu0 %v426
    %1659 = vmatprep.subr.mxu0 %v424
    %1660 = vmatpush1.msra.mxu0 %v423
    %1661 = vmatprep.subr.mxu0 %v421
    %1662 = vmatpush1.msra.mxu0 %v420
    %1663 = vmatprep.subr.mxu0 %v418
    %1664 = vmatpush1.msra.mxu0 %v417
    %1665 = vmatprep.subr.mxu0 %v415
    %1666 = vmatpush1.msra.mxu0 %v414
    %1667 = vmatprep.subr.mxu0 %v412
    %1668 = vmatpush1.msra.mxu0 %v411
    %1669 = vmatprep.subr.mxu0 %v409
    %1670 = vmatpush1.msra.mxu0 %v408
    %1671 = vmatprep.subr.mxu0 %v406
    %1672 = vmatpush1.msra.mxu0 %v405
    %1673 = vmatprep.subr.mxu0 %v403
    %1674 = vmatpush1.msra.mxu0 %v402
    %1675 = vmatprep.subr.mxu0 0.0
    %1676 = vmatpush2.msra.mxu0 0.0
    %1677 = vmatprep.subr.mxu0 0.0
    %1678 = vmatpush2.msra.mxu0 0.0
    %1679 = vmatprep.subr.mxu0 0.0
    %1680 = vmatpush2.msra.mxu0 0.0
    %1681 = vmatprep.subr.mxu0 0.0
    %1682 = vmatpush2.msra.mxu0 0.0
    %1683 = vmatprep.subr.mxu0 0.0
    %1684 = vmatpush2.msra.mxu0 0.0
    %1685 = vmatprep.subr.mxu0 0.0
    %1686 = vmatpush2.msra.mxu0 0.0
    %1687 = vmatprep.subr.mxu0 0.0
    %1688 = vmatpush2.msra.mxu0 0.0
    %1689 = vmatprep.subr.mxu0 0.0
    %1690 = vmatpush2.msra.mxu0 0.0
    %1691 = vmatprep.subr.mxu0 0.0
    %1692 = vmatpush2.msra.mxu0 0.0
    %1693 = vmatprep.subr.mxu0 0.0
    %1694 = vmatpush2.msra.mxu0 0.0
    %1695 = vmatprep.subr.mxu0 0.0
    %1696 = vmatpush2.msra.mxu0 0.0
    %1697 = vmatprep.subr.mxu0 0.0
    %1698 = vmatpush2.msra.mxu0 0.0
    %1699 = vmatprep.subr.mxu0 0.0
    %1700 = vmatpush2.msra.mxu0 0.0
    %1701 = vmatprep.subr.mxu0 0.0
    %1702 = vmatpush2.msra.mxu0 0.0
    %1703 = vmatprep.subr.mxu0 0.0
    %1704 = vmatpush2.msra.mxu0 0.0
    %1705 = vmatprep.subr.mxu0 0.0
    %1706 = vmatpush2.msra.mxu0 0.0
    %1707 = vmatprep.mubr.f32.mxu0 0.0
    %1708 = vmatmul.mubr.f32.gmra.mxu0 %v1636
    %v1709 = vpop.f32.mrf.mxu0
    %v1710 = vadd.f32 0.0, %v1709
    %v1711 = vpop.f32.mrf.mxu0
    %v1712 = vadd.f32 0.0, %v1711
    %1713 = vdwg.mxu0
    %1714 = vmatprep.subr.mxu0 0.0
    %1715 = vmatpush1.msra.mxu0 %v449
    %1716 = vmatprep.subr.mxu0 0.0
    %1717 = vmatpush1.msra.mxu0 %v446
    %1718 = vmatprep.subr.mxu0 0.0
    %1719 = vmatpush1.msra.mxu0 %v443
    %1720 = vmatprep.subr.mxu0 0.0
    %1721 = vmatpush1.msra.mxu0 %v440
    %1722 = vmatprep.subr.mxu0 0.0
    %1723 = vmatpush1.msra.mxu0 %v437
    %1724 = vmatprep.subr.mxu0 0.0
    %1725 = vmatpush1.msra.mxu0 %v434
    %1726 = vmatprep.subr.mxu0 0.0
    %1727 = vmatpush1.msra.mxu0 %v431
    %1728 = vmatprep.subr.mxu0 0.0
    %1729 = vmatpush1.msra.mxu0 %v428
    %1730 = vmatprep.subr.mxu0 0.0
    %1731 = vmatpush1.msra.mxu0 %v425
    %1732 = vmatprep.subr.mxu0 0.0
    %1733 = vmatpush1.msra.mxu0 %v422
    %1734 = vmatprep.subr.mxu0 0.0
    %1735 = vmatpush1.msra.mxu0 %v419
    %1736 = vmatprep.subr.mxu0 0.0
    %1737 = vmatpush1.msra.mxu0 %v416
    %1738 = vmatprep.subr.mxu0 0.0
    %1739 = vmatpush1.msra.mxu0 %v413
    %1740 = vmatprep.subr.mxu0 0.0
    %1741 = vmatpush1.msra.mxu0 %v410
    %1742 = vmatprep.subr.mxu0 0.0
    %1743 = vmatpush1.msra.mxu0 %v407
    %1744 = vmatprep.subr.mxu0 0.0
    %1745 = vmatpush1.msra.mxu0 %v404
    %1746 = vmatprep.subr.mxu0 0.0
    %1747 = vmatpush2.msra.mxu0 0.0
    %1748 = vmatprep.subr.mxu0 0.0
    %1749 = vmatpush2.msra.mxu0 0.0
    %1750 = vmatprep.subr.mxu0 0.0
    %1751 = vmatpush2.msra.mxu0 0.0
    %1752 = vmatprep.subr.mxu0 0.0
    %1753 = vmatpush2.msra.mxu0 0.0
    %1754 = vmatprep.subr.mxu0 0.0
    %1755 = vmatpush2.msra.mxu0 0.0
    %1756 = vmatprep.subr.mxu0 0.0
    %1757 = vmatpush2.msra.mxu0 0.0
    %1758 = vmatprep.subr.mxu0 0.0
    %1759 = vmatpush2.msra.mxu0 0.0
    %1760 = vmatprep.subr.mxu0 0.0
    %1761 = vmatpush2.msra.mxu0 0.0
    %1762 = vmatprep.subr.mxu0 0.0
    %1763 = vmatpush2.msra.mxu0 0.0
    %1764 = vmatprep.subr.mxu0 0.0
    %1765 = vmatpush2.msra.mxu0 0.0
    %1766 = vmatprep.subr.mxu0 0.0
    %1767 = vmatpush2.msra.mxu0 0.0
    %1768 = vmatprep.subr.mxu0 0.0
    %1769 = vmatpush2.msra.mxu0 0.0
    %1770 = vmatprep.subr.mxu0 0.0
    %1771 = vmatpush2.msra.mxu0 0.0
    %1772 = vmatprep.subr.mxu0 0.0
    %1773 = vmatpush2.msra.mxu0 0.0
    %1774 = vmatprep.subr.mxu0 0.0
    %1775 = vmatpush2.msra.mxu0 0.0
    %1776 = vmatprep.subr.mxu0 0.0
    %1777 = vmatpush2.msra.mxu0 0.0
    %1778 = vmatprep.mubr.f32.mxu0 0.0
    %1779 = vmatmul.mubr.f32.gmra.mxu0 %v1636
    %v1780 = vpop.f32.mrf.mxu0
    %v1781 = vadd.f32 0.0, %v1780
    %v1782 = vpop.f32.mrf.mxu0
    %1783 = vdwg.mxu0
    %v1784 = vadd.f32 %v1640, %v1710
    %v1785 = vxor.u32 %v1784, 2147483648
    %v1786 = vmul.f32 %v1785, 1.442695
    %v1787 = vpow.pop %v1786
    %v1788 = vadd.f32 %v1787, 1.0
    %v1789 = vrcp.pop %v1788
    %v1790 = vmul.f32 1.0, %v1789
    %v1791 = vadd.f32 %v1641, %v1712
    %v1792 = vxor.u32 %v1791, 2147483648
    %v1793 = vmul.f32 %v1792, 1.442695
    %v1794 = vpow.pop %v1793
    %v1795 = vadd.f32 %v1794, 1.0
    %v1796 = vrcp.pop %v1795
    %v1797 = vmul.f32 1.0, %v1796
    %v1798 = vadd.f32 %v1781, %v614
    %v1799 = vmul.f32 %v1790, %v1798
    %v1800 = vadd.f32 %v1642, %v1799
    %v1801 = vtanh.pop %v1800
    %v1802 = vsub.f32 1.0, %v1797
    %v1803 = vmul.f32 %v1802, %v1801
    %v1804 = vmul.f32 %v1797, %v1636
    %v1805 = vadd.f32 %v1803, %v1804
    %s1806 = scalar_lea.vmem [#allocation3], 56
    %1807 = vst [vmem:[%s1806] sm:$0xff] %v1805
    %1808 = vst [vmem:[#allocation4] sm:$0xff] %v1805
    %v1809 = vld [vmem:[#allocation3] sm:$0xff]
    %v1810 = vld [vmem:[#allocation3 + $0x8] sm:$0xff]
    %v1811 = vld [vmem:[#allocation3 + $0x10] sm:$0xff]
    %v1812 = vld [vmem:[#allocation3 + $0x18] sm:$0xff]
    %v1813 = vld [vmem:[#allocation3 + $0x20] sm:$0xff]
    %v1814 = vld [vmem:[#allocation3 + $0x28] sm:$0xff]
    %v1815 = vld [vmem:[#allocation3 + $0x30] sm:$0xff]
    %v1816 = vld [vmem:[#allocation3 + $0x38] sm:$0xff]
    %v1817 = vld [vmem:[#allocation11] sm:$0xff]
    %v1818 = vld [vmem:[#allocation11 + $0x8] sm:$0xff]
    %v1819 = vld [vmem:[#allocation11 + $0x10] sm:$0xff]
    %v1820 = vld [vmem:[#allocation11 + $0x18] sm:$0xff]
    %v1821 = vld [vmem:[#allocation11 + $0x20] sm:$0xff]
    %v1822 = vld [vmem:[#allocation11 + $0x28] sm:$0xff]
    %v1823 = vld [vmem:[#allocation11 + $0x30] sm:$0xff]
    %v1824 = vld [vmem:[#allocation11 + $0x38] sm:$0xff]
    %v1825 = vld [vmem:[#allocation11 + $0x40] sm:$0xff]
    %v1826 = vld [vmem:[#allocation11 + $0x48] sm:$0xff]
    %v1827 = vld [vmem:[#allocation11 + $0x50] sm:$0xff]
    %v1828 = vld [vmem:[#allocation11 + $0x58] sm:$0xff]
    %v1829 = vld [vmem:[#allocation11 + $0x60] sm:$0xff]
    %v1830 = vld [vmem:[#allocation11 + $0x68] sm:$0xff]
    %v1831 = vld [vmem:[#allocation11 + $0x70] sm:$0xff]
    %v1832 = vld [vmem:[#allocation11 + $0x78] sm:$0xff]
    %v1833 = vld [vmem:[%s6] sm:$0x1]
    %v1835 = vlaneseq
    %v1836 = vshrl.u32 %v1835, 7
    %v1837 = vsub.s32 0, %v1836
    %v1838 = vrot.slane %v1833, %v1837
    %1840 = vmatprep.subr.mxu0 0.0
    %1841 = vmatpush1.msra.mxu0 %v1832
    %1842 = vmatprep.subr.mxu0 0.0
    %1843 = vmatpush1.msra.mxu0 %v1831
    %1844 = vmatprep.subr.mxu0 0.0
    %1845 = vmatpush1.msra.mxu0 %v1830
    %1846 = vmatprep.subr.mxu0 0.0
    %1847 = vmatpush1.msra.mxu0 %v1829
    %1848 = vmatprep.subr.mxu0 0.0
    %1849 = vmatpush1.msra.mxu0 %v1828
    %1850 = vmatprep.subr.mxu0 0.0
    %1851 = vmatpush1.msra.mxu0 %v1827
    %1852 = vmatprep.subr.mxu0 0.0
    %1853 = vmatpush1.msra.mxu0 %v1826
    %1854 = vmatprep.subr.mxu0 0.0
    %1855 = vmatpush1.msra.mxu0 %v1825
    %1856 = vmatprep.subr.mxu0 0.0
    %1857 = vmatpush1.msra.mxu0 %v1824
    %1858 = vmatprep.subr.mxu0 0.0
    %1859 = vmatpush1.msra.mxu0 %v1823
    %1860 = vmatprep.subr.mxu0 0.0
    %1861 = vmatpush1.msra.mxu0 %v1822
    %1862 = vmatprep.subr.mxu0 0.0
    %1863 = vmatpush1.msra.mxu0 %v1821
    %1864 = vmatprep.subr.mxu0 0.0
    %1865 = vmatpush1.msra.mxu0 %v1820
    %1866 = vmatprep.subr.mxu0 0.0
    %1867 = vmatpush1.msra.mxu0 %v1819
    %1868 = vmatprep.subr.mxu0 0.0
    %1869 = vmatpush1.msra.mxu0 %v1818
    %1870 = vmatprep.subr.mxu0 0.0
    %1871 = vmatpush1.msra.mxu0 %v1817
    %1872 = vmatprep.subr.mxu0 0.0
    %1873 = vmatpush2.msra.mxu0 0.0
    %1874 = vmatprep.subr.mxu0 0.0
    %1875 = vmatpush2.msra.mxu0 0.0
    %1876 = vmatprep.subr.mxu0 0.0
    %1877 = vmatpush2.msra.mxu0 0.0
    %1878 = vmatprep.subr.mxu0 0.0
    %1879 = vmatpush2.msra.mxu0 0.0
    %1880 = vmatprep.subr.mxu0 0.0
    %1881 = vmatpush2.msra.mxu0 0.0
    %1882 = vmatprep.subr.mxu0 0.0
    %1883 = vmatpush2.msra.mxu0 0.0
    %1884 = vmatprep.subr.mxu0 0.0
    %1885 = vmatpush2.msra.mxu0 0.0
    %1886 = vmatprep.subr.mxu0 0.0
    %1887 = vmatpush2.msra.mxu0 0.0
    %1888 = vmatprep.subr.mxu0 0.0
    %1889 = vmatpush2.msra.mxu0 0.0
    %1890 = vmatprep.subr.mxu0 0.0
    %1891 = vmatpush2.msra.mxu0 0.0
    %1892 = vmatprep.subr.mxu0 0.0
    %1893 = vmatpush2.msra.mxu0 0.0
    %1894 = vmatprep.subr.mxu0 0.0
    %1895 = vmatpush2.msra.mxu0 0.0
    %1896 = vmatprep.subr.mxu0 0.0
    %1897 = vmatpush2.msra.mxu0 0.0
    %1898 = vmatprep.subr.mxu0 0.0
    %1899 = vmatpush2.msra.mxu0 0.0
    %1900 = vmatprep.subr.mxu0 0.0
    %1901 = vmatpush2.msra.mxu0 0.0
    %1902 = vmatprep.subr.mxu0 0.0
    %1903 = vmatpush2.msra.mxu0 0.0
    %1904 = vmatprep.mubr.f32.mxu0 0.0
    %1905 = vmatmul.mubr.f32.gmra.mxu0 %v1809
    %v1906 = vpop.f32.mrf.mxu0
    %v1907 = vadd.f32 %v1838, %v1906
    %v1908 = vpop.f32.mrf.mxu0
    %1909 = vmatprep.mubr.f32.mxu0 0.0
    %1910 = vmatmul.mubr.f32.gmra.mxu0 %v1810
    %v1911 = vpop.f32.mrf.mxu0
    %v1912 = vadd.f32 %v1838, %v1911
    %v1913 = vpop.f32.mrf.mxu0
    %1914 = vmatprep.mubr.f32.mxu0 0.0
    %1915 = vmatmul.mubr.f32.gmra.mxu0 %v1811
    %v1916 = vpop.f32.mrf.mxu0
    %v1917 = vadd.f32 %v1838, %v1916
    %v1918 = vpop.f32.mrf.mxu0
    %1919 = vmatprep.mubr.f32.mxu0 0.0
    %1920 = vmatmul.mubr.f32.gmra.mxu0 %v1812
    %v1921 = vpop.f32.mrf.mxu0
    %v1922 = vadd.f32 %v1838, %v1921
    %v1923 = vpop.f32.mrf.mxu0
    %1924 = vmatprep.mubr.f32.mxu0 0.0
    %1925 = vmatmul.mubr.f32.gmra.mxu0 %v1813
    %v1926 = vpop.f32.mrf.mxu0
    %v1927 = vadd.f32 %v1838, %v1926
    %v1928 = vpop.f32.mrf.mxu0
    %1929 = vmatprep.mubr.f32.mxu0 0.0
    %1930 = vmatmul.mubr.f32.gmra.mxu0 %v1814
    %v1931 = vpop.f32.mrf.mxu0
    %v1932 = vadd.f32 %v1838, %v1931
    %v1933 = vpop.f32.mrf.mxu0
    %1934 = vmatprep.mubr.f32.mxu0 0.0
    %1935 = vmatmul.mubr.f32.gmra.mxu0 %v1815
    %v1936 = vpop.f32.mrf.mxu0
    %v1937 = vadd.f32 %v1838, %v1936
    %v1938 = vpop.f32.mrf.mxu0
    %1939 = vmatprep.mubr.f32.mxu0 0.0
    %1940 = vmatmul.mubr.f32.gmra.mxu0 %v1816
    %v1941 = vpop.f32.mrf.mxu0
    %v1942 = vadd.f32 %v1838, %v1941
    %v1943 = vpop.f32.mrf.mxu0
    %1944 = vdwg.mxu0
    %1945 = vst [vmem:[#allocation13] sm:$0xff] %v1907
    %1946 = vst [vmem:[#allocation13 + $0x8] sm:$0xff] %v1912
    %1947 = vst [vmem:[#allocation13 + $0x10] sm:$0xff] %v1917
    %1948 = vst [vmem:[#allocation13 + $0x18] sm:$0xff] %v1922
    %1949 = vst [vmem:[#allocation13 + $0x20] sm:$0xff] %v1927
    %1950 = vst [vmem:[#allocation13 + $0x28] sm:$0xff] %v1932
    %1951 = vst [vmem:[#allocation13 + $0x30] sm:$0xff] %v1937
    %1952 = vst [vmem:[#allocation13 + $0x38] sm:$0xff] %v1942
    // Predicated region
    $region50: #{tpu_custom_call.1} parent=1 // pred_check
      _
    $region51: #{tpu_custom_call.1} parent=1 // pred_check_branch
      %1954 = sbr.rel (0) target = $region53
    $region52: #{tpu_custom_call.1} parent=1 // pred_region
      %s1956 = ssub.s32 1024, 1024
      %1957 = vsyncadd [#allocation7], %s1956
      %s1958 = sshll.u32 [#allocation13], 4
      %s1959 = int_to_ptr.vmem [resolvable:$true] %s1958
      %1964 = dma.vmem_to_hbm [thread:$0]  %s1959, 1024, %s7, [#allocation7], 128, 128, 8
    $region53: #{tpu_custom_call.1} parent=1 // pred_fallthru
      _
    // Predicated region
    $region54: #{tpu_custom_call.1} parent=1 // pred_check
      _
    $region55: #{tpu_custom_call.1} parent=1 // pred_check_branch
      %1966 = sbr.rel (0) target = $region57
    $region56: #{tpu_custom_call.1} parent=1 // pred_region
      %1967 = dma.done [#allocation7], 1024
    $region57: #{tpu_custom_call.1} parent=1 // pred_fallthru
      _
    %1968 = vsyncpa [#allocation6], 1
    %1969 = vsyncpa [#allocation9], 1
    %1970 = vsyncpa [#allocation12], 1
    %1971 = vsyncpa [#allocation7], 1

</llo_original>
